<compile_context>
chip_gen: v7x
topology: tpu7x:2x2x1
jax: 0.10.0
libtpu: 0.0.40
codegen_flags: <defaults>
</compile_context>

<pallas_src>
import functools

import jax
import jax.numpy as jnp
from jax import lax
from jax.experimental import pallas as pl
from jax.experimental.pallas import tpu as pltpu


def _round_up(x, m):
    return (x + m - 1) // m * m


def _vmem_capacity_bytes():
    """Physical VMEM per TensorCore (generation aware) with a safe fallback."""
    try:
        cap = getattr(pltpu.get_tpu_info(), "vmem_capacity_bytes", None)
        if cap:
            return int(cap)
    except Exception:
        pass
    return 64 * 1024 * 1024        # conservative (v7x-sized) default


def _choose_tiles(n, s_pad, c, ch_pad, x_bytes, vmem_budget):
    """Pick (tq, tk): the largest MXU-friendly tiles that fit the VMEM budget,
    preferring a query tiling with >= 2 'parallel' grid blocks (v7x dual TC)."""
    cands = [t for t in (1024, 512, 256, 128) if s_pad % t == 0] or [s_pad]

    def est(tq, tk):
        bf16 = 2
        b = 0
        b += 2 * c * tq * x_bytes                 # x query tile (double buffered)
        b += 2 * ch_pad * tq * bf16               # theta query tile
        b += 2 * tk * ch_pad * bf16               # phi^T kv tile
        b += 2 * ch_pad * tk * bf16               # g kv tile
        b += 2 * c * tq * x_bytes                 # output tile
        b += c * ch_pad * bf16                    # W_z (single buffered)
        b += c * 128 * 4                          # b_z ((C,1) lane-padded)
        b += ch_pad * tq * 4 + 2 * 8 * tq * 4     # acc + m/l scratch
        return b

    for need_two_blocks in (True, False):
        for tq in cands:
            if need_two_blocks and n * (s_pad // tq) < 2:
                continue
            for tk in cands:
                if est(tq, tk) <= vmem_budget:
                    return tq, tk
    return cands[-1], cands[-1]


def _nl_attn_kernel(x_q_ref, th_ref, phit_ref, g_ref, wz_ref, bz_ref, o_ref,
                    m_s, l_s, acc_s, *, s_valid, s_pad, tk, compute_dtype):
    """Flash-style attention over the spatial axis + fused W_z / residual."""
    ki = pl.program_id(2)

    @pl.when(ki == 0)
    def _init():
        m_s[...] = jnp.full_like(m_s, -jnp.inf)
        l_s[...] = jnp.zeros_like(l_s)
        acc_s[...] = jnp.zeros_like(acc_s)

    theta = th_ref[0]                       # (Chp, TQ)  bf16, queries on lanes
    phi_t = phit_ref[0]                     # (TK, Chp)  bf16
    g = g_ref[0]                            # (Chp, TK)  bf16

    # Scores with keys on sublanes, queries on lanes: f_t[k, q] (plain matmul,
    # no transposed operands -> no XLU vxpose per kv step).
    f_t = jnp.dot(phi_t, theta, preferred_element_type=jnp.float32)   # (TK, TQ)

    if s_pad != s_valid:                    # static: only when S was padded
        key_ids = ki * tk + lax.broadcasted_iota(jnp.int32, f_t.shape, 0)
        f_t = jnp.where(key_ids < s_valid, f_t, -jnp.inf)

    # Online softmax update (f32); per-query stats live on lanes: (1, TQ).
    m_prev = m_s[...]
    m_new = jnp.maximum(m_prev, jnp.max(f_t, axis=0, keepdims=True))
    alpha = jnp.exp(m_prev - m_new)
    p_t = jnp.exp(f_t - m_new)              # (TK, TQ)
    l_s[...] = alpha * l_s[...] + jnp.sum(p_t, axis=0, keepdims=True)
    acc_s[...] = alpha * acc_s[...] + jnp.dot(
        g, p_t.astype(compute_dtype), preferred_element_type=jnp.float32)
    m_s[...] = m_new

    @pl.when(ki == pl.num_programs(2) - 1)
    def _finalize():
        approx = jnp.dtype(compute_dtype) != jnp.dtype(jnp.float32)   # static
        y_t = acc_s[...] * pl.reciprocal(l_s[...], approx=approx)     # (Chp, TQ)
        out = jnp.dot(wz_ref[...], y_t.astype(compute_dtype),
                      preferred_element_type=jnp.float32)
        o_ref[0] = (out + bz_ref[...] + x_q_ref[0]).astype(o_ref.dtype)


@functools.partial(jax.jit,
                   static_argnames=("compute_dtype", "single_buffer_weights"))
def nonlocal_block(x, wg, bg, wt, bt, wp, bp, wz, bz, *,
                   compute_dtype=jnp.bfloat16, single_buffer_weights=True):
    """Non-local block forward (embedded_gaussian).

    x: (N, C, T, H, W) float32.
    wg/wt/wp: (Ch, C) squeezed Conv3d(1x1x1) weights; bg/bt/bp: (Ch,) biases.
    wz: (C, Ch); bz: (C,).
    """
    N, C, T, H, W = x.shape
    Ch = wg.shape[0]
    S = T * H * W
    S_pad = _round_up(S, 128)
    ch_pad = _round_up(Ch, 128)
    cd = jnp.dtype(compute_dtype)

    # NCTHW is already channels-first: (N, C, S) is a pure reshape.
    x_flat = x.reshape(N, C, S)
    if S_pad != S:
        x_flat = jnp.pad(x_flat, ((0, 0), (0, 0), (0, S_pad - S)))
    xb = x_flat.astype(cd)

    # --- Hoisted 1x1x1 projections: once per input, not once per kv step. ---
    def pad_w(w):                            # (Ch, C) -> (ch_pad, C), zero rows
        return jnp.zeros((ch_pad, C), w.dtype).at[:Ch, :].set(w).astype(cd)

    def pad_b(b):                            # (Ch,) -> (ch_pad,), zero rows
        return jnp.zeros((ch_pad,), jnp.float32).at[:Ch].set(
            b.astype(jnp.float32))

    theta = (jnp.einsum('hc,ncs->nhs', pad_w(wt), xb,
                        preferred_element_type=jnp.float32)
             + pad_b(bt)[None, :, None]).astype(cd)        # (N, Chp, S_pad)
    g_p = (jnp.einsum('hc,ncs->nhs', pad_w(wg), xb,
                      preferred_element_type=jnp.float32)
           + pad_b(bg)[None, :, None]).astype(cd)          # (N, Chp, S_pad)
    phi_t = (jnp.einsum('hc,ncs->nsh', pad_w(wp), xb,      # pre-transposed
                        preferred_element_type=jnp.float32)
             + pad_b(bp)[None, None, :]).astype(cd)        # (N, S_pad, Chp)

    wz_p = jnp.zeros((C, ch_pad), wz.dtype).at[:, :Ch].set(wz).astype(cd)
    bz_c = bz.reshape(C, 1).astype(jnp.float32)

    # --- Generation-aware VMEM limit and tile selection. ---
    vmem_cap = _vmem_capacity_bytes()                       # 128 MiB v5e/v6e, 64 MiB v7x
    vmem_limit = min(int(vmem_cap * 0.75), 112 * 1024 * 1024)
    tq, tk = _choose_tiles(N, S_pad, C, ch_pad, x.dtype.itemsize,
                           int(vmem_limit * 0.9))

    const2d = lambda n, qi, ki: (0, 0)
    if single_buffer_weights:
        # Constant-index blocks: double buffering is pure VMEM waste.
        wz_spec = pl.BlockSpec((C, ch_pad), const2d, pipeline_mode=pl.Buffered(1))
        bz_spec = pl.BlockSpec((C, 1), const2d, pipeline_mode=pl.Buffered(1))
    else:
        wz_spec = pl.BlockSpec((C, ch_pad), const2d)
        bz_spec = pl.BlockSpec((C, 1), const2d)

    kernel = functools.partial(_nl_attn_kernel, s_valid=S, s_pad=S_pad, tk=tk,
                               compute_dtype=cd)

    out_flat = pl.pallas_call(
        kernel,
        out_shape=jax.ShapeDtypeStruct((N, C, S_pad), x.dtype),
        grid_spec=pltpu.PrefetchScalarGridSpec(
            num_scalar_prefetch=0,
            grid=(N, S_pad // tq, S_pad // tk),
            in_specs=[
                pl.BlockSpec((1, C, tq), lambda n, qi, ki: (n, 0, qi)),       # x (residual)
                pl.BlockSpec((1, ch_pad, tq), lambda n, qi, ki: (n, 0, qi)),  # theta
                pl.BlockSpec((1, tk, ch_pad), lambda n, qi, ki: (n, ki, 0)),  # phi^T
                pl.BlockSpec((1, ch_pad, tk), lambda n, qi, ki: (n, 0, ki)),  # g
                wz_spec,                                                      # W_z
                bz_spec,                                                      # b_z
            ],
            out_specs=pl.BlockSpec((1, C, tq), lambda n, qi, ki: (n, 0, qi)),
            scratch_shapes=[
                pltpu.VMEM((1, tq), jnp.float32),        # running row max
                pltpu.VMEM((1, tq), jnp.float32),        # running row sum
                pltpu.VMEM((ch_pad, tq), jnp.float32),   # output accumulator
            ],
        ),
        compiler_params=pltpu.CompilerParams(
            dimension_semantics=("parallel", "parallel", "arbitrary"),
            vmem_limit_bytes=vmem_limit,
        ),
    )(x_flat, theta, phi_t, g_p, wz_p, bz_c)

    return out_flat[:, :, :S].reshape(N, C, T, H, W)


def nonlocal_block_ref(x, wg, bg, wt, bt, wp, bp, wz, bz):
    """Exact f32 reference mirroring the PyTorch forward."""
    N, C, T, H, W = x.shape
    S = T * H * W
    hp = jax.lax.Precision.HIGHEST
    xf = x.reshape(N, C, S).astype(jnp.float32)
    theta = jnp.einsum('hc,ncs->nhs', wt, xf, precision=hp) + bt[None, :, None]
    phi = jnp.einsum('hc,ncs->nhs', wp, xf, precision=hp) + bp[None, :, None]
    g = jnp.einsum('hc,ncs->nhs', wg, xf, precision=hp) + bg[None, :, None]
    f = jnp.einsum('nhs,nht->nst', theta, phi, precision=hp)
    p = jax.nn.softmax(f, axis=-1)
    y = jnp.einsum('nst,nht->nhs', p, g, precision=hp)
    out = jnp.einsum('ch,nhs->ncs', wz, y, precision=hp) + bz[None, :, None] + xf
    return out.reshape(N, C, T, H, W)


def nonlocal_block_bf16_ref(x, wg, bg, wt, bt, wp, bp, wz, bz):
    """Reference mirroring the kernel numerics: bf16 matmul operands, f32
    accumulation, f32 softmax, unnormalised aggregation + final 1/l scale."""
    N, C, T, H, W = x.shape
    S = T * H * W
    bf, f32 = jnp.bfloat16, jnp.float32
    xf = x.reshape(N, C, S)
    xb = xf.astype(bf)

    def proj(w, b):
        o = jnp.einsum('hc,ncs->nhs', w.astype(bf), xb,
                       preferred_element_type=f32) + b[None, :, None]
        return o.astype(bf)

    theta, phi, g = proj(wt, bt), proj(wp, bp), proj(wg, bg)
    f = jnp.einsum('nhs,nht->nst', theta, phi, preferred_element_type=f32)
    m = jnp.max(f, axis=-1, keepdims=True)
    pt = jnp.exp(f - m)
    l = jnp.sum(pt, axis=-1, keepdims=True)                 # (N, S, 1)
    y = jnp.einsum('nst,nht->nhs', pt.astype(bf), g, preferred_element_type=f32)
    y = y / jnp.swapaxes(l, 1, 2)                           # (N, Ch, S)
    out = (jnp.einsum('ch,nhs->ncs', wz.astype(bf), y.astype(bf),
                      preferred_element_type=f32)
           + bz[None, :, None] + xf)
    return out.reshape(N, C, T, H, W)


if __name__ == "__main__":
    def make_inputs(key, N, C, T, H, W):
        Ch = max(C // 2, 1)
        ks = jax.random.split(key, 9)
        x = jax.random.normal(ks[0], (N, C, T, H, W), dtype=jnp.float32)
        wg = 0.5 * jax.random.normal(ks[1], (Ch, C), dtype=jnp.float32)
        bg = 0.1 * jax.random.normal(ks[2], (Ch,), dtype=jnp.float32)
        wt = 0.5 * jax.random.normal(ks[3], (Ch, C), dtype=jnp.float32)
        bt = 0.1 * jax.random.normal(ks[4], (Ch,), dtype=jnp.float32)
        wp = 0.5 * jax.random.normal(ks[5], (Ch, C), dtype=jnp.float32)
        bp = 0.1 * jax.random.normal(ks[6], (Ch,), dtype=jnp.float32)
        wz = 0.5 * jax.random.normal(ks[7], (C, Ch), dtype=jnp.float32)
        bz = 0.1 * jax.random.normal(ks[8], (C,), dtype=jnp.float32)
        return (x, wg, bg, wt, bt, wp, bp, wz, bz)

    key = jax.random.PRNGKey(0)
    k1, k2 = jax.random.split(key)

    configs = [
        (k1, 2, 4, 4, 8, 8),   # S = 256: 128-aligned tiling path
        (k2, 1, 6, 3, 5, 5),   # S = 75 -> padded to 128: key-masking path
    ]

    single_buffer = True
    for i, (k, N, C, T, H, W) in enumerate(configs):
        args = make_inputs(k, N, C, T, H, W)
        try:
            out = jax.block_until_ready(
                nonlocal_block(*args, single_buffer_weights=single_buffer))
        except Exception:
            # pl.Buffered(1) single-buffering of the constant weights is not
            # supported by this jax version; fall back to default buffering.
            single_buffer = False
            out = jax.block_until_ready(
                nonlocal_block(*args, single_buffer_weights=False))

        assert out.shape == (N, C, T, H, W)
        assert out.dtype == args[0].dtype

        ref_bf16 = nonlocal_block_bf16_ref(*args)
        assert jnp.allclose(out, ref_bf16, atol=5e-2, rtol=5e-2), \
            f"config {i}: mismatch vs bf16 reference"
        ref_f32 = nonlocal_block_ref(*args)
        assert jnp.allclose(out, ref_f32, atol=2.5e-1, rtol=2.5e-1), \
            f"config {i}: mismatch vs f32 reference"

    print("KERNEL_OK")
</pallas_src>

<mosaic_0001>
module attributes {stable_mosaic.version = 11 : i64} {
  func.func @_nl_attn_kernel(%arg0: i32, %arg1: i32, %arg2: i32, %arg3: memref<1x4x256xf32, #tpu.memory_space<vmem>>, %arg4: memref<1x128x256xbf16, #tpu.memory_space<vmem>>, %arg5: memref<1x256x128xbf16, #tpu.memory_space<vmem>>, %arg6: memref<1x128x256xbf16, #tpu.memory_space<vmem>>, %arg7: memref<4x128xbf16, #tpu.memory_space<vmem>>, %arg8: memref<4x1xf32, #tpu.memory_space<vmem>>, %arg9: memref<1x4x256xf32, #tpu.memory_space<vmem>>, %arg10: memref<1x256xf32, #tpu.memory_space<vmem>>, %arg11: memref<1x256xf32, #tpu.memory_space<vmem>>, %arg12: memref<128x256xf32, #tpu.memory_space<vmem>>) attributes {dimension_semantics = [#tpu.dimension_semantics<parallel>, #tpu.dimension_semantics<parallel>, #tpu.dimension_semantics<arbitrary>], iteration_bounds = array<i64: 2, 1, 1>, scalar_prefetch = 0 : i64, scratch_operands = 3 : i64, tpu.core_type = #tpu.core_type<tc>, window_params = [{transform_indices = @transform_0, window_bounds = array<i64: 1, 4, 256>}, {transform_indices = @transform_1, window_bounds = array<i64: 1, 128, 256>}, {transform_indices = @transform_2, window_bounds = array<i64: 1, 256, 128>}, {transform_indices = @transform_3, window_bounds = array<i64: 1, 128, 256>}, {pipeline_mode = #tpu.pipeline_mode<synchronous>, transform_indices = @transform_4, window_bounds = array<i64: 4, 128>}, {pipeline_mode = #tpu.pipeline_mode<synchronous>, transform_indices = @transform_5, window_bounds = array<i64: 4, 1>}, {transform_indices = @transform_6, window_bounds = array<i64: 1, 4, 256>}]} {
    %c0_i32 = arith.constant 0 : i32
    %0 = arith.cmpi eq, %arg2, %c0_i32 : i32
    %1 = arith.extui %0 : i1 to i32
    %c0_i32_0 = arith.constant 0 : i32
    %2 = arith.cmpi ne, %1, %c0_i32_0 : i32
    scf.if %2 {
      %cst_26 = arith.constant 0xFF800000 : f32
      %36 = vector.broadcast %cst_26 : f32 to vector<1x256xf32>
      %c0_27 = arith.constant 0 : index
      %c0_28 = arith.constant 0 : index
      %37 = vector.load %arg10[%c0_27, %c0_28] : memref<1x256xf32, #tpu.memory_space<vmem>>, vector<1x256xf32>
      tpu.vector_store %arg10[%c0_27, %c0_28], %36 {strides = array<i32>} : memref<1x256xf32, #tpu.memory_space<vmem>>, vector<1x256xf32>,
      %cst_29 = arith.constant 0.000000e+00 : f32
      %38 = vector.broadcast %cst_29 : f32 to vector<1x256xf32>
      %c0_30 = arith.constant 0 : index
      %c0_31 = arith.constant 0 : index
      %39 = vector.load %arg11[%c0_30, %c0_31] : memref<1x256xf32, #tpu.memory_space<vmem>>, vector<1x256xf32>
      tpu.vector_store %arg11[%c0_30, %c0_31], %38 {strides = array<i32>} : memref<1x256xf32, #tpu.memory_space<vmem>>, vector<1x256xf32>,
      %cst_32 = arith.constant 0.000000e+00 : f32
      %40 = vector.broadcast %cst_32 : f32 to vector<128x256xf32>
      %c0_33 = arith.constant 0 : index
      %c0_34 = arith.constant 0 : index
      %41 = vector.load %arg12[%c0_33, %c0_34] : memref<128x256xf32, #tpu.memory_space<vmem>>, vector<128x256xf32>
      tpu.vector_store %arg12[%c0_33, %c0_34], %40 {strides = array<i32>} : memref<128x256xf32, #tpu.memory_space<vmem>>, vector<128x256xf32>,
    } else {
    }
    %c0 = arith.constant 0 : index
    %c0_1 = arith.constant 0 : index
    %c0_2 = arith.constant 0 : index
    %3 = vector.load %arg4[%c0, %c0_1, %c0_2] : memref<1x128x256xbf16, #tpu.memory_space<vmem>>, vector<1x128x256xbf16>
    %4 = vector.shape_cast %3 : vector<1x128x256xbf16> to vector<128x256xbf16>
    %c0_3 = arith.constant 0 : index
    %c0_4 = arith.constant 0 : index
    %c0_5 = arith.constant 0 : index
    %5 = vector.load %arg5[%c0_3, %c0_4, %c0_5] : memref<1x256x128xbf16, #tpu.memory_space<vmem>>, vector<1x256x128xbf16>
    %6 = vector.shape_cast %5 : vector<1x256x128xbf16> to vector<256x128xbf16>
    %c0_6 = arith.constant 0 : index
    %c0_7 = arith.constant 0 : index
    %c0_8 = arith.constant 0 : index
    %7 = vector.load %arg6[%c0_6, %c0_7, %c0_8] : memref<1x128x256xbf16, #tpu.memory_space<vmem>>, vector<1x128x256xbf16>
    %8 = vector.shape_cast %7 : vector<1x128x256xbf16> to vector<128x256xbf16>
    %cst = arith.constant dense<0.000000e+00> : vector<256x256xf32>
    %9 = tpu.matmul %6, %4, %cst {dimension_numbers = #tpu.dot_dimension_numbers<[1], [0], [0], [1], [0, 0, 1, 1], [], []>} : vector<256x128xbf16>, vector<128x256xbf16>, vector<256x256xf32> -> vector<256x256xf32>
    %c0_9 = arith.constant 0 : index
    %c0_10 = arith.constant 0 : index
    %10 = vector.load %arg10[%c0_9, %c0_10] : memref<1x256xf32, #tpu.memory_space<vmem>>, vector<1x256xf32>
    %cst_11 = arith.constant dense<0xFF800000> : vector<256xf32>
    %11 = vector.multi_reduction <maximumf>, %9, %cst_11 [0] : vector<256x256xf32> to vector<256xf32>
    %12 = vector.shape_cast %11 : vector<256xf32> to vector<1x256xf32>
    %13 = arith.maximumf %10, %12 : vector<1x256xf32>
    %14 = arith.subf %10, %13 : vector<1x256xf32>
    %15 = math.exp %14 : vector<1x256xf32>
    %16 = vector.broadcast %13 : vector<1x256xf32> to vector<256x256xf32>
    %17 = arith.subf %9, %16 : vector<256x256xf32>
    %18 = math.exp %17 : vector<256x256xf32>
    %c0_12 = arith.constant 0 : index
    %c0_13 = arith.constant 0 : index
    %19 = vector.load %arg11[%c0_12, %c0_13] : memref<1x256xf32, #tpu.memory_space<vmem>>, vector<1x256xf32>
    %20 = arith.mulf %15, %19 : vector<1x256xf32>
    %cst_14 = arith.constant dense<0.000000e+00> : vector<256xf32>
    %21 = vector.multi_reduction <add>, %18, %cst_14 [0] : vector<256x256xf32> to vector<256xf32>
    %22 = vector.shape_cast %21 : vector<256xf32> to vector<1x256xf32>
    %23 = arith.addf %20, %22 : vector<1x256xf32>
    %c0_15 = arith.constant 0 : index
    %c0_16 = arith.constant 0 : index
    %24 = vector.load %arg11[%c0_15, %c0_16] : memref<1x256xf32, #tpu.memory_space<vmem>>, vector<1x256xf32>
    tpu.vector_store %arg11[%c0_15, %c0_16], %23 {strides = array<i32>} : memref<1x256xf32, #tpu.memory_space<vmem>>, vector<1x256xf32>,
    %c0_17 = arith.constant 0 : index
    %c0_18 = arith.constant 0 : index
    %25 = vector.load %arg12[%c0_17, %c0_18] : memref<128x256xf32, #tpu.memory_space<vmem>>, vector<128x256xf32>
    %26 = vector.broadcast %15 : vector<1x256xf32> to vector<128x256xf32>
    %27 = arith.mulf %26, %25 : vector<128x256xf32>
    %28 = arith.truncf %18 : vector<256x256xf32> to vector<256x256xbf16>
    %cst_19 = arith.constant dense<0.000000e+00> : vector<128x256xf32>
    %29 = tpu.matmul %8, %28, %cst_19 {dimension_numbers = #tpu.dot_dimension_numbers<[1], [0], [0], [1], [0, 0, 1, 1], [], []>} : vector<128x256xbf16>, vector<256x256xbf16>, vector<128x256xf32> -> vector<128x256xf32>
    %30 = arith.addf %27, %29 : vector<128x256xf32>
    %c0_20 = arith.constant 0 : index
    %c0_21 = arith.constant 0 : index
    %31 = vector.load %arg12[%c0_20, %c0_21] : memref<128x256xf32, #tpu.memory_space<vmem>>, vector<128x256xf32>
    tpu.vector_store %arg12[%c0_20, %c0_21], %30 {strides = array<i32>} : memref<128x256xf32, #tpu.memory_space<vmem>>, vector<128x256xf32>,
    %c0_22 = arith.constant 0 : index
    %c0_23 = arith.constant 0 : index
    %32 = vector.load %arg10[%c0_22, %c0_23] : memref<1x256xf32, #tpu.memory_space<vmem>>, vector<1x256xf32>
    tpu.vector_store %arg10[%c0_22, %c0_23], %13 {strides = array<i32>} : memref<1x256xf32, #tpu.memory_space<vmem>>, vector<1x256xf32>,
    %c0_i32_24 = arith.constant 0 : i32
    %33 = arith.cmpi eq, %arg2, %c0_i32_24 : i32
    %34 = arith.extui %33 : i1 to i32
    %c0_i32_25 = arith.constant 0 : i32
    %35 = arith.cmpi ne, %34, %c0_i32_25 : i32
    scf.if %35 {
      %c0_26 = arith.constant 0 : index
      %c0_27 = arith.constant 0 : index
      %36 = vector.load %arg12[%c0_26, %c0_27] : memref<128x256xf32, #tpu.memory_space<vmem>>, vector<128x256xf32>
      %c0_28 = arith.constant 0 : index
      %c0_29 = arith.constant 0 : index
      %37 = vector.load %arg11[%c0_28, %c0_29] : memref<1x256xf32, #tpu.memory_space<vmem>>, vector<1x256xf32>
      %38 = tpu.reciprocal %37 {approx = true} : vector<1x256xf32> -> vector<1x256xf32>
      %39 = vector.broadcast %38 : vector<1x256xf32> to vector<128x256xf32>
      %40 = arith.mulf %36, %39 : vector<128x256xf32>
      %c0_30 = arith.constant 0 : index
      %c0_31 = arith.constant 0 : index
      %41 = vector.load %arg7[%c0_30, %c0_31] : memref<4x128xbf16, #tpu.memory_space<vmem>>, vector<4x128xbf16>
      %42 = arith.truncf %40 : vector<128x256xf32> to vector<128x256xbf16>
      %cst_32 = arith.constant dense<0.000000e+00> : vector<4x256xf32>
      %43 = tpu.matmul %41, %42, %cst_32 {dimension_numbers = #tpu.dot_dimension_numbers<[1], [0], [0], [1], [0, 0, 1, 1], [], []>} : vector<4x128xbf16>, vector<128x256xbf16>, vector<4x256xf32> -> vector<4x256xf32>
      %c0_33 = arith.constant 0 : index
      %c0_34 = arith.constant 0 : index
      %44 = vector.load %arg8[%c0_33, %c0_34] : memref<4x1xf32, #tpu.memory_space<vmem>>, vector<4x1xf32>
      %45 = vector.broadcast %44 : vector<4x1xf32> to vector<4x256xf32>
      %46 = arith.addf %43, %45 : vector<4x256xf32>
      %c0_35 = arith.constant 0 : index
      %c0_36 = arith.constant 0 : index
      %c0_37 = arith.constant 0 : index
      %47 = vector.load %arg3[%c0_35, %c0_36, %c0_37] : memref<1x4x256xf32, #tpu.memory_space<vmem>>, vector<1x4x256xf32>
      %48 = vector.shape_cast %47 : vector<1x4x256xf32> to vector<4x256xf32>
      %49 = arith.addf %46, %48 : vector<4x256xf32>
      %c0_38 = arith.constant 0 : index
      %c0_39 = arith.constant 0 : index
      %c0_40 = arith.constant 0 : index
      %50 = vector.load %arg9[%c0_38, %c0_39, %c0_40] : memref<1x4x256xf32, #tpu.memory_space<vmem>>, vector<1x4x256xf32>
      %51 = vector.shape_cast %50 : vector<1x4x256xf32> to vector<4x256xf32>
      %52 = vector.shape_cast %49 : vector<4x256xf32> to vector<1x4x256xf32>
      tpu.vector_store %arg9[%c0_38, %c0_39, %c0_40], %52 {strides = array<i32>} : memref<1x4x256xf32, #tpu.memory_space<vmem>>, vector<1x4x256xf32>,
    } else {
    }
    return
  }
  func.func @transform_0(%arg0: i32, %arg1: i32, %arg2: i32) -> (i32, i32, i32) {
    %c0_i32 = arith.constant 0 : i32
    %c0_i32_0 = arith.constant 0 : i32
    return %arg0, %c0_i32, %arg1 : i32, i32, i32
  }
  func.func @transform_1(%arg0: i32, %arg1: i32, %arg2: i32) -> (i32, i32, i32) {
    %c0_i32 = arith.constant 0 : i32
    %c0_i32_0 = arith.constant 0 : i32
    return %arg0, %c0_i32, %arg1 : i32, i32, i32
  }
  func.func @transform_2(%arg0: i32, %arg1: i32, %arg2: i32) -> (i32, i32, i32) {
    %c0_i32 = arith.constant 0 : i32
    %c0_i32_0 = arith.constant 0 : i32
    return %arg0, %arg2, %c0_i32 : i32, i32, i32
  }
  func.func @transform_3(%arg0: i32, %arg1: i32, %arg2: i32) -> (i32, i32, i32) {
    %c0_i32 = arith.constant 0 : i32
    %c0_i32_0 = arith.constant 0 : i32
    return %arg0, %c0_i32, %arg2 : i32, i32, i32
  }
  func.func @transform_4(%arg0: i32, %arg1: i32, %arg2: i32) -> (i32, i32) {
    %c0_i32 = arith.constant 0 : i32
    %c0_i32_0 = arith.constant 0 : i32
    %c0_i32_1 = arith.constant 0 : i32
    return %c0_i32, %c0_i32_0 : i32, i32
  }
  func.func @transform_5(%arg0: i32, %arg1: i32, %arg2: i32) -> (i32, i32) {
    %c0_i32 = arith.constant 0 : i32
    %c0_i32_0 = arith.constant 0 : i32
    %c0_i32_1 = arith.constant 0 : i32
    return %c0_i32, %c0_i32_0 : i32, i32
  }
  func.func @transform_6(%arg0: i32, %arg1: i32, %arg2: i32) -> (i32, i32, i32) {
    %c0_i32 = arith.constant 0 : i32
    %c0_i32_0 = arith.constant 0 : i32
    return %arg0, %c0_i32, %arg1 : i32, i32, i32
  }
}

module attributes {stable_mosaic.version = 11 : i64} {
  func.func @_nl_attn_kernel(%arg0: i32, %arg1: i32, %arg2: i32, %arg3: memref<1x4x256xf32, #tpu.memory_space<vmem>>, %arg4: memref<1x128x256xbf16, #tpu.memory_space<vmem>>, %arg5: memref<1x256x128xbf16, #tpu.memory_space<vmem>>, %arg6: memref<1x128x256xbf16, #tpu.memory_space<vmem>>, %arg7: memref<4x128xbf16, #tpu.memory_space<vmem>>, %arg8: memref<4x1xf32, #tpu.memory_space<vmem>>, %arg9: memref<1x4x256xf32, #tpu.memory_space<vmem>>, %arg10: memref<1x256xf32, #tpu.memory_space<vmem>>, %arg11: memref<1x256xf32, #tpu.memory_space<vmem>>, %arg12: memref<128x256xf32, #tpu.memory_space<vmem>>) attributes {dimension_semantics = [#tpu.dimension_semantics<parallel>, #tpu.dimension_semantics<parallel>, #tpu.dimension_semantics<arbitrary>], iteration_bounds = array<i64: 2, 1, 1>, scalar_prefetch = 0 : i64, scratch_operands = 3 : i64, tpu.core_type = #tpu.core_type<tc>, window_params = [{transform_indices = @transform_0, window_bounds = array<i64: 1, 4, 256>}, {transform_indices = @transform_1, window_bounds = array<i64: 1, 128, 256>}, {transform_indices = @transform_2, window_bounds = array<i64: 1, 256, 128>}, {transform_indices = @transform_3, window_bounds = array<i64: 1, 128, 256>}, {pipeline_mode = #tpu.pipeline_mode<synchronous>, transform_indices = @transform_4, window_bounds = array<i64: 4, 128>}, {pipeline_mode = #tpu.pipeline_mode<synchronous>, transform_indices = @transform_5, window_bounds = array<i64: 4, 1>}, {transform_indices = @transform_6, window_bounds = array<i64: 1, 4, 256>}]} {
    %c0_i32 = arith.constant 0 : i32
    %0 = arith.cmpi eq, %arg2, %c0_i32 : i32
    %1 = arith.extui %0 : i1 to i32
    %c0_i32_0 = arith.constant 0 : i32
    %2 = arith.cmpi ne, %1, %c0_i32_0 : i32
    scf.if %2 {
      %cst_26 = arith.constant 0xFF800000 : f32
      %36 = vector.broadcast %cst_26 : f32 to vector<1x256xf32>
      %c0_27 = arith.constant 0 : index
      %c0_28 = arith.constant 0 : index
      %37 = vector.load %arg10[%c0_27, %c0_28] : memref<1x256xf32, #tpu.memory_space<vmem>>, vector<1x256xf32>
      tpu.vector_store %arg10[%c0_27, %c0_28], %36 {strides = array<i32>} : memref<1x256xf32, #tpu.memory_space<vmem>>, vector<1x256xf32>,
      %cst_29 = arith.constant 0.000000e+00 : f32
      %38 = vector.broadcast %cst_29 : f32 to vector<1x256xf32>
      %c0_30 = arith.constant 0 : index
      %c0_31 = arith.constant 0 : index
      %39 = vector.load %arg11[%c0_30, %c0_31] : memref<1x256xf32, #tpu.memory_space<vmem>>, vector<1x256xf32>
      tpu.vector_store %arg11[%c0_30, %c0_31], %38 {strides = array<i32>} : memref<1x256xf32, #tpu.memory_space<vmem>>, vector<1x256xf32>,
      %cst_32 = arith.constant 0.000000e+00 : f32
      %40 = vector.broadcast %cst_32 : f32 to vector<128x256xf32>
      %c0_33 = arith.constant 0 : index
      %c0_34 = arith.constant 0 : index
      %41 = vector.load %arg12[%c0_33, %c0_34] : memref<128x256xf32, #tpu.memory_space<vmem>>, vector<128x256xf32>
      tpu.vector_store %arg12[%c0_33, %c0_34], %40 {strides = array<i32>} : memref<128x256xf32, #tpu.memory_space<vmem>>, vector<128x256xf32>,
    } else {
    }
    %c0 = arith.constant 0 : index
    %c0_1 = arith.constant 0 : index
    %c0_2 = arith.constant 0 : index
    %3 = vector.load %arg4[%c0, %c0_1, %c0_2] : memref<1x128x256xbf16, #tpu.memory_space<vmem>>, vector<1x128x256xbf16>
    %4 = vector.shape_cast %3 : vector<1x128x256xbf16> to vector<128x256xbf16>
    %c0_3 = arith.constant 0 : index
    %c0_4 = arith.constant 0 : index
    %c0_5 = arith.constant 0 : index
    %5 = vector.load %arg5[%c0_3, %c0_4, %c0_5] : memref<1x256x128xbf16, #tpu.memory_space<vmem>>, vector<1x256x128xbf16>
    %6 = vector.shape_cast %5 : vector<1x256x128xbf16> to vector<256x128xbf16>
    %c0_6 = arith.constant 0 : index
    %c0_7 = arith.constant 0 : index
    %c0_8 = arith.constant 0 : index
    %7 = vector.load %arg6[%c0_6, %c0_7, %c0_8] : memref<1x128x256xbf16, #tpu.memory_space<vmem>>, vector<1x128x256xbf16>
    %8 = vector.shape_cast %7 : vector<1x128x256xbf16> to vector<128x256xbf16>
    %cst = arith.constant dense<0.000000e+00> : vector<256x256xf32>
    %9 = tpu.matmul %6, %4, %cst {dimension_numbers = #tpu.dot_dimension_numbers<[1], [0], [0], [1], [0, 0, 1, 1], [], []>} : vector<256x128xbf16>, vector<128x256xbf16>, vector<256x256xf32> -> vector<256x256xf32>
    %c0_9 = arith.constant 0 : index
    %c0_10 = arith.constant 0 : index
    %10 = vector.load %arg10[%c0_9, %c0_10] : memref<1x256xf32, #tpu.memory_space<vmem>>, vector<1x256xf32>
    %cst_11 = arith.constant dense<0xFF800000> : vector<256xf32>
    %11 = vector.multi_reduction <maximumf>, %9, %cst_11 [0] : vector<256x256xf32> to vector<256xf32>
    %12 = vector.shape_cast %11 : vector<256xf32> to vector<1x256xf32>
    %13 = arith.maximumf %10, %12 : vector<1x256xf32>
    %14 = arith.subf %10, %13 : vector<1x256xf32>
    %15 = math.exp %14 : vector<1x256xf32>
    %16 = vector.broadcast %13 : vector<1x256xf32> to vector<256x256xf32>
    %17 = arith.subf %9, %16 : vector<256x256xf32>
    %18 = math.exp %17 : vector<256x256xf32>
    %c0_12 = arith.constant 0 : index
    %c0_13 = arith.constant 0 : index
    %19 = vector.load %arg11[%c0_12, %c0_13] : memref<1x256xf32, #tpu.memory_space<vmem>>, vector<1x256xf32>
    %20 = arith.mulf %15, %19 : vector<1x256xf32>
    %cst_14 = arith.constant dense<0.000000e+00> : vector<256xf32>
    %21 = vector.multi_reduction <add>, %18, %cst_14 [0] : vector<256x256xf32> to vector<256xf32>
    %22 = vector.shape_cast %21 : vector<256xf32> to vector<1x256xf32>
    %23 = arith.addf %20, %22 : vector<1x256xf32>
    %c0_15 = arith.constant 0 : index
    %c0_16 = arith.constant 0 : index
    %24 = vector.load %arg11[%c0_15, %c0_16] : memref<1x256xf32, #tpu.memory_space<vmem>>, vector<1x256xf32>
    tpu.vector_store %arg11[%c0_15, %c0_16], %23 {strides = array<i32>} : memref<1x256xf32, #tpu.memory_space<vmem>>, vector<1x256xf32>,
    %c0_17 = arith.constant 0 : index
    %c0_18 = arith.constant 0 : index
    %25 = vector.load %arg12[%c0_17, %c0_18] : memref<128x256xf32, #tpu.memory_space<vmem>>, vector<128x256xf32>
    %26 = vector.broadcast %15 : vector<1x256xf32> to vector<128x256xf32>
    %27 = arith.mulf %26, %25 : vector<128x256xf32>
    %28 = arith.truncf %18 : vector<256x256xf32> to vector<256x256xbf16>
    %cst_19 = arith.constant dense<0.000000e+00> : vector<128x256xf32>
    %29 = tpu.matmul %8, %28, %cst_19 {dimension_numbers = #tpu.dot_dimension_numbers<[1], [0], [0], [1], [0, 0, 1, 1], [], []>} : vector<128x256xbf16>, vector<256x256xbf16>, vector<128x256xf32> -> vector<128x256xf32>
    %30 = arith.addf %27, %29 : vector<128x256xf32>
    %c0_20 = arith.constant 0 : index
    %c0_21 = arith.constant 0 : index
    %31 = vector.load %arg12[%c0_20, %c0_21] : memref<128x256xf32, #tpu.memory_space<vmem>>, vector<128x256xf32>
    tpu.vector_store %arg12[%c0_20, %c0_21], %30 {strides = array<i32>} : memref<128x256xf32, #tpu.memory_space<vmem>>, vector<128x256xf32>,
    %c0_22 = arith.constant 0 : index
    %c0_23 = arith.constant 0 : index
    %32 = vector.load %arg10[%c0_22, %c0_23] : memref<1x256xf32, #tpu.memory_space<vmem>>, vector<1x256xf32>
    tpu.vector_store %arg10[%c0_22, %c0_23], %13 {strides = array<i32>} : memref<1x256xf32, #tpu.memory_space<vmem>>, vector<1x256xf32>,
    %c0_i32_24 = arith.constant 0 : i32
    %33 = arith.cmpi eq, %arg2, %c0_i32_24 : i32
    %34 = arith.extui %33 : i1 to i32
    %c0_i32_25 = arith.constant 0 : i32
    %35 = arith.cmpi ne, %34, %c0_i32_25 : i32
    scf.if %35 {
      %c0_26 = arith.constant 0 : index
      %c0_27 = arith.constant 0 : index
      %36 = vector.load %arg12[%c0_26, %c0_27] : memref<128x256xf32, #tpu.memory_space<vmem>>, vector<128x256xf32>
      %c0_28 = arith.constant 0 : index
      %c0_29 = arith.constant 0 : index
      %37 = vector.load %arg11[%c0_28, %c0_29] : memref<1x256xf32, #tpu.memory_space<vmem>>, vector<1x256xf32>
      %38 = tpu.reciprocal %37 {approx = true} : vector<1x256xf32> -> vector<1x256xf32>
      %39 = vector.broadcast %38 : vector<1x256xf32> to vector<128x256xf32>
      %40 = arith.mulf %36, %39 : vector<128x256xf32>
      %c0_30 = arith.constant 0 : index
      %c0_31 = arith.constant 0 : index
      %41 = vector.load %arg7[%c0_30, %c0_31] : memref<4x128xbf16, #tpu.memory_space<vmem>>, vector<4x128xbf16>
      %42 = arith.truncf %40 : vector<128x256xf32> to vector<128x256xbf16>
      %cst_32 = arith.constant dense<0.000000e+00> : vector<4x256xf32>
      %43 = tpu.matmul %41, %42, %cst_32 {dimension_numbers = #tpu.dot_dimension_numbers<[1], [0], [0], [1], [0, 0, 1, 1], [], []>} : vector<4x128xbf16>, vector<128x256xbf16>, vector<4x256xf32> -> vector<4x256xf32>
      %c0_33 = arith.constant 0 : index
      %c0_34 = arith.constant 0 : index
      %44 = vector.load %arg8[%c0_33, %c0_34] : memref<4x1xf32, #tpu.memory_space<vmem>>, vector<4x1xf32>
      %45 = vector.broadcast %44 : vector<4x1xf32> to vector<4x256xf32>
      %46 = arith.addf %43, %45 : vector<4x256xf32>
      %c0_35 = arith.constant 0 : index
      %c0_36 = arith.constant 0 : index
      %c0_37 = arith.constant 0 : index
      %47 = vector.load %arg3[%c0_35, %c0_36, %c0_37] : memref<1x4x256xf32, #tpu.memory_space<vmem>>, vector<1x4x256xf32>
      %48 = vector.shape_cast %47 : vector<1x4x256xf32> to vector<4x256xf32>
      %49 = arith.addf %46, %48 : vector<4x256xf32>
      %c0_38 = arith.constant 0 : index
      %c0_39 = arith.constant 0 : index
      %c0_40 = arith.constant 0 : index
      %50 = vector.load %arg9[%c0_38, %c0_39, %c0_40] : memref<1x4x256xf32, #tpu.memory_space<vmem>>, vector<1x4x256xf32>
      %51 = vector.shape_cast %50 : vector<1x4x256xf32> to vector<4x256xf32>
      %52 = vector.shape_cast %49 : vector<4x256xf32> to vector<1x4x256xf32>
      tpu.vector_store %arg9[%c0_38, %c0_39, %c0_40], %52 {strides = array<i32>} : memref<1x4x256xf32, #tpu.memory_space<vmem>>, vector<1x4x256xf32>,
    } else {
    }
    return
  }
  func.func @transform_0(%arg0: i32, %arg1: i32, %arg2: i32) -> (i32, i32, i32) {
    %c0_i32 = arith.constant 0 : i32
    %c0_i32_0 = arith.constant 0 : i32
    return %arg0, %c0_i32, %arg1 : i32, i32, i32
  }
  func.func @transform_1(%arg0: i32, %arg1: i32, %arg2: i32) -> (i32, i32, i32) {
    %c0_i32 = arith.constant 0 : i32
    %c0_i32_0 = arith.constant 0 : i32
    return %arg0, %c0_i32, %arg1 : i32, i32, i32
  }
  func.func @transform_2(%arg0: i32, %arg1: i32, %arg2: i32) -> (i32, i32, i32) {
    %c0_i32 = arith.constant 0 : i32
    %c0_i32_0 = arith.constant 0 : i32
    return %arg0, %arg2, %c0_i32 : i32, i32, i32
  }
  func.func @transform_3(%arg0: i32, %arg1: i32, %arg2: i32) -> (i32, i32, i32) {
    %c0_i32 = arith.constant 0 : i32
    %c0_i32_0 = arith.constant 0 : i32
    return %arg0, %c0_i32, %arg2 : i32, i32, i32
  }
  func.func @transform_4(%arg0: i32, %arg1: i32, %arg2: i32) -> (i32, i32) {
    %c0_i32 = arith.constant 0 : i32
    %c0_i32_0 = arith.constant 0 : i32
    %c0_i32_1 = arith.constant 0 : i32
    return %c0_i32, %c0_i32_0 : i32, i32
  }
  func.func @transform_5(%arg0: i32, %arg1: i32, %arg2: i32) -> (i32, i32) {
    %c0_i32 = arith.constant 0 : i32
    %c0_i32_0 = arith.constant 0 : i32
    %c0_i32_1 = arith.constant 0 : i32
    return %c0_i32, %c0_i32_0 : i32, i32
  }
  func.func @transform_6(%arg0: i32, %arg1: i32, %arg2: i32) -> (i32, i32, i32) {
    %c0_i32 = arith.constant 0 : i32
    %c0_i32_0 = arith.constant 0 : i32
    return %arg0, %c0_i32, %arg1 : i32, i32, i32
  }
}

</mosaic_0001>

<llo_original>
// kernel: nonlocal_block.1
$region0: #{nonlocal_block.1}
  #allocation0 [shape = 'u32[]', space=smem, size = 0x4, offset = 0x4, fixed_abs, tag = 'smem constant byte address 0x4 - core index']
  #allocation1 [shape = 'u32[144,128]{1,0:T(1,128)}', space=vmem, size = 0x12000, scoped, tag = 'internal scratch']
  #allocation2 [shape = 'f32[1,256]{1,0:T(1,128)}', space=vmem, size = 0x400, scoped, tag = 'scratch operand']
  #allocation3 [shape = 'f32[1,256]{1,0:T(1,128)}', space=vmem, size = 0x400, scoped, tag = 'scratch operand']
  #allocation4 [shape = 'f32[128,256]{1,0:T(8,128)}', space=vmem, size = 0x20000, scoped, tag = 'scratch operand']
  %s0 = inlined_call_operand.vmem [shape: f32[2,4,256], index: 0, kind: input, shape index: {}]
  %s1 = inlined_call_operand.vmem [shape: bf16[2,128,256], index: 1, kind: input, shape index: {}]
  %s2 = inlined_call_operand.vmem [shape: bf16[2,256,128], index: 2, kind: input, shape index: {}]
  %s3 = inlined_call_operand.vmem [shape: bf16[2,128,256], index: 3, kind: input, shape index: {}]
  %s4 = inlined_call_operand.vmem [shape: bf16[4,128], index: 4, kind: input, shape index: {}]
  %s5 = inlined_call_operand.vmem [shape: f32[4,1], index: 5, kind: input, shape index: {}]
  %s6 = inlined_call_operand.vmem [shape: f32[2,4,256], index: 6, kind: output, shape index: {}]
  %s7 = sld [smem:[#allocation0]]
  $region65: #{nonlocal_block.1} parent=0
    _
  %s9 = ssub.s32 1, %s7
  %s10 = scalar_select 0, %s9, %s7
  loop: start=0, step=1, limit=4
  $region2: #{nonlocal_block.1} parent=0 // loop_pre_header
    _
  $region3: #{nonlocal_block.1} parent=0 // loop_header
    %s12 = sphi 0, %s16
    %p13 = scmp.ge.s32.totalorder %s12, 4
    %s19 = sphi 0, %s38
    %s20 = sphi 0, %s34
    %s21 = sphi 0, %s30
    %s22 = sphi 0, %s19
    %s23 = sphi 0, %s20
    %s24 = sphi 0, %s21
    %s25 = sphi 0, %s22
    %s26 = sphi 0, %s23
    %s27 = sphi 0, %s24
    %s43 = sphi 0, %s45
    %s46 = sphi 0, %s43
    %s47 = sphi 0, %s46
    %s63 = sphi 0, %s47
    %s71 = sphi 0, %s73
    %s74 = sphi 0, %s71
    %s75 = sphi 0, %s74
    %s91 = sphi 0, %s75
    %s99 = sphi 0, %s101
    %s102 = sphi 0, %s99
    %s103 = sphi 0, %s102
    %s119 = sphi 0, %s103
    %s127 = sphi 0, %s129
    %s130 = sphi 0, %s127
    %s131 = sphi 0, %s130
    %s147 = sphi 0, %s131
    %s151 = sphi 0, %s151
    %s153 = sphi 0, %s151
    %s154 = sphi 0, %s153
    %s168 = sphi 0, %s154
    %s172 = sphi 0, %s172
    %s174 = sphi 0, %s172
    %s175 = sphi 0, %s174
    %s189 = sphi 0, %s175
    %s197 = sphi 0, %s199
    %s200 = sphi 0, %s197
    %s201 = sphi 0, %s200
    %s217 = sphi 0, %s201
  $region4: #{nonlocal_block.1} parent=0 // loop_header_branch
    %15 = sbr.rel (%p13) target = $region8
  $region5: #{nonlocal_block.1} parent=0 // loop_body
    %s17 = ssub.s32 %s12, 1
    %s18 = ssub.s32 %s12, 2
    %s28 = sadd.s32 1, %s21
    %p29 = scmp.ge.s32.totalorder %s28, 1
    %s30 = scalar_select %p29, 0, %s28
    %s31 = sadd.s32 1, %s20
    %s32 = scalar_select %p29, %s31, %s20
    %p33 = scmp.ge.s32.totalorder %s32, 1
    %s34 = scalar_select %p33, 0, %s32
    %s35 = sadd.s32 1, %s19
    %s36 = scalar_select %p33, %s35, %s19
    %p37 = scmp.ge.s32.totalorder %s36, 2
    %s38 = scalar_select %p37, 0, %s36
    %s39 = ssub.s32 %s19, %s38
    %s40 = ssub.s32 %s20, %s34
    %s41 = sor.u32 %s39, %s40
    %p42 = scmp.eq.s32.totalorder %s41, 0
    %s44 = sadd.s32 %s43, 1
    %s45 = scalar_select %p42, %s43, %s44
    %p48 = pneg %p42
    %p49 = scmp.eq.s32.totalorder %s12, 1
    %p50 = por %p48, %p49
    %p51 = scmp.ne.s32.totalorder %s43, %s46
    %p52 = scmp.eq.s32.totalorder %s12, 0
    %p53 = por %p51, %p52
    %p54 = scmp.ne.s32.totalorder %s43, %s46
    %p55 = scmp.eq.s32.totalorder %s17, 1
    %p56 = por %p54, %p55
    %p57 = scmp.ne.s32.totalorder %s46, %s47
    %p58 = scmp.eq.s32.totalorder %s17, 0
    %p59 = por %p57, %p58
    %p60 = scmp.ne.s32.totalorder %s46, %s47
    %p61 = scmp.eq.s32.totalorder %s18, 1
    %p62 = por %p60, %p61
    %p64 = scmp.ne.s32.totalorder %s47, %s63
    %p65 = scmp.eq.s32.totalorder %s18, 0
    %p66 = por %p64, %p65
    %s67 = ssub.s32 %s19, %s38
    %s68 = ssub.s32 %s20, %s34
    %s69 = sor.u32 %s67, %s68
    %p70 = scmp.eq.s32.totalorder %s69, 0
    %s72 = sadd.s32 %s71, 1
    %s73 = scalar_select %p70, %s71, %s72
    %p76 = pneg %p70
    %p77 = scmp.eq.s32.totalorder %s12, 1
    %p78 = por %p76, %p77
    %p79 = scmp.ne.s32.totalorder %s71, %s74
    %p80 = scmp.eq.s32.totalorder %s12, 0
    %p81 = por %p79, %p80
    %p82 = scmp.ne.s32.totalorder %s71, %s74
    %p83 = scmp.eq.s32.totalorder %s17, 1
    %p84 = por %p82, %p83
    %p85 = scmp.ne.s32.totalorder %s74, %s75
    %p86 = scmp.eq.s32.totalorder %s17, 0
    %p87 = por %p85, %p86
    %p88 = scmp.ne.s32.totalorder %s74, %s75
    %p89 = scmp.eq.s32.totalorder %s18, 1
    %p90 = por %p88, %p89
    %p92 = scmp.ne.s32.totalorder %s75, %s91
    %p93 = scmp.eq.s32.totalorder %s18, 0
    %p94 = por %p92, %p93
    %s95 = ssub.s32 %s19, %s38
    %s96 = ssub.s32 %s21, %s30
    %s97 = sor.u32 %s95, %s96
    %p98 = scmp.eq.s32.totalorder %s97, 0
    %s100 = sadd.s32 %s99, 1
    %s101 = scalar_select %p98, %s99, %s100
    %p104 = pneg %p98
    %p105 = scmp.eq.s32.totalorder %s12, 1
    %p106 = por %p104, %p105
    %p107 = scmp.ne.s32.totalorder %s99, %s102
    %p108 = scmp.eq.s32.totalorder %s12, 0
    %p109 = por %p107, %p108
    %p110 = scmp.ne.s32.totalorder %s99, %s102
    %p111 = scmp.eq.s32.totalorder %s17, 1
    %p112 = por %p110, %p111
    %p113 = scmp.ne.s32.totalorder %s102, %s103
    %p114 = scmp.eq.s32.totalorder %s17, 0
    %p115 = por %p113, %p114
    %p116 = scmp.ne.s32.totalorder %s102, %s103
    %p117 = scmp.eq.s32.totalorder %s18, 1
    %p118 = por %p116, %p117
    %p120 = scmp.ne.s32.totalorder %s103, %s119
    %p121 = scmp.eq.s32.totalorder %s18, 0
    %p122 = por %p120, %p121
    %s123 = ssub.s32 %s19, %s38
    %s124 = ssub.s32 %s21, %s30
    %s125 = sor.u32 %s123, %s124
    %p126 = scmp.eq.s32.totalorder %s125, 0
    %s128 = sadd.s32 %s127, 1
    %s129 = scalar_select %p126, %s127, %s128
    %p132 = pneg %p126
    %p133 = scmp.eq.s32.totalorder %s12, 1
    %p134 = por %p132, %p133
    %p135 = scmp.ne.s32.totalorder %s127, %s130
    %p136 = scmp.eq.s32.totalorder %s12, 0
    %p137 = por %p135, %p136
    %p138 = scmp.ne.s32.totalorder %s127, %s130
    %p139 = scmp.eq.s32.totalorder %s17, 1
    %p140 = por %p138, %p139
    %p141 = scmp.ne.s32.totalorder %s130, %s131
    %p142 = scmp.eq.s32.totalorder %s17, 0
    %p143 = por %p141, %p142
    %p144 = scmp.ne.s32.totalorder %s130, %s131
    %p145 = scmp.eq.s32.totalorder %s18, 1
    %p146 = por %p144, %p145
    %p148 = scmp.ne.s32.totalorder %s131, %s147
    %p149 = scmp.eq.s32.totalorder %s18, 0
    %p150 = por %p148, %p149
    %s152 = sadd.s32 %s151, 1
    %p155 = scmp.eq.s32.totalorder %s12, 1
    %p156 = scmp.ne.s32.totalorder %s151, %s153
    %p157 = scmp.eq.s32.totalorder %s12, 0
    %p158 = por %p156, %p157
    %p159 = scmp.ne.s32.totalorder %s151, %s153
    %p160 = scmp.eq.s32.totalorder %s17, 1
    %p161 = por %p159, %p160
    %p162 = scmp.ne.s32.totalorder %s153, %s154
    %p163 = scmp.eq.s32.totalorder %s17, 0
    %p164 = por %p162, %p163
    %p165 = scmp.ne.s32.totalorder %s153, %s154
    %p166 = scmp.eq.s32.totalorder %s18, 1
    %p167 = por %p165, %p166
    %p169 = scmp.ne.s32.totalorder %s154, %s168
    %p170 = scmp.eq.s32.totalorder %s18, 0
    %p171 = por %p169, %p170
    %s173 = sadd.s32 %s172, 1
    %p176 = scmp.eq.s32.totalorder %s12, 1
    %p177 = scmp.ne.s32.totalorder %s172, %s174
    %p178 = scmp.eq.s32.totalorder %s12, 0
    %p179 = por %p177, %p178
    %p180 = scmp.ne.s32.totalorder %s172, %s174
    %p181 = scmp.eq.s32.totalorder %s17, 1
    %p182 = por %p180, %p181
    %p183 = scmp.ne.s32.totalorder %s174, %s175
    %p184 = scmp.eq.s32.totalorder %s17, 0
    %p185 = por %p183, %p184
    %p186 = scmp.ne.s32.totalorder %s174, %s175
    %p187 = scmp.eq.s32.totalorder %s18, 1
    %p188 = por %p186, %p187
    %p190 = scmp.ne.s32.totalorder %s175, %s189
    %p191 = scmp.eq.s32.totalorder %s18, 0
    %p192 = por %p190, %p191
    %s193 = ssub.s32 %s19, %s38
    %s194 = ssub.s32 %s20, %s34
    %s195 = sor.u32 %s193, %s194
    %p196 = scmp.eq.s32.totalorder %s195, 0
    %s198 = sadd.s32 %s197, 1
    %s199 = scalar_select %p196, %s197, %s198
    %p202 = pneg %p196
    %p203 = scmp.eq.s32.totalorder %s12, 1
    %p204 = por %p202, %p203
    %p205 = scmp.ne.s32.totalorder %s197, %s200
    %p206 = scmp.eq.s32.totalorder %s12, 0
    %p207 = por %p205, %p206
    %p208 = scmp.ne.s32.totalorder %s197, %s200
    %p209 = scmp.eq.s32.totalorder %s17, 1
    %p210 = por %p208, %p209
    %p211 = scmp.ne.s32.totalorder %s200, %s201
    %p212 = scmp.eq.s32.totalorder %s17, 0
    %p213 = por %p211, %p212
    %p214 = scmp.ne.s32.totalorder %s200, %s201
    %p215 = scmp.eq.s32.totalorder %s18, 1
    %p216 = por %p214, %p215
    %p218 = scmp.ne.s32.totalorder %s201, %s217
    %p219 = scmp.eq.s32.totalorder %s18, 0
    %p220 = por %p218, %p219
    %p221 = scmp.le.s32.totalorder 1, %s12
    %p222 = scmp.lt.s32.totalorder %s12, 3
    %p223 = pnand %p221, %p222
    %p224 = pneg %p223
    // Predicated region
    $region9: #{nonlocal_block.1} parent=5 // pred_check
      _
    $region10: #{nonlocal_block.1} parent=5 // pred_check_branch
      %226 = sbr.rel (%p223) target = $region12
    $region11: #{nonlocal_block.1} parent=5 // pred_region
      %s227 = ssub.s32 %s12, 1
      // Predicated region
      $region13: #{nonlocal_block.1} parent=11 // pred_check
        %p228 = pneg %p164
      $region14: #{nonlocal_block.1} parent=11 // pred_check_branch
        %230 = sbr.rel (%p228) target = $region16
      $region15: #{nonlocal_block.1} parent=11 // pred_region
        _
      $region16: #{nonlocal_block.1} parent=11 // pred_fallthru
        _
      // Predicated region
      $region17: #{nonlocal_block.1} parent=11 // pred_check
        %p231 = pneg %p185
      $region18: #{nonlocal_block.1} parent=11 // pred_check_branch
        %233 = sbr.rel (%p231) target = $region20
      $region19: #{nonlocal_block.1} parent=11 // pred_region
        _
      $region20: #{nonlocal_block.1} parent=11 // pred_fallthru
        _
    $region12: #{nonlocal_block.1} parent=5 // pred_fallthru
      _
    %p234 = scmp.lt.s32.totalorder %s12, 2
    // Predicated region
    $region21: #{nonlocal_block.1} parent=5 // pred_check
      %p235 = pneg %p234
    $region22: #{nonlocal_block.1} parent=5 // pred_check_branch
      %237 = sbr.rel (%p235) target = $region24
    $region23: #{nonlocal_block.1} parent=5 // pred_region
      // Predicated region
      $region25: #{nonlocal_block.1} parent=23 // pred_check
        %p238 = pneg %p53
      $region26: #{nonlocal_block.1} parent=23 // pred_check_branch
        %240 = sbr.rel (%p238) target = $region28
      $region27: #{nonlocal_block.1} parent=23 // pred_region
        %s241 = smul.u32 2, %s20
        %p242 = scmp.lt.s32.totalorder %s19, 1
        %s243 = scalar_select %p242, %s19, 1
        %p244 = scmp.lt.s32.totalorder %s241, 1
        %s245 = scalar_select %p244, %s241, 1
        %s246 = smul.addr %s243, 2
        %s247 = sadd.s32 %s245, %s246
        %s248 = smul.addr %s247, 4
        %s249 = scalar_lea.vmem %s0, %s248
        %s250 = smul.u32 2, %s20
      $region28: #{nonlocal_block.1} parent=23 // pred_fallthru
        _
      // Predicated region
      $region29: #{nonlocal_block.1} parent=23 // pred_check
        %p251 = pneg %p81
      $region30: #{nonlocal_block.1} parent=23 // pred_check_branch
        %253 = sbr.rel (%p251) target = $region32
      $region31: #{nonlocal_block.1} parent=23 // pred_region
        %s254 = smul.u32 2, %s20
        %p255 = scmp.lt.s32.totalorder %s19, 1
        %s256 = scalar_select %p255, %s19, 1
        %p257 = scmp.lt.s32.totalorder %s254, 1
        %s258 = scalar_select %p257, %s254, 1
        %s259 = smul.addr %s256, 32
        %s260 = sadd.s32 %s258, %s259
        %s261 = smul.addr %s260, 4
        %s262 = scalar_lea.vmem %s1, %s261
        %s263 = smul.u32 2, %s20
      $region32: #{nonlocal_block.1} parent=23 // pred_fallthru
        _
      // Predicated region
      $region33: #{nonlocal_block.1} parent=23 // pred_check
        %p264 = pneg %p109
      $region34: #{nonlocal_block.1} parent=23 // pred_check_branch
        %266 = sbr.rel (%p264) target = $region36
      $region35: #{nonlocal_block.1} parent=23 // pred_region
        %s267 = smul.u32 32, %s21
        %p268 = scmp.lt.s32.totalorder %s19, 1
        %s269 = scalar_select %p268, %s19, 1
        %p270 = scmp.lt.s32.totalorder %s267, 31
        %s271 = scalar_select %p270, %s267, 31
        %s272 = smul.addr %s269, 32
        %s273 = sadd.s32 %s271, %s272
        %s274 = smul.addr %s273, 4
        %s275 = scalar_lea.vmem %s2, %s274
        %s276 = smul.u32 32, %s21
      $region36: #{nonlocal_block.1} parent=23 // pred_fallthru
        _
      // Predicated region
      $region37: #{nonlocal_block.1} parent=23 // pred_check
        %p277 = pneg %p137
      $region38: #{nonlocal_block.1} parent=23 // pred_check_branch
        %279 = sbr.rel (%p277) target = $region40
      $region39: #{nonlocal_block.1} parent=23 // pred_region
        %s280 = smul.u32 2, %s21
        %p281 = scmp.lt.s32.totalorder %s19, 1
        %s282 = scalar_select %p281, %s19, 1
        %p283 = scmp.lt.s32.totalorder %s280, 1
        %s284 = scalar_select %p283, %s280, 1
        %s285 = smul.addr %s282, 32
        %s286 = sadd.s32 %s284, %s285
        %s287 = smul.addr %s286, 4
        %s288 = scalar_lea.vmem %s3, %s287
        %s289 = smul.u32 2, %s21
      $region40: #{nonlocal_block.1} parent=23 // pred_fallthru
        _
    $region24: #{nonlocal_block.1} parent=5 // pred_fallthru
      _
    %p290 = scmp.le.s32.totalorder 1, %s12
    %p291 = scmp.lt.s32.totalorder %s12, 3
    %p292 = pnand %p290, %p291
    %p293 = pneg %p292
    // Predicated region
    $region41: #{nonlocal_block.1} parent=5 // pred_check
      _
    $region42: #{nonlocal_block.1} parent=5 // pred_check_branch
      %295 = sbr.rel (%p292) target = $region44
    $region43: #{nonlocal_block.1} parent=5 // pred_region
      %s296 = ssub.s32 %s12, 1
      %s297 = smul.u32 2, %s23
      %p298 = scmp.lt.s32.totalorder %s22, 1
      %s299 = scalar_select %p298, %s22, 1
      %p300 = scmp.lt.s32.totalorder %s297, 1
      %s301 = scalar_select %p300, %s297, 1
      %s302 = smul.addr %s299, 2
      %s303 = sadd.s32 %s301, %s302
      %s304 = smul.addr %s303, 4
      %s305 = scalar_lea.vmem %s0, %s304
      %p306 = pneg %p59
      %p307 = pneg %p56
      %s308 = smul.u32 2, %s23
      %p309 = scmp.lt.s32.totalorder %s22, 1
      %s310 = scalar_select %p309, %s22, 1
      %p311 = scmp.lt.s32.totalorder %s308, 1
      %s312 = scalar_select %p311, %s308, 1
      %s313 = smul.addr %s310, 32
      %s314 = sadd.s32 %s312, %s313
      %s315 = smul.addr %s314, 4
      %s316 = scalar_lea.vmem %s1, %s315
      %p317 = pneg %p87
      %p318 = pneg %p84
      %s319 = smul.u32 32, %s24
      %p320 = scmp.lt.s32.totalorder %s22, 1
      %s321 = scalar_select %p320, %s22, 1
      %p322 = scmp.lt.s32.totalorder %s319, 31
      %s323 = scalar_select %p322, %s319, 31
      %s324 = smul.addr %s321, 32
      %s325 = sadd.s32 %s323, %s324
      %s326 = smul.addr %s325, 4
      %s327 = scalar_lea.vmem %s2, %s326
      %p328 = pneg %p115
      %p329 = pneg %p112
      %s330 = smul.u32 2, %s24
      %p331 = scmp.lt.s32.totalorder %s22, 1
      %s332 = scalar_select %p331, %s22, 1
      %p333 = scmp.lt.s32.totalorder %s330, 1
      %s334 = scalar_select %p333, %s330, 1
      %s335 = smul.addr %s332, 32
      %s336 = sadd.s32 %s334, %s335
      %s337 = smul.addr %s336, 4
      %s338 = scalar_lea.vmem %s3, %s337
      %p339 = pneg %p143
      %p340 = pneg %p140
      %p341 = pneg %p164
      %p342 = pneg %p161
      %p343 = pneg %p185
      %p344 = pneg %p182
      %p345 = pneg %p213
      %p346 = pneg %p210
      %s347 = smul.u32 2, %s23
      %p348 = scmp.lt.s32.totalorder %s22, 1
      %s349 = scalar_select %p348, %s22, 1
      %p350 = scmp.lt.s32.totalorder %s347, 1
      %s351 = scalar_select %p350, %s347, 1
      %s352 = smul.addr %s349, 2
      %s353 = sadd.s32 %s351, %s352
      %s354 = smul.addr %s353, 4
      %s355 = scalar_lea.vmem %s6, %s354
      %s356 = smul.u32 2, %s23
      %p357 = scmp.lt.s32.totalorder %s22, 1
      %s358 = scalar_select %p357, %s22, 1
      %p359 = scmp.lt.s32.totalorder %s356, 1
      %s360 = scalar_select %p359, %s356, 1
      %s361 = smul.addr %s358, 2
      %s362 = sadd.s32 %s360, %s361
      %s363 = smul.addr %s362, 4
      %s364 = scalar_lea.vmem %s0, %s363
      %s365 = smul.u32 2, %s23
      %s366 = smul.u32 2, %s23
      %p367 = scmp.lt.s32.totalorder %s22, 1
      %s368 = scalar_select %p367, %s22, 1
      %p369 = scmp.lt.s32.totalorder %s366, 1
      %s370 = scalar_select %p369, %s366, 1
      %s371 = smul.addr %s368, 32
      %s372 = sadd.s32 %s370, %s371
      %s373 = smul.addr %s372, 4
      %s374 = scalar_lea.vmem %s1, %s373
      %s375 = smul.u32 2, %s23
      %s376 = smul.u32 32, %s24
      %p377 = scmp.lt.s32.totalorder %s22, 1
      %s378 = scalar_select %p377, %s22, 1
      %p379 = scmp.lt.s32.totalorder %s376, 31
      %s380 = scalar_select %p379, %s376, 31
      %s381 = smul.addr %s378, 32
      %s382 = sadd.s32 %s380, %s381
      %s383 = smul.addr %s382, 4
      %s384 = scalar_lea.vmem %s2, %s383
      %s385 = smul.u32 32, %s24
      %s386 = smul.u32 2, %s24
      %p387 = scmp.lt.s32.totalorder %s22, 1
      %s388 = scalar_select %p387, %s22, 1
      %p389 = scmp.lt.s32.totalorder %s386, 1
      %s390 = scalar_select %p389, %s386, 1
      %s391 = smul.addr %s388, 32
      %s392 = sadd.s32 %s390, %s391
      %s393 = smul.addr %s392, 4
      %s394 = scalar_lea.vmem %s3, %s393
      %s395 = smul.u32 2, %s24
      %s396 = smul.u32 2, %s23
      %p397 = scmp.lt.s32.totalorder %s22, 1
      %s398 = scalar_select %p397, %s22, 1
      %p399 = scmp.lt.s32.totalorder %s396, 1
      %s400 = scalar_select %p399, %s396, 1
      %s401 = smul.addr %s398, 2
      %s402 = sadd.s32 %s400, %s401
      %s403 = smul.addr %s402, 4
      %s404 = scalar_lea.vmem %s6, %s403
      %s405 = smul.u32 2, %s23
      %p407 = scmp.eq.s32.totalorder %s24, 0
      // Predicated region
      $region45: #{nonlocal_block.1} parent=43 // pred_check
        %p408 = pneg %p407
      $region46: #{nonlocal_block.1} parent=43 // pred_check_branch
        %410 = sbr.rel (%p408) target = $region48
      $region47: #{nonlocal_block.1} parent=43 // pred_region
        %v411 = vlaneseq
        %vm412 = vcmp.ge.s32.totalorder %v411, 0
        %vm413 = vcmp.lt.s32.totalorder %v411, 256
        %vm414 = vmand %vm412, %vm413
        %415 = vst.msk [vmem:[#allocation2] sm:$0x3] %vm414, -inf
        %416 = vst.msk [vmem:[#allocation3] sm:$0x3] %vm414, 0.0
        %417 = vst [vmem:[#allocation4] sm:$0xff] 0.0
        %418 = vst [vmem:[#allocation4 + $0x8] sm:$0xff] 0.0
        %419 = vst [vmem:[#allocation4 + $0x10] sm:$0xff] 0.0
        %420 = vst [vmem:[#allocation4 + $0x18] sm:$0xff] 0.0
        %421 = vst [vmem:[#allocation4 + $0x20] sm:$0xff] 0.0
        %422 = vst [vmem:[#allocation4 + $0x28] sm:$0xff] 0.0
        %423 = vst [vmem:[#allocation4 + $0x30] sm:$0xff] 0.0
        %424 = vst [vmem:[#allocation4 + $0x38] sm:$0xff] 0.0
        %425 = vst [vmem:[#allocation4 + $0x40] sm:$0xff] 0.0
        %426 = vst [vmem:[#allocation4 + $0x48] sm:$0xff] 0.0
        %427 = vst [vmem:[#allocation4 + $0x50] sm:$0xff] 0.0
        %428 = vst [vmem:[#allocation4 + $0x58] sm:$0xff] 0.0
        %429 = vst [vmem:[#allocation4 + $0x60] sm:$0xff] 0.0
        %430 = vst [vmem:[#allocation4 + $0x68] sm:$0xff] 0.0
        %431 = vst [vmem:[#allocation4 + $0x70] sm:$0xff] 0.0
        %432 = vst [vmem:[#allocation4 + $0x78] sm:$0xff] 0.0
        %433 = vst [vmem:[#allocation4 + $0x80] sm:$0xff] 0.0
        %434 = vst [vmem:[#allocation4 + $0x88] sm:$0xff] 0.0
        %435 = vst [vmem:[#allocation4 + $0x90] sm:$0xff] 0.0
        %436 = vst [vmem:[#allocation4 + $0x98] sm:$0xff] 0.0
        %437 = vst [vmem:[#allocation4 + $0xa0] sm:$0xff] 0.0
        %438 = vst [vmem:[#allocation4 + $0xa8] sm:$0xff] 0.0
        %439 = vst [vmem:[#allocation4 + $0xb0] sm:$0xff] 0.0
        %440 = vst [vmem:[#allocation4 + $0xb8] sm:$0xff] 0.0
        %441 = vst [vmem:[#allocation4 + $0xc0] sm:$0xff] 0.0
        %442 = vst [vmem:[#allocation4 + $0xc8] sm:$0xff] 0.0
        %443 = vst [vmem:[#allocation4 + $0xd0] sm:$0xff] 0.0
        %444 = vst [vmem:[#allocation4 + $0xd8] sm:$0xff] 0.0
        %445 = vst [vmem:[#allocation4 + $0xe0] sm:$0xff] 0.0
        %446 = vst [vmem:[#allocation4 + $0xe8] sm:$0xff] 0.0
        %447 = vst [vmem:[#allocation4 + $0xf0] sm:$0xff] 0.0
        %448 = vst [vmem:[#allocation4 + $0xf8] sm:$0xff] 0.0
      $region48: #{nonlocal_block.1} parent=43 // pred_fallthru
        _
      %v449 = vld [vmem:[%s374] sm:$0xff]
      %v450 = vld [vmem:[%s374 + $0x8] sm:$0xff]
      %v451 = vld [vmem:[%s374 + $0x10] sm:$0xff]
      %v452 = vld [vmem:[%s374 + $0x18] sm:$0xff]
      %v453 = vld [vmem:[%s374 + $0x20] sm:$0xff]
      %v454 = vld [vmem:[%s374 + $0x28] sm:$0xff]
      %v455 = vld [vmem:[%s374 + $0x30] sm:$0xff]
      %v456 = vld [vmem:[%s374 + $0x38] sm:$0xff]
      %v457 = vld [vmem:[%s374 + $0x40] sm:$0xff]
      %v458 = vld [vmem:[%s374 + $0x48] sm:$0xff]
      %v459 = vld [vmem:[%s374 + $0x50] sm:$0xff]
      %v460 = vld [vmem:[%s374 + $0x58] sm:$0xff]
      %v461 = vld [vmem:[%s374 + $0x60] sm:$0xff]
      %v462 = vld [vmem:[%s374 + $0x68] sm:$0xff]
      %v463 = vld [vmem:[%s374 + $0x70] sm:$0xff]
      %v464 = vld [vmem:[%s374 + $0x78] sm:$0xff]
      %v465 = vld [vmem:[%s384] sm:$0xf]
      %v466 = vld [vmem:[%s384 + $0x4] sm:$0xf]
      %v467 = vld [vmem:[%s384 + $0x8] sm:$0xf]
      %v468 = vld [vmem:[%s384 + $0xc] sm:$0xf]
      %v469 = vld [vmem:[%s384 + $0x10] sm:$0xf]
      %v470 = vld [vmem:[%s384 + $0x14] sm:$0xf]
      %v471 = vld [vmem:[%s384 + $0x18] sm:$0xf]
      %v472 = vld [vmem:[%s384 + $0x1c] sm:$0xf]
      %v473 = vld [vmem:[%s384 + $0x20] sm:$0xf]
      %v474 = vld [vmem:[%s384 + $0x24] sm:$0xf]
      %v475 = vld [vmem:[%s384 + $0x28] sm:$0xf]
      %v476 = vld [vmem:[%s384 + $0x2c] sm:$0xf]
      %v477 = vld [vmem:[%s384 + $0x30] sm:$0xf]
      %v478 = vld [vmem:[%s384 + $0x34] sm:$0xf]
      %v479 = vld [vmem:[%s384 + $0x38] sm:$0xf]
      %v480 = vld [vmem:[%s384 + $0x3c] sm:$0xf]
      %v481 = vld [vmem:[%s384 + $0x40] sm:$0xf]
      %v482 = vld [vmem:[%s384 + $0x44] sm:$0xf]
      %v483 = vld [vmem:[%s384 + $0x48] sm:$0xf]
      %v484 = vld [vmem:[%s384 + $0x4c] sm:$0xf]
      %v485 = vld [vmem:[%s384 + $0x50] sm:$0xf]
      %v486 = vld [vmem:[%s384 + $0x54] sm:$0xf]
      %v487 = vld [vmem:[%s384 + $0x58] sm:$0xf]
      %v488 = vld [vmem:[%s384 + $0x5c] sm:$0xf]
      %v489 = vld [vmem:[%s384 + $0x60] sm:$0xf]
      %v490 = vld [vmem:[%s384 + $0x64] sm:$0xf]
      %v491 = vld [vmem:[%s384 + $0x68] sm:$0xf]
      %v492 = vld [vmem:[%s384 + $0x6c] sm:$0xf]
      %v493 = vld [vmem:[%s384 + $0x70] sm:$0xf]
      %v494 = vld [vmem:[%s384 + $0x74] sm:$0xf]
      %v495 = vld [vmem:[%s384 + $0x78] sm:$0xf]
      %v496 = vld [vmem:[%s384 + $0x7c] sm:$0xf]
      %v497 = vld [vmem:[%s394] sm:$0xff]
      %v498 = vld [vmem:[%s394 + $0x8] sm:$0xff]
      %v499 = vld [vmem:[%s394 + $0x10] sm:$0xff]
      %v500 = vld [vmem:[%s394 + $0x18] sm:$0xff]
      %v501 = vld [vmem:[%s394 + $0x20] sm:$0xff]
      %v502 = vld [vmem:[%s394 + $0x28] sm:$0xff]
      %v503 = vld [vmem:[%s394 + $0x30] sm:$0xff]
      %v504 = vld [vmem:[%s394 + $0x38] sm:$0xff]
      %v505 = vld [vmem:[%s394 + $0x40] sm:$0xff]
      %v506 = vld [vmem:[%s394 + $0x48] sm:$0xff]
      %v507 = vld [vmem:[%s394 + $0x50] sm:$0xff]
      %v508 = vld [vmem:[%s394 + $0x58] sm:$0xff]
      %v509 = vld [vmem:[%s394 + $0x60] sm:$0xff]
      %v510 = vld [vmem:[%s394 + $0x68] sm:$0xff]
      %v511 = vld [vmem:[%s394 + $0x70] sm:$0xff]
      %v512 = vld [vmem:[%s394 + $0x78] sm:$0xff]
      %v545 = vunpack.c.l.b16 %v465
      %v546 = vunpack.c.l.b16 %v466
      %v547 = vunpack.c.l.b16 %v467
      %v548 = vunpack.c.l.b16 %v468
      %v549 = vunpack.c.l.b16 %v469
      %v550 = vunpack.c.l.b16 %v470
      %v551 = vunpack.c.l.b16 %v471
      %v552 = vunpack.c.l.b16 %v472
      %v553 = vunpack.c.l.b16 %v473
      %v554 = vunpack.c.l.b16 %v474
      %v555 = vunpack.c.l.b16 %v475
      %v556 = vunpack.c.l.b16 %v476
      %v557 = vunpack.c.l.b16 %v477
      %v558 = vunpack.c.l.b16 %v478
      %v559 = vunpack.c.l.b16 %v479
      %v560 = vunpack.c.l.b16 %v480
      %v561 = vunpack.c.l.b16 %v481
      %v562 = vunpack.c.l.b16 %v482
      %v563 = vunpack.c.l.b16 %v483
      %v564 = vunpack.c.l.b16 %v484
      %v565 = vunpack.c.l.b16 %v485
      %v566 = vunpack.c.l.b16 %v486
      %v567 = vunpack.c.l.b16 %v487
      %v568 = vunpack.c.l.b16 %v488
      %v569 = vunpack.c.l.b16 %v489
      %v570 = vunpack.c.l.b16 %v490
      %v571 = vunpack.c.l.b16 %v491
      %v572 = vunpack.c.l.b16 %v492
      %v573 = vunpack.c.l.b16 %v493
      %v574 = vunpack.c.l.b16 %v494
      %v575 = vunpack.c.l.b16 %v495
      %v576 = vunpack.c.l.b16 %v496
      %v577 = vpack.c.b16 %v546, %v545
      %v578 = vpack.c.b16 %v548, %v547
      %v579 = vpack.c.b16 %v550, %v549
      %v580 = vpack.c.b16 %v552, %v551
      %v581 = vpack.c.b16 %v554, %v553
      %v582 = vpack.c.b16 %v556, %v555
      %v583 = vpack.c.b16 %v558, %v557
      %v584 = vpack.c.b16 %v560, %v559
      %v585 = vpack.c.b16 %v562, %v561
      %v586 = vpack.c.b16 %v564, %v563
      %v587 = vpack.c.b16 %v566, %v565
      %v588 = vpack.c.b16 %v568, %v567
      %v589 = vpack.c.b16 %v570, %v569
      %v590 = vpack.c.b16 %v572, %v571
      %v591 = vpack.c.b16 %v574, %v573
      %v592 = vpack.c.b16 %v576, %v575
      %v625 = vunpack.c.l.b16 %v449
      %v626 = vunpack.c.h.b16 %v449
      %v627 = vunpack.c.l.b16 %v450
      %v628 = vunpack.c.h.b16 %v450
      %v629 = vunpack.c.l.b16 %v451
      %v630 = vunpack.c.h.b16 %v451
      %v631 = vunpack.c.l.b16 %v452
      %v632 = vunpack.c.h.b16 %v452
      %v633 = vunpack.c.l.b16 %v453
      %v634 = vunpack.c.h.b16 %v453
      %v635 = vunpack.c.l.b16 %v454
      %v636 = vunpack.c.h.b16 %v454
      %v637 = vunpack.c.l.b16 %v455
      %v638 = vunpack.c.h.b16 %v455
      %v639 = vunpack.c.l.b16 %v456
      %v640 = vunpack.c.h.b16 %v456
      %v641 = vunpack.c.l.b16 %v457
      %v642 = vunpack.c.h.b16 %v457
      %v643 = vunpack.c.l.b16 %v458
      %v644 = vunpack.c.h.b16 %v458
      %v645 = vunpack.c.l.b16 %v459
      %v646 = vunpack.c.h.b16 %v459
      %v647 = vunpack.c.l.b16 %v460
      %v648 = vunpack.c.h.b16 %v460
      %v649 = vunpack.c.l.b16 %v461
      %v650 = vunpack.c.h.b16 %v461
      %v651 = vunpack.c.l.b16 %v462
      %v652 = vunpack.c.h.b16 %v462
      %v653 = vunpack.c.l.b16 %v463
      %v654 = vunpack.c.h.b16 %v463
      %v655 = vunpack.c.l.b16 %v464
      %v656 = vunpack.c.h.b16 %v464
      %v657 = vpack.c.b16 %v627, %v625
      %v658 = vpack.c.b16 %v628, %v626
      %v659 = vpack.c.b16 %v631, %v629
      %v660 = vpack.c.b16 %v632, %v630
      %v661 = vpack.c.b16 %v635, %v633
      %v662 = vpack.c.b16 %v636, %v634
      %v663 = vpack.c.b16 %v639, %v637
      %v664 = vpack.c.b16 %v640, %v638
      %v665 = vpack.c.b16 %v643, %v641
      %v666 = vpack.c.b16 %v644, %v642
      %v667 = vpack.c.b16 %v647, %v645
      %v668 = vpack.c.b16 %v648, %v646
      %v669 = vpack.c.b16 %v651, %v649
      %v670 = vpack.c.b16 %v652, %v650
      %v671 = vpack.c.b16 %v655, %v653
      %v672 = vpack.c.b16 %v656, %v654
      %689 = vmatprep.subr.bf16.mxu0 %v658
      %690 = vmatpush1.bf16.msra.mxu0 %v657
      %691 = vmatprep.subr.bf16.mxu0 %v660
      %692 = vmatpush1.bf16.msra.mxu0 %v659
      %693 = vmatprep.subr.bf16.mxu0 %v662
      %694 = vmatpush1.bf16.msra.mxu0 %v661
      %695 = vmatprep.subr.bf16.mxu0 %v664
      %696 = vmatpush1.bf16.msra.mxu0 %v663
      %697 = vmatprep.subr.bf16.mxu0 %v666
      %698 = vmatpush1.bf16.msra.mxu0 %v665
      %699 = vmatprep.subr.bf16.mxu0 %v668
      %700 = vmatpush1.bf16.msra.mxu0 %v667
      %701 = vmatprep.subr.bf16.mxu0 %v670
      %702 = vmatpush1.bf16.msra.mxu0 %v669
      %703 = vmatprep.subr.bf16.mxu0 %v672
      %704 = vmatpush1.bf16.msra.mxu0 %v671
      %705 = vmatprep.subr.bf16.mxu0 0
      %706 = vmatpush1.bf16.msra.mxu0 0
      %707 = vmatprep.subr.bf16.mxu0 0
      %708 = vmatpush1.bf16.msra.mxu0 0
      %709 = vmatprep.subr.bf16.mxu0 0
      %710 = vmatpush1.bf16.msra.mxu0 0
      %711 = vmatprep.subr.bf16.mxu0 0
      %712 = vmatpush1.bf16.msra.mxu0 0
      %713 = vmatprep.subr.bf16.mxu0 0
      %714 = vmatpush1.bf16.msra.mxu0 0
      %715 = vmatprep.subr.bf16.mxu0 0
      %716 = vmatpush1.bf16.msra.mxu0 0
      %717 = vmatprep.subr.bf16.mxu0 0
      %718 = vmatpush1.bf16.msra.mxu0 0
      %719 = vmatprep.subr.bf16.mxu0 0
      %720 = vmatpush1.bf16.msra.mxu0 0
      %721 = vmatprep.mubr.bf16.mxu0 0
      %722 = vmatmul.mubr.bf16.gmra.mrb[0].mxu0 %v577
      %v723 = vpop.f32.mrb[0].mxu0
      %v724 = vadd.f32 0.0, %v723
      %v725 = vpop.f32.mrb[0].mxu0
      %v726 = vadd.f32 0.0, %v725
      %v727 = vpop.f32.mrb[0].mxu0
      %v728 = vadd.f32 0.0, %v727
      %v729 = vpop.f32.mrb[0].mxu0
      %v730 = vadd.f32 0.0, %v729
      %731 = vmatprep.mubr.bf16.mxu0 0
      %732 = vmatmul.mubr.bf16.gmra.mrb[0].mxu0 %v578
      %v733 = vpop.f32.mrb[0].mxu0
      %v734 = vadd.f32 0.0, %v733
      %v735 = vpop.f32.mrb[0].mxu0
      %v736 = vadd.f32 0.0, %v735
      %v737 = vpop.f32.mrb[0].mxu0
      %v738 = vadd.f32 0.0, %v737
      %v739 = vpop.f32.mrb[0].mxu0
      %v740 = vadd.f32 0.0, %v739
      %741 = vmatprep.mubr.bf16.mxu0 0
      %742 = vmatmul.mubr.bf16.gmra.mrb[0].mxu0 %v579
      %v743 = vpop.f32.mrb[0].mxu0
      %v744 = vadd.f32 0.0, %v743
      %v745 = vpop.f32.mrb[0].mxu0
      %v746 = vadd.f32 0.0, %v745
      %v747 = vpop.f32.mrb[0].mxu0
      %v748 = vadd.f32 0.0, %v747
      %v749 = vpop.f32.mrb[0].mxu0
      %v750 = vadd.f32 0.0, %v749
      %751 = vmatprep.mubr.bf16.mxu0 0
      %752 = vmatmul.mubr.bf16.gmra.mrb[0].mxu0 %v580
      %v753 = vpop.f32.mrb[0].mxu0
      %v754 = vadd.f32 0.0, %v753
      %v755 = vpop.f32.mrb[0].mxu0
      %v756 = vadd.f32 0.0, %v755
      %v757 = vpop.f32.mrb[0].mxu0
      %v758 = vadd.f32 0.0, %v757
      %v759 = vpop.f32.mrb[0].mxu0
      %v760 = vadd.f32 0.0, %v759
      %761 = vmatprep.mubr.bf16.mxu0 0
      %762 = vmatmul.mubr.bf16.gmra.mrb[0].mxu0 %v581
      %v763 = vpop.f32.mrb[0].mxu0
      %v764 = vadd.f32 0.0, %v763
      %v765 = vpop.f32.mrb[0].mxu0
      %v766 = vadd.f32 0.0, %v765
      %v767 = vpop.f32.mrb[0].mxu0
      %v768 = vadd.f32 0.0, %v767
      %v769 = vpop.f32.mrb[0].mxu0
      %v770 = vadd.f32 0.0, %v769
      %771 = vmatprep.mubr.bf16.mxu0 0
      %772 = vmatmul.mubr.bf16.gmra.mrb[0].mxu0 %v582
      %v773 = vpop.f32.mrb[0].mxu0
      %v774 = vadd.f32 0.0, %v773
      %v775 = vpop.f32.mrb[0].mxu0
      %v776 = vadd.f32 0.0, %v775
      %v777 = vpop.f32.mrb[0].mxu0
      %v778 = vadd.f32 0.0, %v777
      %v779 = vpop.f32.mrb[0].mxu0
      %v780 = vadd.f32 0.0, %v779
      %781 = vmatprep.mubr.bf16.mxu0 0
      %782 = vmatmul.mubr.bf16.gmra.mrb[0].mxu0 %v583
      %v783 = vpop.f32.mrb[0].mxu0
      %v784 = vadd.f32 0.0, %v783
      %v785 = vpop.f32.mrb[0].mxu0
      %v786 = vadd.f32 0.0, %v785
      %v787 = vpop.f32.mrb[0].mxu0
      %v788 = vadd.f32 0.0, %v787
      %v789 = vpop.f32.mrb[0].mxu0
      %v790 = vadd.f32 0.0, %v789
      %791 = vmatprep.mubr.bf16.mxu0 0
      %792 = vmatmul.mubr.bf16.gmra.mrb[0].mxu0 %v584
      %v793 = vpop.f32.mrb[0].mxu0
      %v794 = vadd.f32 0.0, %v793
      %v795 = vpop.f32.mrb[0].mxu0
      %v796 = vadd.f32 0.0, %v795
      %v797 = vpop.f32.mrb[0].mxu0
      %v798 = vadd.f32 0.0, %v797
      %v799 = vpop.f32.mrb[0].mxu0
      %v800 = vadd.f32 0.0, %v799
      %801 = vmatprep.mubr.bf16.mxu0 0
      %802 = vmatmul.mubr.bf16.gmra.mrb[0].mxu0 %v585
      %v803 = vpop.f32.mrb[0].mxu0
      %v804 = vadd.f32 0.0, %v803
      %v805 = vpop.f32.mrb[0].mxu0
      %v806 = vadd.f32 0.0, %v805
      %v807 = vpop.f32.mrb[0].mxu0
      %v808 = vadd.f32 0.0, %v807
      %v809 = vpop.f32.mrb[0].mxu0
      %v810 = vadd.f32 0.0, %v809
      %811 = vmatprep.mubr.bf16.mxu0 0
      %812 = vmatmul.mubr.bf16.gmra.mrb[0].mxu0 %v586
      %v813 = vpop.f32.mrb[0].mxu0
      %v814 = vadd.f32 0.0, %v813
      %v815 = vpop.f32.mrb[0].mxu0
      %v816 = vadd.f32 0.0, %v815
      %v817 = vpop.f32.mrb[0].mxu0
      %v818 = vadd.f32 0.0, %v817
      %v819 = vpop.f32.mrb[0].mxu0
      %v820 = vadd.f32 0.0, %v819
      %821 = vmatprep.mubr.bf16.mxu0 0
      %822 = vmatmul.mubr.bf16.gmra.mrb[0].mxu0 %v587
      %v823 = vpop.f32.mrb[0].mxu0
      %v824 = vadd.f32 0.0, %v823
      %v825 = vpop.f32.mrb[0].mxu0
      %v826 = vadd.f32 0.0, %v825
      %v827 = vpop.f32.mrb[0].mxu0
      %v828 = vadd.f32 0.0, %v827
      %v829 = vpop.f32.mrb[0].mxu0
      %v830 = vadd.f32 0.0, %v829
      %831 = vmatprep.mubr.bf16.mxu0 0
      %832 = vmatmul.mubr.bf16.gmra.mrb[0].mxu0 %v588
      %v833 = vpop.f32.mrb[0].mxu0
      %v834 = vadd.f32 0.0, %v833
      %v835 = vpop.f32.mrb[0].mxu0
      %v836 = vadd.f32 0.0, %v835
      %v837 = vpop.f32.mrb[0].mxu0
      %v838 = vadd.f32 0.0, %v837
      %v839 = vpop.f32.mrb[0].mxu0
      %v840 = vadd.f32 0.0, %v839
      %841 = vmatprep.mubr.bf16.mxu0 0
      %842 = vmatmul.mubr.bf16.gmra.mrb[0].mxu0 %v589
      %v843 = vpop.f32.mrb[0].mxu0
      %v844 = vadd.f32 0.0, %v843
      %v845 = vpop.f32.mrb[0].mxu0
      %v846 = vadd.f32 0.0, %v845
      %v847 = vpop.f32.mrb[0].mxu0
      %v848 = vadd.f32 0.0, %v847
      %v849 = vpop.f32.mrb[0].mxu0
      %v850 = vadd.f32 0.0, %v849
      %851 = vmatprep.mubr.bf16.mxu0 0
      %852 = vmatmul.mubr.bf16.gmra.mrb[0].mxu0 %v590
      %v853 = vpop.f32.mrb[0].mxu0
      %v854 = vadd.f32 0.0, %v853
      %v855 = vpop.f32.mrb[0].mxu0
      %v856 = vadd.f32 0.0, %v855
      %v857 = vpop.f32.mrb[0].mxu0
      %v858 = vadd.f32 0.0, %v857
      %v859 = vpop.f32.mrb[0].mxu0
      %v860 = vadd.f32 0.0, %v859
      %861 = vmatprep.mubr.bf16.mxu0 0
      %862 = vmatmul.mubr.bf16.gmra.mrb[0].mxu0 %v591
      %v863 = vpop.f32.mrb[0].mxu0
      %v864 = vadd.f32 0.0, %v863
      %v865 = vpop.f32.mrb[0].mxu0
      %v866 = vadd.f32 0.0, %v865
      %v867 = vpop.f32.mrb[0].mxu0
      %v868 = vadd.f32 0.0, %v867
      %v869 = vpop.f32.mrb[0].mxu0
      %v870 = vadd.f32 0.0, %v869
      %871 = vmatprep.mubr.bf16.mxu0 0
      %872 = vmatmul.mubr.bf16.gmra.mrb[0].mxu0 %v592
      %v873 = vpop.f32.mrb[0].mxu0
      %v874 = vadd.f32 0.0, %v873
      %v875 = vpop.f32.mrb[0].mxu0
      %v876 = vadd.f32 0.0, %v875
      %v877 = vpop.f32.mrb[0].mxu0
      %v878 = vadd.f32 0.0, %v877
      %v879 = vpop.f32.mrb[0].mxu0
      %v880 = vadd.f32 0.0, %v879
      %881 = vdwg.mxu0
      %v882 = vld [vmem:[#allocation2] sm:$0x3]
      %v883 = vmax.f32 %v724, %v734
      %v884 = vmax.f32 %v728, %v738
      %v885 = vmax.f32 %v883, %v744
      %v886 = vmax.f32 %v884, %v748
      %v887 = vmax.f32 %v885, %v754
      %v888 = vmax.f32 %v886, %v758
      %v889 = vmax.f32 %v887, %v764
      %v890 = vmax.f32 %v888, %v768
      %v891 = vmax.f32 %v889, %v774
      %v892 = vmax.f32 %v890, %v778
      %v893 = vmax.f32 %v891, %v784
      %v894 = vmax.f32 %v892, %v788
      %v895 = vmax.f32 %v893, %v794
      %v896 = vmax.f32 %v894, %v798
      %v897 = vmax.f32 %v895, %v804
      %v898 = vmax.f32 %v896, %v808
      %v899 = vmax.f32 %v897, %v814
      %v900 = vmax.f32 %v898, %v818
      %v901 = vmax.f32 %v899, %v824
      %v902 = vmax.f32 %v900, %v828
      %v903 = vmax.f32 %v901, %v834
      %v904 = vmax.f32 %v902, %v838
      %v905 = vmax.f32 %v903, %v844
      %v906 = vmax.f32 %v904, %v848
      %v907 = vmax.f32 %v905, %v854
      %v908 = vmax.f32 %v906, %v858
      %v909 = vmax.f32 %v907, %v864
      %v910 = vmax.f32 %v908, %v868
      %v911 = vmax.f32 %v909, %v874
      %v912 = vmax.f32 %v910, %v878
      %v913 = vmax.f32 %v911, %v912
      %v914 = vrot.slane %v913, 4
      %v915 = vmax.f32 %v913, %v914
      %v916 = vrot.slane %v915, 2
      %v917 = vmax.f32 %v915, %v916
      %v918 = vrot.slane %v917, 1
      %v919 = vmax.f32 %v917, %v918
      %v920 = vmax.f32 %v726, %v736
      %v921 = vmax.f32 %v730, %v740
      %v922 = vmax.f32 %v920, %v746
      %v923 = vmax.f32 %v921, %v750
      %v924 = vmax.f32 %v922, %v756
      %v925 = vmax.f32 %v923, %v760
      %v926 = vmax.f32 %v924, %v766
      %v927 = vmax.f32 %v925, %v770
      %v928 = vmax.f32 %v926, %v776
      %v929 = vmax.f32 %v927, %v780
      %v930 = vmax.f32 %v928, %v786
      %v931 = vmax.f32 %v929, %v790
      %v932 = vmax.f32 %v930, %v796
      %v933 = vmax.f32 %v931, %v800
      %v934 = vmax.f32 %v932, %v806
      %v935 = vmax.f32 %v933, %v810
      %v936 = vmax.f32 %v934, %v816
      %v937 = vmax.f32 %v935, %v820
      %v938 = vmax.f32 %v936, %v826
      %v939 = vmax.f32 %v937, %v830
      %v940 = vmax.f32 %v938, %v836
      %v941 = vmax.f32 %v939, %v840
      %v942 = vmax.f32 %v940, %v846
      %v943 = vmax.f32 %v941, %v850
      %v944 = vmax.f32 %v942, %v856
      %v945 = vmax.f32 %v943, %v860
      %v946 = vmax.f32 %v944, %v866
      %v947 = vmax.f32 %v945, %v870
      %v948 = vmax.f32 %v946, %v876
      %v949 = vmax.f32 %v947, %v880
      %v950 = vmax.f32 %v948, %v949
      %v951 = vrot.slane %v950, 4
      %v952 = vmax.f32 %v950, %v951
      %v953 = vrot.slane %v952, 2
      %v954 = vmax.f32 %v952, %v953
      %v955 = vrot.slane %v954, 1
      %v956 = vmax.f32 %v954, %v955
      %v959 = vcombine.low %v919, %v956
      %v961 = vunpack.c.l.s4 1966171168
      %v962 = vunpack.c.0.s8 %v961
      %v963 = vlaneseq
      %v964 = vshrl.u32 %v963, 7
      %v965 = vsub.s32 %v962, %v964
      %v966 = vrot.slane %v959, %v965
      %v968 = vunpack.c.l.s4 1966171168
      %v969 = vunpack.c.0.s8 %v968
      %v970 = vlaneseq
      %v971 = vshrl.u32 %v970, 7
      %v972 = vsub.s32 %v969, %v971
      %v973 = vrot.slane %v966, %v972
      %v975 = vmax.f32 %v882, %v973
      %v976 = vsub.f32 %v882, %v975
      %v977 = vmul.f32 %v976, 1.442695
      %v978 = vpow.pop %v977
      %v980 = vlaneseq
      %v981 = vshrl.u32 %v980, 7
      %v982 = vsub.s32 0, %v981
      %v983 = vrot.slane %v975, %v982
      %v984 = vlaneseq
      %v985 = vshrl.u32 %v984, 7
      %v986 = vsub.s32 1, %v985
      %v987 = vrot.slane %v975, %v986
      %v990 = vsub.f32 %v724, %v983
      %v991 = vsub.f32 %v726, %v987
      %v992 = vsub.f32 %v728, %v983
      %v993 = vsub.f32 %v730, %v987
      %v994 = vsub.f32 %v734, %v983
      %v995 = vsub.f32 %v736, %v987
      %v996 = vsub.f32 %v738, %v983
      %v997 = vsub.f32 %v740, %v987
      %v998 = vsub.f32 %v744, %v983
      %v999 = vsub.f32 %v746, %v987
      %v1000 = vsub.f32 %v748, %v983
      %v1001 = vsub.f32 %v750, %v987
      %v1002 = vsub.f32 %v754, %v983
      %v1003 = vsub.f32 %v756, %v987
      %v1004 = vsub.f32 %v758, %v983
      %v1005 = vsub.f32 %v760, %v987
      %v1006 = vsub.f32 %v764, %v983
      %v1007 = vsub.f32 %v766, %v987
      %v1008 = vsub.f32 %v768, %v983
      %v1009 = vsub.f32 %v770, %v987
      %v1010 = vsub.f32 %v774, %v983
      %v1011 = vsub.f32 %v776, %v987
      %v1012 = vsub.f32 %v778, %v983
      %v1013 = vsub.f32 %v780, %v987
      %v1014 = vsub.f32 %v784, %v983
      %v1015 = vsub.f32 %v786, %v987
      %v1016 = vsub.f32 %v788, %v983
      %v1017 = vsub.f32 %v790, %v987
      %v1018 = vsub.f32 %v794, %v983
      %v1019 = vsub.f32 %v796, %v987
      %v1020 = vsub.f32 %v798, %v983
      %v1021 = vsub.f32 %v800, %v987
      %v1022 = vsub.f32 %v804, %v983
      %v1023 = vsub.f32 %v806, %v987
      %v1024 = vsub.f32 %v808, %v983
      %v1025 = vsub.f32 %v810, %v987
      %v1026 = vsub.f32 %v814, %v983
      %v1027 = vsub.f32 %v816, %v987
      %v1028 = vsub.f32 %v818, %v983
      %v1029 = vsub.f32 %v820, %v987
      %v1030 = vsub.f32 %v824, %v983
      %v1031 = vsub.f32 %v826, %v987
      %v1032 = vsub.f32 %v828, %v983
      %v1033 = vsub.f32 %v830, %v987
      %v1034 = vsub.f32 %v834, %v983
      %v1035 = vsub.f32 %v836, %v987
      %v1036 = vsub.f32 %v838, %v983
      %v1037 = vsub.f32 %v840, %v987
      %v1038 = vsub.f32 %v844, %v983
      %v1039 = vsub.f32 %v846, %v987
      %v1040 = vsub.f32 %v848, %v983
      %v1041 = vsub.f32 %v850, %v987
      %v1042 = vsub.f32 %v854, %v983
      %v1043 = vsub.f32 %v856, %v987
      %v1044 = vsub.f32 %v858, %v983
      %v1045 = vsub.f32 %v860, %v987
      %v1046 = vsub.f32 %v864, %v983
      %v1047 = vsub.f32 %v866, %v987
      %v1048 = vsub.f32 %v868, %v983
      %v1049 = vsub.f32 %v870, %v987
      %v1050 = vsub.f32 %v874, %v983
      %v1051 = vsub.f32 %v876, %v987
      %v1052 = vsub.f32 %v878, %v983
      %v1053 = vsub.f32 %v880, %v987
      %v1054 = vmul.f32 %v990, 1.442695
      %v1055 = vpow.pop %v1054
      %v1056 = vmul.f32 %v991, 1.442695
      %v1057 = vpow.pop %v1056
      %v1058 = vmul.f32 %v992, 1.442695
      %v1059 = vpow.pop %v1058
      %v1060 = vmul.f32 %v993, 1.442695
      %v1061 = vpow.pop %v1060
      %v1062 = vmul.f32 %v994, 1.442695
      %v1063 = vpow.pop %v1062
      %v1064 = vmul.f32 %v995, 1.442695
      %v1065 = vpow.pop %v1064
      %v1066 = vmul.f32 %v996, 1.442695
      %v1067 = vpow.pop %v1066
      %v1068 = vmul.f32 %v997, 1.442695
      %v1069 = vpow.pop %v1068
      %v1070 = vmul.f32 %v998, 1.442695
      %v1071 = vpow.pop %v1070
      %v1072 = vmul.f32 %v999, 1.442695
      %v1073 = vpow.pop %v1072
      %v1074 = vmul.f32 %v1000, 1.442695
      %v1075 = vpow.pop %v1074
      %v1076 = vmul.f32 %v1001, 1.442695
      %v1077 = vpow.pop %v1076
      %v1078 = vmul.f32 %v1002, 1.442695
      %v1079 = vpow.pop %v1078
      %v1080 = vmul.f32 %v1003, 1.442695
      %v1081 = vpow.pop %v1080
      %v1082 = vmul.f32 %v1004, 1.442695
      %v1083 = vpow.pop %v1082
      %v1084 = vmul.f32 %v1005, 1.442695
      %v1085 = vpow.pop %v1084
      %v1086 = vmul.f32 %v1006, 1.442695
      %v1087 = vpow.pop %v1086
      %v1088 = vmul.f32 %v1007, 1.442695
      %v1089 = vpow.pop %v1088
      %v1090 = vmul.f32 %v1008, 1.442695
      %v1091 = vpow.pop %v1090
      %v1092 = vmul.f32 %v1009, 1.442695
      %v1093 = vpow.pop %v1092
      %v1094 = vmul.f32 %v1010, 1.442695
      %v1095 = vpow.pop %v1094
      %v1096 = vmul.f32 %v1011, 1.442695
      %v1097 = vpow.pop %v1096
      %v1098 = vmul.f32 %v1012, 1.442695
      %v1099 = vpow.pop %v1098
      %v1100 = vmul.f32 %v1013, 1.442695
      %v1101 = vpow.pop %v1100
      %v1102 = vmul.f32 %v1014, 1.442695
      %v1103 = vpow.pop %v1102
      %v1104 = vmul.f32 %v1015, 1.442695
      %v1105 = vpow.pop %v1104
      %v1106 = vmul.f32 %v1016, 1.442695
      %v1107 = vpow.pop %v1106
      %v1108 = vmul.f32 %v1017, 1.442695
      %v1109 = vpow.pop %v1108
      %v1110 = vmul.f32 %v1018, 1.442695
      %v1111 = vpow.pop %v1110
      %v1112 = vmul.f32 %v1019, 1.442695
      %v1113 = vpow.pop %v1112
      %v1114 = vmul.f32 %v1020, 1.442695
      %v1115 = vpow.pop %v1114
      %v1116 = vmul.f32 %v1021, 1.442695
      %v1117 = vpow.pop %v1116
      %v1118 = vmul.f32 %v1022, 1.442695
      %v1119 = vpow.pop %v1118
      %v1120 = vmul.f32 %v1023, 1.442695
      %v1121 = vpow.pop %v1120
      %v1122 = vmul.f32 %v1024, 1.442695
      %v1123 = vpow.pop %v1122
      %v1124 = vmul.f32 %v1025, 1.442695
      %v1125 = vpow.pop %v1124
      %v1126 = vmul.f32 %v1026, 1.442695
      %v1127 = vpow.pop %v1126
      %v1128 = vmul.f32 %v1027, 1.442695
      %v1129 = vpow.pop %v1128
      %v1130 = vmul.f32 %v1028, 1.442695
      %v1131 = vpow.pop %v1130
      %v1132 = vmul.f32 %v1029, 1.442695
      %v1133 = vpow.pop %v1132
      %v1134 = vmul.f32 %v1030, 1.442695
      %v1135 = vpow.pop %v1134
      %v1136 = vmul.f32 %v1031, 1.442695
      %v1137 = vpow.pop %v1136
      %v1138 = vmul.f32 %v1032, 1.442695
      %v1139 = vpow.pop %v1138
      %v1140 = vmul.f32 %v1033, 1.442695
      %v1141 = vpow.pop %v1140
      %v1142 = vmul.f32 %v1034, 1.442695
      %v1143 = vpow.pop %v1142
      %v1144 = vmul.f32 %v1035, 1.442695
      %v1145 = vpow.pop %v1144
      %v1146 = vmul.f32 %v1036, 1.442695
      %v1147 = vpow.pop %v1146
      %v1148 = vmul.f32 %v1037, 1.442695
      %v1149 = vpow.pop %v1148
      %v1150 = vmul.f32 %v1038, 1.442695
      %v1151 = vpow.pop %v1150
      %v1152 = vmul.f32 %v1039, 1.442695
      %v1153 = vpow.pop %v1152
      %v1154 = vmul.f32 %v1040, 1.442695
      %v1155 = vpow.pop %v1154
      %v1156 = vmul.f32 %v1041, 1.442695
      %v1157 = vpow.pop %v1156
      %v1158 = vmul.f32 %v1042, 1.442695
      %v1159 = vpow.pop %v1158
      %v1160 = vmul.f32 %v1043, 1.442695
      %v1161 = vpow.pop %v1160
      %v1162 = vmul.f32 %v1044, 1.442695
      %v1163 = vpow.pop %v1162
      %v1164 = vmul.f32 %v1045, 1.442695
      %v1165 = vpow.pop %v1164
      %v1166 = vmul.f32 %v1046, 1.442695
      %v1167 = vpow.pop %v1166
      %v1168 = vmul.f32 %v1047, 1.442695
      %v1169 = vpow.pop %v1168
      %v1170 = vmul.f32 %v1048, 1.442695
      %v1171 = vpow.pop %v1170
      %v1172 = vmul.f32 %v1049, 1.442695
      %v1173 = vpow.pop %v1172
      %v1174 = vmul.f32 %v1050, 1.442695
      %v1175 = vpow.pop %v1174
      %v1176 = vmul.f32 %v1051, 1.442695
      %v1177 = vpow.pop %v1176
      %v1178 = vmul.f32 %v1052, 1.442695
      %v1179 = vpow.pop %v1178
      %v1180 = vmul.f32 %v1053, 1.442695
      %v1181 = vpow.pop %v1180
      %v1182 = vld [vmem:[#allocation3] sm:$0x3]
      %v1183 = vmul.f32 %v978, %v1182
      %v1184 = vadd.f32 %v1055, %v1059
      %v1185 = vadd.f32 %v1184, %v1063
      %v1186 = vadd.f32 %v1185, %v1067
      %v1187 = vadd.f32 %v1186, %v1071
      %v1188 = vadd.f32 %v1187, %v1075
      %v1189 = vadd.f32 %v1188, %v1079
      %v1190 = vadd.f32 %v1189, %v1083
      %v1191 = vadd.f32 %v1190, %v1087
      %v1192 = vadd.f32 %v1191, %v1091
      %v1193 = vadd.f32 %v1192, %v1095
      %v1194 = vadd.f32 %v1193, %v1099
      %v1195 = vadd.f32 %v1194, %v1103
      %v1196 = vadd.f32 %v1195, %v1107
      %v1197 = vadd.f32 %v1196, %v1111
      %v1198 = vadd.f32 %v1197, %v1115
      %v1199 = vadd.f32 %v1198, %v1119
      %v1200 = vadd.f32 %v1199, %v1123
      %v1201 = vadd.f32 %v1200, %v1127
      %v1202 = vadd.f32 %v1201, %v1131
      %v1203 = vadd.f32 %v1202, %v1135
      %v1204 = vadd.f32 %v1203, %v1139
      %v1205 = vadd.f32 %v1204, %v1143
      %v1206 = vadd.f32 %v1205, %v1147
      %v1207 = vadd.f32 %v1206, %v1151
      %v1208 = vadd.f32 %v1207, %v1155
      %v1209 = vadd.f32 %v1208, %v1159
      %v1210 = vadd.f32 %v1209, %v1163
      %v1211 = vadd.f32 %v1210, %v1167
      %v1212 = vadd.f32 %v1211, %v1171
      %v1213 = vadd.f32 %v1212, %v1175
      %v1214 = vadd.f32 %v1213, %v1179
      %v1215 = vrot.slane %v1214, 4
      %v1216 = vadd.f32 %v1214, %v1215
      %v1217 = vrot.slane %v1216, 2
      %v1218 = vadd.f32 %v1216, %v1217
      %v1219 = vrot.slane %v1218, 1
      %v1220 = vadd.f32 %v1218, %v1219
      %v1221 = vadd.f32 %v1057, %v1061
      %v1222 = vadd.f32 %v1221, %v1065
      %v1223 = vadd.f32 %v1222, %v1069
      %v1224 = vadd.f32 %v1223, %v1073
      %v1225 = vadd.f32 %v1224, %v1077
      %v1226 = vadd.f32 %v1225, %v1081
      %v1227 = vadd.f32 %v1226, %v1085
      %v1228 = vadd.f32 %v1227, %v1089
      %v1229 = vadd.f32 %v1228, %v1093
      %v1230 = vadd.f32 %v1229, %v1097
      %v1231 = vadd.f32 %v1230, %v1101
      %v1232 = vadd.f32 %v1231, %v1105
      %v1233 = vadd.f32 %v1232, %v1109
      %v1234 = vadd.f32 %v1233, %v1113
      %v1235 = vadd.f32 %v1234, %v1117
      %v1236 = vadd.f32 %v1235, %v1121
      %v1237 = vadd.f32 %v1236, %v1125
      %v1238 = vadd.f32 %v1237, %v1129
      %v1239 = vadd.f32 %v1238, %v1133
      %v1240 = vadd.f32 %v1239, %v1137
      %v1241 = vadd.f32 %v1240, %v1141
      %v1242 = vadd.f32 %v1241, %v1145
      %v1243 = vadd.f32 %v1242, %v1149
      %v1244 = vadd.f32 %v1243, %v1153
      %v1245 = vadd.f32 %v1244, %v1157
      %v1246 = vadd.f32 %v1245, %v1161
      %v1247 = vadd.f32 %v1246, %v1165
      %v1248 = vadd.f32 %v1247, %v1169
      %v1249 = vadd.f32 %v1248, %v1173
      %v1250 = vadd.f32 %v1249, %v1177
      %v1251 = vadd.f32 %v1250, %v1181
      %v1252 = vrot.slane %v1251, 4
      %v1253 = vadd.f32 %v1251, %v1252
      %v1254 = vrot.slane %v1253, 2
      %v1255 = vadd.f32 %v1253, %v1254
      %v1256 = vrot.slane %v1255, 1
      %v1257 = vadd.f32 %v1255, %v1256
      %v1260 = vcombine.low %v1220, %v1257
      %v1262 = vunpack.c.l.s4 1966171168
      %v1263 = vunpack.c.0.s8 %v1262
      %v1264 = vlaneseq
      %v1265 = vshrl.u32 %v1264, 7
      %v1266 = vsub.s32 %v1263, %v1265
      %v1267 = vrot.slane %v1260, %v1266
      %v1269 = vunpack.c.l.s4 1966171168
      %v1270 = vunpack.c.0.s8 %v1269
      %v1271 = vlaneseq
      %v1272 = vshrl.u32 %v1271, 7
      %v1273 = vsub.s32 %v1270, %v1272
      %v1274 = vrot.slane %v1267, %v1273
      %v1276 = vadd.f32 %v1183, %v1274
      %v1277 = vlaneseq
      %vm1278 = vcmp.ge.s32.totalorder %v1277, 0
      %vm1279 = vcmp.lt.s32.totalorder %v1277, 256
      %vm1280 = vmand %vm1278, %vm1279
      %1281 = vst.msk [vmem:[#allocation3] sm:$0x3] %vm1280, %v1276
      %v1282 = vld [vmem:[#allocation4] sm:$0xff]
      %v1283 = vld [vmem:[#allocation4 + $0x8] sm:$0xff]
      %v1284 = vld [vmem:[#allocation4 + $0x10] sm:$0xff]
      %v1285 = vld [vmem:[#allocation4 + $0x18] sm:$0xff]
      %v1286 = vld [vmem:[#allocation4 + $0x20] sm:$0xff]
      %v1287 = vld [vmem:[#allocation4 + $0x28] sm:$0xff]
      %v1288 = vld [vmem:[#allocation4 + $0x30] sm:$0xff]
      %v1289 = vld [vmem:[#allocation4 + $0x38] sm:$0xff]
      %v1290 = vld [vmem:[#allocation4 + $0x40] sm:$0xff]
      %v1291 = vld [vmem:[#allocation4 + $0x48] sm:$0xff]
      %v1292 = vld [vmem:[#allocation4 + $0x50] sm:$0xff]
      %v1293 = vld [vmem:[#allocation4 + $0x58] sm:$0xff]
      %v1294 = vld [vmem:[#allocation4 + $0x60] sm:$0xff]
      %v1295 = vld [vmem:[#allocation4 + $0x68] sm:$0xff]
      %v1296 = vld [vmem:[#allocation4 + $0x70] sm:$0xff]
      %v1297 = vld [vmem:[#allocation4 + $0x78] sm:$0xff]
      %v1298 = vld [vmem:[#allocation4 + $0x80] sm:$0xff]
      %v1299 = vld [vmem:[#allocation4 + $0x88] sm:$0xff]
      %v1300 = vld [vmem:[#allocation4 + $0x90] sm:$0xff]
      %v1301 = vld [vmem:[#allocation4 + $0x98] sm:$0xff]
      %v1302 = vld [vmem:[#allocation4 + $0xa0] sm:$0xff]
      %v1303 = vld [vmem:[#allocation4 + $0xa8] sm:$0xff]
      %v1304 = vld [vmem:[#allocation4 + $0xb0] sm:$0xff]
      %v1305 = vld [vmem:[#allocation4 + $0xb8] sm:$0xff]
      %v1306 = vld [vmem:[#allocation4 + $0xc0] sm:$0xff]
      %v1307 = vld [vmem:[#allocation4 + $0xc8] sm:$0xff]
      %v1308 = vld [vmem:[#allocation4 + $0xd0] sm:$0xff]
      %v1309 = vld [vmem:[#allocation4 + $0xd8] sm:$0xff]
      %v1310 = vld [vmem:[#allocation4 + $0xe0] sm:$0xff]
      %v1311 = vld [vmem:[#allocation4 + $0xe8] sm:$0xff]
      %v1312 = vld [vmem:[#allocation4 + $0xf0] sm:$0xff]
      %v1313 = vld [vmem:[#allocation4 + $0xf8] sm:$0xff]
      %v1315 = vlaneseq
      %v1316 = vshrl.u32 %v1315, 7
      %v1317 = vsub.s32 0, %v1316
      %v1318 = vrot.slane %v978, %v1317
      %v1319 = vlaneseq
      %v1320 = vshrl.u32 %v1319, 7
      %v1321 = vsub.s32 1, %v1320
      %v1322 = vrot.slane %v978, %v1321
      %v1325 = vmul.f32 %v1318, %v1282
      %v1326 = vmul.f32 %v1322, %v1283
      %v1327 = vmul.f32 %v1318, %v1284
      %v1328 = vmul.f32 %v1322, %v1285
      %v1329 = vmul.f32 %v1318, %v1286
      %v1330 = vmul.f32 %v1322, %v1287
      %v1331 = vmul.f32 %v1318, %v1288
      %v1332 = vmul.f32 %v1322, %v1289
      %v1333 = vmul.f32 %v1318, %v1290
      %v1334 = vmul.f32 %v1322, %v1291
      %v1335 = vmul.f32 %v1318, %v1292
      %v1336 = vmul.f32 %v1322, %v1293
      %v1337 = vmul.f32 %v1318, %v1294
      %v1338 = vmul.f32 %v1322, %v1295
      %v1339 = vmul.f32 %v1318, %v1296
      %v1340 = vmul.f32 %v1322, %v1297
      %v1341 = vmul.f32 %v1318, %v1298
      %v1342 = vmul.f32 %v1322, %v1299
      %v1343 = vmul.f32 %v1318, %v1300
      %v1344 = vmul.f32 %v1322, %v1301
      %v1345 = vmul.f32 %v1318, %v1302
      %v1346 = vmul.f32 %v1322, %v1303
      %v1347 = vmul.f32 %v1318, %v1304
      %v1348 = vmul.f32 %v1322, %v1305
      %v1349 = vmul.f32 %v1318, %v1306
      %v1350 = vmul.f32 %v1322, %v1307
      %v1351 = vmul.f32 %v1318, %v1308
      %v1352 = vmul.f32 %v1322, %v1309
      %v1353 = vmul.f32 %v1318, %v1310
      %v1354 = vmul.f32 %v1322, %v1311
      %v1355 = vmul.f32 %v1318, %v1312
      %v1356 = vmul.f32 %v1322, %v1313
      %v1357 = vpack.c.bf16 %v1059, %v1055
      %v1358 = vpack.c.bf16 %v1061, %v1057
      %v1359 = vpack.c.bf16 %v1067, %v1063
      %v1360 = vpack.c.bf16 %v1069, %v1065
      %v1361 = vpack.c.bf16 %v1075, %v1071
      %v1362 = vpack.c.bf16 %v1077, %v1073
      %v1363 = vpack.c.bf16 %v1083, %v1079
      %v1364 = vpack.c.bf16 %v1085, %v1081
      %v1365 = vpack.c.bf16 %v1091, %v1087
      %v1366 = vpack.c.bf16 %v1093, %v1089
      %v1367 = vpack.c.bf16 %v1099, %v1095
      %v1368 = vpack.c.bf16 %v1101, %v1097
      %v1369 = vpack.c.bf16 %v1107, %v1103
      %v1370 = vpack.c.bf16 %v1109, %v1105
      %v1371 = vpack.c.bf16 %v1115, %v1111
      %v1372 = vpack.c.bf16 %v1117, %v1113
      %v1373 = vpack.c.bf16 %v1123, %v1119
      %v1374 = vpack.c.bf16 %v1125, %v1121
      %v1375 = vpack.c.bf16 %v1131, %v1127
      %v1376 = vpack.c.bf16 %v1133, %v1129
      %v1377 = vpack.c.bf16 %v1139, %v1135
      %v1378 = vpack.c.bf16 %v1141, %v1137
      %v1379 = vpack.c.bf16 %v1147, %v1143
      %v1380 = vpack.c.bf16 %v1149, %v1145
      %v1381 = vpack.c.bf16 %v1155, %v1151
      %v1382 = vpack.c.bf16 %v1157, %v1153
      %v1383 = vpack.c.bf16 %v1163, %v1159
      %v1384 = vpack.c.bf16 %v1165, %v1161
      %v1385 = vpack.c.bf16 %v1171, %v1167
      %v1386 = vpack.c.bf16 %v1173, %v1169
      %v1387 = vpack.c.bf16 %v1179, %v1175
      %v1388 = vpack.c.bf16 %v1181, %v1177
      %v1405 = vunpack.c.l.b16 %v497
      %v1406 = vunpack.c.h.b16 %v497
      %v1407 = vunpack.c.l.b16 %v498
      %v1408 = vunpack.c.h.b16 %v498
      %v1409 = vunpack.c.l.b16 %v499
      %v1410 = vunpack.c.h.b16 %v499
      %v1411 = vunpack.c.l.b16 %v500
      %v1412 = vunpack.c.h.b16 %v500
      %v1413 = vunpack.c.l.b16 %v501
      %v1414 = vunpack.c.h.b16 %v501
      %v1415 = vunpack.c.l.b16 %v502
      %v1416 = vunpack.c.h.b16 %v502
      %v1417 = vunpack.c.l.b16 %v503
      %v1418 = vunpack.c.h.b16 %v503
      %v1419 = vunpack.c.l.b16 %v504
      %v1420 = vunpack.c.h.b16 %v504
      %v1421 = vunpack.c.l.b16 %v505
      %v1422 = vunpack.c.h.b16 %v505
      %v1423 = vunpack.c.l.b16 %v506
      %v1424 = vunpack.c.h.b16 %v506
      %v1425 = vunpack.c.l.b16 %v507
      %v1426 = vunpack.c.h.b16 %v507
      %v1427 = vunpack.c.l.b16 %v508
      %v1428 = vunpack.c.h.b16 %v508
      %v1429 = vunpack.c.l.b16 %v509
      %v1430 = vunpack.c.h.b16 %v509
      %v1431 = vunpack.c.l.b16 %v510
      %v1432 = vunpack.c.h.b16 %v510
      %v1433 = vunpack.c.l.b16 %v511
      %v1434 = vunpack.c.h.b16 %v511
      %v1435 = vunpack.c.l.b16 %v512
      %v1436 = vunpack.c.h.b16 %v512
      %v1437 = vpack.c.b16 %v1407, %v1405
      %v1438 = vpack.c.b16 %v1408, %v1406
      %v1439 = vpack.c.b16 %v1411, %v1409
      %v1440 = vpack.c.b16 %v1412, %v1410
      %v1441 = vpack.c.b16 %v1415, %v1413
      %v1442 = vpack.c.b16 %v1416, %v1414
      %v1443 = vpack.c.b16 %v1419, %v1417
      %v1444 = vpack.c.b16 %v1420, %v1418
      %v1445 = vpack.c.b16 %v1423, %v1421
      %v1446 = vpack.c.b16 %v1424, %v1422
      %v1447 = vpack.c.b16 %v1427, %v1425
      %v1448 = vpack.c.b16 %v1428, %v1426
      %v1449 = vpack.c.b16 %v1431, %v1429
      %v1450 = vpack.c.b16 %v1432, %v1430
      %v1451 = vpack.c.b16 %v1435, %v1433
      %v1452 = vpack.c.b16 %v1436, %v1434
      %1469 = vmatprep.subr.bf16.mxu0 %v1358
      %1470 = vmatpush1.bf16.msra.mxu0 %v1357
      %1471 = vmatprep.subr.bf16.mxu0 %v1360
      %1472 = vmatpush1.bf16.msra.mxu0 %v1359
      %1473 = vmatprep.subr.bf16.mxu0 %v1362
      %1474 = vmatpush1.bf16.msra.mxu0 %v1361
      %1475 = vmatprep.subr.bf16.mxu0 %v1364
      %1476 = vmatpush1.bf16.msra.mxu0 %v1363
      %1477 = vmatprep.subr.bf16.mxu0 %v1366
      %1478 = vmatpush1.bf16.msra.mxu0 %v1365
      %1479 = vmatprep.subr.bf16.mxu0 %v1368
      %1480 = vmatpush1.bf16.msra.mxu0 %v1367
      %1481 = vmatprep.subr.bf16.mxu0 %v1370
      %1482 = vmatpush1.bf16.msra.mxu0 %v1369
      %1483 = vmatprep.subr.bf16.mxu0 %v1372
      %1484 = vmatpush1.bf16.msra.mxu0 %v1371
      %1485 = vmatprep.subr.bf16.mxu0 %v1374
      %1486 = vmatpush1.bf16.msra.mxu0 %v1373
      %1487 = vmatprep.subr.bf16.mxu0 %v1376
      %1488 = vmatpush1.bf16.msra.mxu0 %v1375
      %1489 = vmatprep.subr.bf16.mxu0 %v1378
      %1490 = vmatpush1.bf16.msra.mxu0 %v1377
      %1491 = vmatprep.subr.bf16.mxu0 %v1380
      %1492 = vmatpush1.bf16.msra.mxu0 %v1379
      %1493 = vmatprep.subr.bf16.mxu0 %v1382
      %1494 = vmatpush1.bf16.msra.mxu0 %v1381
      %1495 = vmatprep.subr.bf16.mxu0 %v1384
      %1496 = vmatpush1.bf16.msra.mxu0 %v1383
      %1497 = vmatprep.subr.bf16.mxu0 %v1386
      %1498 = vmatpush1.bf16.msra.mxu0 %v1385
      %1499 = vmatprep.subr.bf16.mxu0 %v1388
      %1500 = vmatpush1.bf16.msra.mxu0 %v1387
      %1501 = vmatprep.mubr.bf16.mxu0 %v1438
      %1502 = vmatmul.mubr.bf16.gmra.mrb[0].mxu0 %v1437
      %v1503 = vpop.f32.mrb[0].mxu0
      %v1504 = vadd.f32 0.0, %v1503
      %v1505 = vpop.f32.mrb[0].mxu0
      %v1506 = vadd.f32 0.0, %v1505
      %v1507 = vpop.f32.mrb[0].mxu0
      %v1508 = vadd.f32 0.0, %v1507
      %v1509 = vpop.f32.mrb[0].mxu0
      %v1510 = vadd.f32 0.0, %v1509
      %1511 = vmatprep.mubr.bf16.mxu0 %v1440
      %1512 = vmatmul.mubr.bf16.gmra.mrb[0].mxu0 %v1439
      %v1513 = vpop.f32.mrb[0].mxu0
      %v1514 = vadd.f32 0.0, %v1513
      %v1515 = vpop.f32.mrb[0].mxu0
      %v1516 = vadd.f32 0.0, %v1515
      %v1517 = vpop.f32.mrb[0].mxu0
      %v1518 = vadd.f32 0.0, %v1517
      %v1519 = vpop.f32.mrb[0].mxu0
      %v1520 = vadd.f32 0.0, %v1519
      %1521 = vmatprep.mubr.bf16.mxu0 %v1442
      %1522 = vmatmul.mubr.bf16.gmra.mrb[0].mxu0 %v1441
      %v1523 = vpop.f32.mrb[0].mxu0
      %v1524 = vadd.f32 0.0, %v1523
      %v1525 = vpop.f32.mrb[0].mxu0
      %v1526 = vadd.f32 0.0, %v1525
      %v1527 = vpop.f32.mrb[0].mxu0
      %v1528 = vadd.f32 0.0, %v1527
      %v1529 = vpop.f32.mrb[0].mxu0
      %v1530 = vadd.f32 0.0, %v1529
      %1531 = vmatprep.mubr.bf16.mxu0 %v1444
      %1532 = vmatmul.mubr.bf16.gmra.mrb[0].mxu0 %v1443
      %v1533 = vpop.f32.mrb[0].mxu0
      %v1534 = vadd.f32 0.0, %v1533
      %v1535 = vpop.f32.mrb[0].mxu0
      %v1536 = vadd.f32 0.0, %v1535
      %v1537 = vpop.f32.mrb[0].mxu0
      %v1538 = vadd.f32 0.0, %v1537
      %v1539 = vpop.f32.mrb[0].mxu0
      %v1540 = vadd.f32 0.0, %v1539
      %1541 = vmatprep.mubr.bf16.mxu0 %v1446
      %1542 = vmatmul.mubr.bf16.gmra.mrb[0].mxu0 %v1445
      %v1543 = vpop.f32.mrb[0].mxu0
      %v1544 = vadd.f32 0.0, %v1543
      %v1545 = vpop.f32.mrb[0].mxu0
      %v1546 = vadd.f32 0.0, %v1545
      %v1547 = vpop.f32.mrb[0].mxu0
      %v1548 = vadd.f32 0.0, %v1547
      %v1549 = vpop.f32.mrb[0].mxu0
      %v1550 = vadd.f32 0.0, %v1549
      %1551 = vmatprep.mubr.bf16.mxu0 %v1448
      %1552 = vmatmul.mubr.bf16.gmra.mrb[0].mxu0 %v1447
      %v1553 = vpop.f32.mrb[0].mxu0
      %v1554 = vadd.f32 0.0, %v1553
      %v1555 = vpop.f32.mrb[0].mxu0
      %v1556 = vadd.f32 0.0, %v1555
      %v1557 = vpop.f32.mrb[0].mxu0
      %v1558 = vadd.f32 0.0, %v1557
      %v1559 = vpop.f32.mrb[0].mxu0
      %v1560 = vadd.f32 0.0, %v1559
      %1561 = vmatprep.mubr.bf16.mxu0 %v1450
      %1562 = vmatmul.mubr.bf16.gmra.mrb[0].mxu0 %v1449
      %v1563 = vpop.f32.mrb[0].mxu0
      %v1564 = vadd.f32 0.0, %v1563
      %v1565 = vpop.f32.mrb[0].mxu0
      %v1566 = vadd.f32 0.0, %v1565
      %v1567 = vpop.f32.mrb[0].mxu0
      %v1568 = vadd.f32 0.0, %v1567
      %v1569 = vpop.f32.mrb[0].mxu0
      %v1570 = vadd.f32 0.0, %v1569
      %1571 = vmatprep.mubr.bf16.mxu0 %v1452
      %1572 = vmatmul.mubr.bf16.gmra.mrb[0].mxu0 %v1451
      %v1573 = vpop.f32.mrb[0].mxu0
      %v1574 = vadd.f32 0.0, %v1573
      %v1575 = vpop.f32.mrb[0].mxu0
      %v1576 = vadd.f32 0.0, %v1575
      %v1577 = vpop.f32.mrb[0].mxu0
      %v1578 = vadd.f32 0.0, %v1577
      %v1579 = vpop.f32.mrb[0].mxu0
      %v1580 = vadd.f32 0.0, %v1579
      %1581 = vdwg.mxu0
      %v1582 = vadd.f32 %v1325, %v1504
      %v1583 = vadd.f32 %v1326, %v1506
      %v1584 = vadd.f32 %v1327, %v1508
      %v1585 = vadd.f32 %v1328, %v1510
      %v1586 = vadd.f32 %v1329, %v1514
      %v1587 = vadd.f32 %v1330, %v1516
      %v1588 = vadd.f32 %v1331, %v1518
      %v1589 = vadd.f32 %v1332, %v1520
      %v1590 = vadd.f32 %v1333, %v1524
      %v1591 = vadd.f32 %v1334, %v1526
      %v1592 = vadd.f32 %v1335, %v1528
      %v1593 = vadd.f32 %v1336, %v1530
      %v1594 = vadd.f32 %v1337, %v1534
      %v1595 = vadd.f32 %v1338, %v1536
      %v1596 = vadd.f32 %v1339, %v1538
      %v1597 = vadd.f32 %v1340, %v1540
      %v1598 = vadd.f32 %v1341, %v1544
      %v1599 = vadd.f32 %v1342, %v1546
      %v1600 = vadd.f32 %v1343, %v1548
      %v1601 = vadd.f32 %v1344, %v1550
      %v1602 = vadd.f32 %v1345, %v1554
      %v1603 = vadd.f32 %v1346, %v1556
      %v1604 = vadd.f32 %v1347, %v1558
      %v1605 = vadd.f32 %v1348, %v1560
      %v1606 = vadd.f32 %v1349, %v1564
      %v1607 = vadd.f32 %v1350, %v1566
      %v1608 = vadd.f32 %v1351, %v1568
      %v1609 = vadd.f32 %v1352, %v1570
      %v1610 = vadd.f32 %v1353, %v1574
      %v1611 = vadd.f32 %v1354, %v1576
      %v1612 = vadd.f32 %v1355, %v1578
      %v1613 = vadd.f32 %v1356, %v1580
      %1614 = vst [vmem:[#allocation4] sm:$0xff] %v1582
      %1615 = vst [vmem:[#allocation4 + $0x8] sm:$0xff] %v1583
      %1616 = vst [vmem:[#allocation4 + $0x10] sm:$0xff] %v1584
      %1617 = vst [vmem:[#allocation4 + $0x18] sm:$0xff] %v1585
      %1618 = vst [vmem:[#allocation4 + $0x20] sm:$0xff] %v1586
      %1619 = vst [vmem:[#allocation4 + $0x28] sm:$0xff] %v1587
      %1620 = vst [vmem:[#allocation4 + $0x30] sm:$0xff] %v1588
      %1621 = vst [vmem:[#allocation4 + $0x38] sm:$0xff] %v1589
      %1622 = vst [vmem:[#allocation4 + $0x40] sm:$0xff] %v1590
      %1623 = vst [vmem:[#allocation4 + $0x48] sm:$0xff] %v1591
      %1624 = vst [vmem:[#allocation4 + $0x50] sm:$0xff] %v1592
      %1625 = vst [vmem:[#allocation4 + $0x58] sm:$0xff] %v1593
      %1626 = vst [vmem:[#allocation4 + $0x60] sm:$0xff] %v1594
      %1627 = vst [vmem:[#allocation4 + $0x68] sm:$0xff] %v1595
      %1628 = vst [vmem:[#allocation4 + $0x70] sm:$0xff] %v1596
      %1629 = vst [vmem:[#allocation4 + $0x78] sm:$0xff] %v1597
      %1630 = vst [vmem:[#allocation4 + $0x80] sm:$0xff] %v1598
      %1631 = vst [vmem:[#allocation4 + $0x88] sm:$0xff] %v1599
      %1632 = vst [vmem:[#allocation4 + $0x90] sm:$0xff] %v1600
      %1633 = vst [vmem:[#allocation4 + $0x98] sm:$0xff] %v1601
      %1634 = vst [vmem:[#allocation4 + $0xa0] sm:$0xff] %v1602
      %1635 = vst [vmem:[#allocation4 + $0xa8] sm:$0xff] %v1603
      %1636 = vst [vmem:[#allocation4 + $0xb0] sm:$0xff] %v1604
      %1637 = vst [vmem:[#allocation4 + $0xb8] sm:$0xff] %v1605
      %1638 = vst [vmem:[#allocation4 + $0xc0] sm:$0xff] %v1606
      %1639 = vst [vmem:[#allocation4 + $0xc8] sm:$0xff] %v1607
      %1640 = vst [vmem:[#allocation4 + $0xd0] sm:$0xff] %v1608
      %1641 = vst [vmem:[#allocation4 + $0xd8] sm:$0xff] %v1609
      %1642 = vst [vmem:[#allocation4 + $0xe0] sm:$0xff] %v1610
      %1643 = vst [vmem:[#allocation4 + $0xe8] sm:$0xff] %v1611
      %1644 = vst [vmem:[#allocation4 + $0xf0] sm:$0xff] %v1612
      %1645 = vst [vmem:[#allocation4 + $0xf8] sm:$0xff] %v1613
      %1646 = vst.msk [vmem:[#allocation2] sm:$0x3] %vm1280, %v975
      // Predicated region
      $region49: #{nonlocal_block.1} parent=43 // pred_check
        %p1647 = pneg %p407
      $region50: #{nonlocal_block.1} parent=43 // pred_check_branch
        %1649 = sbr.rel (%p1647) target = $region52
      $region51: #{nonlocal_block.1} parent=43 // pred_region
        %v1650 = vld [vmem:[#allocation4] sm:$0xff]
        %v1651 = vld [vmem:[#allocation4 + $0x8] sm:$0xff]
        %v1652 = vld [vmem:[#allocation4 + $0x10] sm:$0xff]
        %v1653 = vld [vmem:[#allocation4 + $0x18] sm:$0xff]
        %v1654 = vld [vmem:[#allocation4 + $0x20] sm:$0xff]
        %v1655 = vld [vmem:[#allocation4 + $0x28] sm:$0xff]
        %v1656 = vld [vmem:[#allocation4 + $0x30] sm:$0xff]
        %v1657 = vld [vmem:[#allocation4 + $0x38] sm:$0xff]
        %v1658 = vld [vmem:[#allocation4 + $0x40] sm:$0xff]
        %v1659 = vld [vmem:[#allocation4 + $0x48] sm:$0xff]
        %v1660 = vld [vmem:[#allocation4 + $0x50] sm:$0xff]
        %v1661 = vld [vmem:[#allocation4 + $0x58] sm:$0xff]
        %v1662 = vld [vmem:[#allocation4 + $0x60] sm:$0xff]
        %v1663 = vld [vmem:[#allocation4 + $0x68] sm:$0xff]
        %v1664 = vld [vmem:[#allocation4 + $0x70] sm:$0xff]
        %v1665 = vld [vmem:[#allocation4 + $0x78] sm:$0xff]
        %v1666 = vld [vmem:[#allocation4 + $0x80] sm:$0xff]
        %v1667 = vld [vmem:[#allocation4 + $0x88] sm:$0xff]
        %v1668 = vld [vmem:[#allocation4 + $0x90] sm:$0xff]
        %v1669 = vld [vmem:[#allocation4 + $0x98] sm:$0xff]
        %v1670 = vld [vmem:[#allocation4 + $0xa0] sm:$0xff]
        %v1671 = vld [vmem:[#allocation4 + $0xa8] sm:$0xff]
        %v1672 = vld [vmem:[#allocation4 + $0xb0] sm:$0xff]
        %v1673 = vld [vmem:[#allocation4 + $0xb8] sm:$0xff]
        %v1674 = vld [vmem:[#allocation4 + $0xc0] sm:$0xff]
        %v1675 = vld [vmem:[#allocation4 + $0xc8] sm:$0xff]
        %v1676 = vld [vmem:[#allocation4 + $0xd0] sm:$0xff]
        %v1677 = vld [vmem:[#allocation4 + $0xd8] sm:$0xff]
        %v1678 = vld [vmem:[#allocation4 + $0xe0] sm:$0xff]
        %v1679 = vld [vmem:[#allocation4 + $0xe8] sm:$0xff]
        %v1680 = vld [vmem:[#allocation4 + $0xf0] sm:$0xff]
        %v1681 = vld [vmem:[#allocation4 + $0xf8] sm:$0xff]
        %v1682 = vld [vmem:[#allocation3] sm:$0x3]
        %v1683 = vrcp.pop %v1682
        %v1685 = vlaneseq
        %v1686 = vshrl.u32 %v1685, 7
        %v1687 = vsub.s32 0, %v1686
        %v1688 = vrot.slane %v1683, %v1687
        %v1689 = vlaneseq
        %v1690 = vshrl.u32 %v1689, 7
        %v1691 = vsub.s32 1, %v1690
        %v1692 = vrot.slane %v1683, %v1691
        %v1695 = vmul.f32 %v1650, %v1688
        %v1696 = vmul.f32 %v1651, %v1692
        %v1697 = vmul.f32 %v1652, %v1688
        %v1698 = vmul.f32 %v1653, %v1692
        %v1699 = vmul.f32 %v1654, %v1688
        %v1700 = vmul.f32 %v1655, %v1692
        %v1701 = vmul.f32 %v1656, %v1688
        %v1702 = vmul.f32 %v1657, %v1692
        %v1703 = vmul.f32 %v1658, %v1688
        %v1704 = vmul.f32 %v1659, %v1692
        %v1705 = vmul.f32 %v1660, %v1688
        %v1706 = vmul.f32 %v1661, %v1692
        %v1707 = vmul.f32 %v1662, %v1688
        %v1708 = vmul.f32 %v1663, %v1692
        %v1709 = vmul.f32 %v1664, %v1688
        %v1710 = vmul.f32 %v1665, %v1692
        %v1711 = vmul.f32 %v1666, %v1688
        %v1712 = vmul.f32 %v1667, %v1692
        %v1713 = vmul.f32 %v1668, %v1688
        %v1714 = vmul.f32 %v1669, %v1692
        %v1715 = vmul.f32 %v1670, %v1688
        %v1716 = vmul.f32 %v1671, %v1692
        %v1717 = vmul.f32 %v1672, %v1688
        %v1718 = vmul.f32 %v1673, %v1692
        %v1719 = vmul.f32 %v1674, %v1688
        %v1720 = vmul.f32 %v1675, %v1692
        %v1721 = vmul.f32 %v1676, %v1688
        %v1722 = vmul.f32 %v1677, %v1692
        %v1723 = vmul.f32 %v1678, %v1688
        %v1724 = vmul.f32 %v1679, %v1692
        %v1725 = vmul.f32 %v1680, %v1688
        %v1726 = vmul.f32 %v1681, %v1692
        %v1727 = vld [vmem:[%s4] sm:$0x3]
        %v1728 = vpack.c.bf16 %v1697, %v1695
        %v1729 = vpack.c.bf16 %v1698, %v1696
        %v1730 = vpack.c.bf16 %v1701, %v1699
        %v1731 = vpack.c.bf16 %v1702, %v1700
        %v1732 = vpack.c.bf16 %v1705, %v1703
        %v1733 = vpack.c.bf16 %v1706, %v1704
        %v1734 = vpack.c.bf16 %v1709, %v1707
        %v1735 = vpack.c.bf16 %v1710, %v1708
        %v1736 = vpack.c.bf16 %v1713, %v1711
        %v1737 = vpack.c.bf16 %v1714, %v1712
        %v1738 = vpack.c.bf16 %v1717, %v1715
        %v1739 = vpack.c.bf16 %v1718, %v1716
        %v1740 = vpack.c.bf16 %v1721, %v1719
        %v1741 = vpack.c.bf16 %v1722, %v1720
        %v1742 = vpack.c.bf16 %v1725, %v1723
        %v1743 = vpack.c.bf16 %v1726, %v1724
        %v1744 = vld [vmem:[%s5] sm:$0xf]
        %1746 = vset.pattern.permute.xlu0 0
        %1747 = vperm.xlu0 %1746, %v1744
        %v1748 = vpop.permute.xlu0 %1747
        %1750 = vmatprep.subr.bf16.mxu0 %v1729
        %1751 = vmatpush1.bf16.msra.mxu0 %v1728
        %1752 = vmatprep.subr.bf16.mxu0 %v1731
        %1753 = vmatpush1.bf16.msra.mxu0 %v1730
        %1754 = vmatprep.subr.bf16.mxu0 %v1733
        %1755 = vmatpush1.bf16.msra.mxu0 %v1732
        %1756 = vmatprep.subr.bf16.mxu0 %v1735
        %1757 = vmatpush1.bf16.msra.mxu0 %v1734
        %1758 = vmatprep.subr.bf16.mxu0 %v1737
        %1759 = vmatpush1.bf16.msra.mxu0 %v1736
        %1760 = vmatprep.subr.bf16.mxu0 %v1739
        %1761 = vmatpush1.bf16.msra.mxu0 %v1738
        %1762 = vmatprep.subr.bf16.mxu0 %v1741
        %1763 = vmatpush1.bf16.msra.mxu0 %v1740
        %1764 = vmatprep.subr.bf16.mxu0 %v1743
        %1765 = vmatpush1.bf16.msra.mxu0 %v1742
        %1766 = vmatprep.subr.bf16.mxu0 0
        %1767 = vmatpush1.bf16.msra.mxu0 0
        %1768 = vmatprep.subr.bf16.mxu0 0
        %1769 = vmatpush1.bf16.msra.mxu0 0
        %1770 = vmatprep.subr.bf16.mxu0 0
        %1771 = vmatpush1.bf16.msra.mxu0 0
        %1772 = vmatprep.subr.bf16.mxu0 0
        %1773 = vmatpush1.bf16.msra.mxu0 0
        %1774 = vmatprep.subr.bf16.mxu0 0
        %1775 = vmatpush1.bf16.msra.mxu0 0
        %1776 = vmatprep.subr.bf16.mxu0 0
        %1777 = vmatpush1.bf16.msra.mxu0 0
        %1778 = vmatprep.subr.bf16.mxu0 0
        %1779 = vmatpush1.bf16.msra.mxu0 0
        %1780 = vmatprep.subr.bf16.mxu0 0
        %1781 = vmatpush1.bf16.msra.mxu0 0
        %1782 = vmatprep.mubr.bf16.mxu0 0
        %1783 = vmatmul.mubr.bf16.gmra.mrb[0].mxu0 %v1727
        %v1784 = vpop.f32.mrb[0].mxu0
        %v1785 = vadd.f32 %v1748, %v1784
        %v1786 = vpop.f32.mrb[0].mxu0
        %v1787 = vadd.f32 %v1748, %v1786
        %v1788 = vpop.f32.mrb[0].mxu0
        %v1789 = vpop.f32.mrb[0].mxu0
        %1790 = vdwg.mxu0
        %v1791 = vld [vmem:[%s364] sm:$0xff]
        %v1793 = vcombine.high %v1791, %v1791
        %v1795 = vadd.f32 %v1785, %v1791
        %v1796 = vadd.f32 %v1787, %v1793
        %v1799 = vcombine.low %v1795, %v1796
        %1801 = vst [vmem:[%s404] sm:$0xff] %v1799
      $region52: #{nonlocal_block.1} parent=43 // pred_fallthru
        _
      %s1802 = smul.u32 2, %s23
      %p1803 = scmp.lt.s32.totalorder %s22, 1
      %s1804 = scalar_select %p1803, %s22, 1
      %p1805 = scmp.lt.s32.totalorder %s1802, 1
      %s1806 = scalar_select %p1805, %s1802, 1
      %s1807 = smul.addr %s1804, 2
      %s1808 = sadd.s32 %s1806, %s1807
      %s1809 = smul.addr %s1808, 4
      %s1810 = scalar_lea.vmem %s6, %s1809
      // Predicated region
      $region53: #{nonlocal_block.1} parent=43 // pred_check
        %p1811 = pneg %p210
      $region54: #{nonlocal_block.1} parent=43 // pred_check_branch
        %1813 = sbr.rel (%p1811) target = $region56
      $region55: #{nonlocal_block.1} parent=43 // pred_region
        %s1814 = smul.u32 2, %s23
      $region56: #{nonlocal_block.1} parent=43 // pred_fallthru
        _
    $region44: #{nonlocal_block.1} parent=5 // pred_fallthru
      _
    %p1815 = scmp.le.s32.totalorder 2, %s12
    // Predicated region
    $region57: #{nonlocal_block.1} parent=5 // pred_check
      %p1816 = pneg %p1815
    $region58: #{nonlocal_block.1} parent=5 // pred_check_branch
      %1818 = sbr.rel (%p1816) target = $region60
    $region59: #{nonlocal_block.1} parent=5 // pred_region
      %s1819 = ssub.s32 %s12, 2
      // Predicated region
      $region61: #{nonlocal_block.1} parent=59 // pred_check
        %p1820 = pneg %p216
      $region62: #{nonlocal_block.1} parent=59 // pred_check_branch
        %1822 = sbr.rel (%p1820) target = $region64
      $region63: #{nonlocal_block.1} parent=59 // pred_region
        %s1823 = smul.u32 2, %s26
        %p1824 = scmp.lt.s32.totalorder %s25, 1
        %s1825 = scalar_select %p1824, %s25, 1
        %p1826 = scmp.lt.s32.totalorder %s1823, 1
        %s1827 = scalar_select %p1826, %s1823, 1
        %s1828 = smul.addr %s1825, 2
        %s1829 = sadd.s32 %s1827, %s1828
        %s1830 = smul.addr %s1829, 4
        %s1831 = scalar_lea.vmem %s6, %s1830
      $region64: #{nonlocal_block.1} parent=59 // pred_fallthru
        _
    $region60: #{nonlocal_block.1} parent=5 // pred_fallthru
      _
  $region6: #{nonlocal_block.1} parent=0 // loop_footer
    %s16 = sadd.s32 1, %s12
  $region7: #{nonlocal_block.1} parent=0 // loop_footer_branch
    %11 = sbr.rel target = $region3
  $region8: #{nonlocal_block.1} parent=0 // loop_exit
    _

// kernel: nonlocal_block.1
$region0: #{nonlocal_block.1}
  #allocation0 [shape = 'u32[]', space=smem, size = 0x4, offset = 0x4, fixed_abs, tag = 'smem constant byte address 0x4 - core index']
  #allocation1 [shape = 'u32[144,128]{1,0:T(1,128)}', space=vmem, size = 0x12000, scoped, tag = 'internal scratch']
  #allocation2 [shape = 'f32[1,256]{1,0:T(1,128)}', space=vmem, size = 0x400, scoped, tag = 'scratch operand']
  #allocation3 [shape = 'f32[1,256]{1,0:T(1,128)}', space=vmem, size = 0x400, scoped, tag = 'scratch operand']
  #allocation4 [shape = 'f32[128,256]{1,0:T(8,128)}', space=vmem, size = 0x20000, scoped, tag = 'scratch operand']
  %s0 = inlined_call_operand.vmem [shape: f32[2,4,256], index: 0, kind: input, shape index: {}]
  %s1 = inlined_call_operand.vmem [shape: bf16[2,128,256], index: 1, kind: input, shape index: {}]
  %s2 = inlined_call_operand.vmem [shape: bf16[2,256,128], index: 2, kind: input, shape index: {}]
  %s3 = inlined_call_operand.vmem [shape: bf16[2,128,256], index: 3, kind: input, shape index: {}]
  %s4 = inlined_call_operand.vmem [shape: bf16[4,128], index: 4, kind: input, shape index: {}]
  %s5 = inlined_call_operand.vmem [shape: f32[4,1], index: 5, kind: input, shape index: {}]
  %s6 = inlined_call_operand.vmem [shape: f32[2,4,256], index: 6, kind: output, shape index: {}]
  %s7 = sld [smem:[#allocation0]]
  $region65: #{nonlocal_block.1} parent=0
    _
  %s9 = ssub.s32 1, %s7
  %s10 = scalar_select 0, %s9, %s7
  loop: start=0, step=1, limit=4
  $region2: #{nonlocal_block.1} parent=0 // loop_pre_header
    _
  $region3: #{nonlocal_block.1} parent=0 // loop_header
    %s12 = sphi 0, %s16
    %p13 = scmp.ge.s32.totalorder %s12, 4
    %s19 = sphi 0, %s38
    %s20 = sphi 0, %s34
    %s21 = sphi 0, %s30
    %s22 = sphi 0, %s19
    %s23 = sphi 0, %s20
    %s24 = sphi 0, %s21
    %s25 = sphi 0, %s22
    %s26 = sphi 0, %s23
    %s27 = sphi 0, %s24
    %s43 = sphi 0, %s45
    %s46 = sphi 0, %s43
    %s47 = sphi 0, %s46
    %s63 = sphi 0, %s47
    %s71 = sphi 0, %s73
    %s74 = sphi 0, %s71
    %s75 = sphi 0, %s74
    %s91 = sphi 0, %s75
    %s99 = sphi 0, %s101
    %s102 = sphi 0, %s99
    %s103 = sphi 0, %s102
    %s119 = sphi 0, %s103
    %s127 = sphi 0, %s129
    %s130 = sphi 0, %s127
    %s131 = sphi 0, %s130
    %s147 = sphi 0, %s131
    %s151 = sphi 0, %s151
    %s153 = sphi 0, %s151
    %s154 = sphi 0, %s153
    %s168 = sphi 0, %s154
    %s172 = sphi 0, %s172
    %s174 = sphi 0, %s172
    %s175 = sphi 0, %s174
    %s189 = sphi 0, %s175
    %s197 = sphi 0, %s199
    %s200 = sphi 0, %s197
    %s201 = sphi 0, %s200
    %s217 = sphi 0, %s201
  $region4: #{nonlocal_block.1} parent=0 // loop_header_branch
    %15 = sbr.rel (%p13) target = $region8
  $region5: #{nonlocal_block.1} parent=0 // loop_body
    %s17 = ssub.s32 %s12, 1
    %s18 = ssub.s32 %s12, 2
    %s28 = sadd.s32 1, %s21
    %p29 = scmp.ge.s32.totalorder %s28, 1
    %s30 = scalar_select %p29, 0, %s28
    %s31 = sadd.s32 1, %s20
    %s32 = scalar_select %p29, %s31, %s20
    %p33 = scmp.ge.s32.totalorder %s32, 1
    %s34 = scalar_select %p33, 0, %s32
    %s35 = sadd.s32 1, %s19
    %s36 = scalar_select %p33, %s35, %s19
    %p37 = scmp.ge.s32.totalorder %s36, 2
    %s38 = scalar_select %p37, 0, %s36
    %s39 = ssub.s32 %s19, %s38
    %s40 = ssub.s32 %s20, %s34
    %s41 = sor.u32 %s39, %s40
    %p42 = scmp.eq.s32.totalorder %s41, 0
    %s44 = sadd.s32 %s43, 1
    %s45 = scalar_select %p42, %s43, %s44
    %p48 = pneg %p42
    %p49 = scmp.eq.s32.totalorder %s12, 1
    %p50 = por %p48, %p49
    %p51 = scmp.ne.s32.totalorder %s43, %s46
    %p52 = scmp.eq.s32.totalorder %s12, 0
    %p53 = por %p51, %p52
    %p54 = scmp.ne.s32.totalorder %s43, %s46
    %p55 = scmp.eq.s32.totalorder %s17, 1
    %p56 = por %p54, %p55
    %p57 = scmp.ne.s32.totalorder %s46, %s47
    %p58 = scmp.eq.s32.totalorder %s17, 0
    %p59 = por %p57, %p58
    %p60 = scmp.ne.s32.totalorder %s46, %s47
    %p61 = scmp.eq.s32.totalorder %s18, 1
    %p62 = por %p60, %p61
    %p64 = scmp.ne.s32.totalorder %s47, %s63
    %p65 = scmp.eq.s32.totalorder %s18, 0
    %p66 = por %p64, %p65
    %s67 = ssub.s32 %s19, %s38
    %s68 = ssub.s32 %s20, %s34
    %s69 = sor.u32 %s67, %s68
    %p70 = scmp.eq.s32.totalorder %s69, 0
    %s72 = sadd.s32 %s71, 1
    %s73 = scalar_select %p70, %s71, %s72
    %p76 = pneg %p70
    %p77 = scmp.eq.s32.totalorder %s12, 1
    %p78 = por %p76, %p77
    %p79 = scmp.ne.s32.totalorder %s71, %s74
    %p80 = scmp.eq.s32.totalorder %s12, 0
    %p81 = por %p79, %p80
    %p82 = scmp.ne.s32.totalorder %s71, %s74
    %p83 = scmp.eq.s32.totalorder %s17, 1
    %p84 = por %p82, %p83
    %p85 = scmp.ne.s32.totalorder %s74, %s75
    %p86 = scmp.eq.s32.totalorder %s17, 0
    %p87 = por %p85, %p86
    %p88 = scmp.ne.s32.totalorder %s74, %s75
    %p89 = scmp.eq.s32.totalorder %s18, 1
    %p90 = por %p88, %p89
    %p92 = scmp.ne.s32.totalorder %s75, %s91
    %p93 = scmp.eq.s32.totalorder %s18, 0
    %p94 = por %p92, %p93
    %s95 = ssub.s32 %s19, %s38
    %s96 = ssub.s32 %s21, %s30
    %s97 = sor.u32 %s95, %s96
    %p98 = scmp.eq.s32.totalorder %s97, 0
    %s100 = sadd.s32 %s99, 1
    %s101 = scalar_select %p98, %s99, %s100
    %p104 = pneg %p98
    %p105 = scmp.eq.s32.totalorder %s12, 1
    %p106 = por %p104, %p105
    %p107 = scmp.ne.s32.totalorder %s99, %s102
    %p108 = scmp.eq.s32.totalorder %s12, 0
    %p109 = por %p107, %p108
    %p110 = scmp.ne.s32.totalorder %s99, %s102
    %p111 = scmp.eq.s32.totalorder %s17, 1
    %p112 = por %p110, %p111
    %p113 = scmp.ne.s32.totalorder %s102, %s103
    %p114 = scmp.eq.s32.totalorder %s17, 0
    %p115 = por %p113, %p114
    %p116 = scmp.ne.s32.totalorder %s102, %s103
    %p117 = scmp.eq.s32.totalorder %s18, 1
    %p118 = por %p116, %p117
    %p120 = scmp.ne.s32.totalorder %s103, %s119
    %p121 = scmp.eq.s32.totalorder %s18, 0
    %p122 = por %p120, %p121
    %s123 = ssub.s32 %s19, %s38
    %s124 = ssub.s32 %s21, %s30
    %s125 = sor.u32 %s123, %s124
    %p126 = scmp.eq.s32.totalorder %s125, 0
    %s128 = sadd.s32 %s127, 1
    %s129 = scalar_select %p126, %s127, %s128
    %p132 = pneg %p126
    %p133 = scmp.eq.s32.totalorder %s12, 1
    %p134 = por %p132, %p133
    %p135 = scmp.ne.s32.totalorder %s127, %s130
    %p136 = scmp.eq.s32.totalorder %s12, 0
    %p137 = por %p135, %p136
    %p138 = scmp.ne.s32.totalorder %s127, %s130
    %p139 = scmp.eq.s32.totalorder %s17, 1
    %p140 = por %p138, %p139
    %p141 = scmp.ne.s32.totalorder %s130, %s131
    %p142 = scmp.eq.s32.totalorder %s17, 0
    %p143 = por %p141, %p142
    %p144 = scmp.ne.s32.totalorder %s130, %s131
    %p145 = scmp.eq.s32.totalorder %s18, 1
    %p146 = por %p144, %p145
    %p148 = scmp.ne.s32.totalorder %s131, %s147
    %p149 = scmp.eq.s32.totalorder %s18, 0
    %p150 = por %p148, %p149
    %s152 = sadd.s32 %s151, 1
    %p155 = scmp.eq.s32.totalorder %s12, 1
    %p156 = scmp.ne.s32.totalorder %s151, %s153
    %p157 = scmp.eq.s32.totalorder %s12, 0
    %p158 = por %p156, %p157
    %p159 = scmp.ne.s32.totalorder %s151, %s153
    %p160 = scmp.eq.s32.totalorder %s17, 1
    %p161 = por %p159, %p160
    %p162 = scmp.ne.s32.totalorder %s153, %s154
    %p163 = scmp.eq.s32.totalorder %s17, 0
    %p164 = por %p162, %p163
    %p165 = scmp.ne.s32.totalorder %s153, %s154
    %p166 = scmp.eq.s32.totalorder %s18, 1
    %p167 = por %p165, %p166
    %p169 = scmp.ne.s32.totalorder %s154, %s168
    %p170 = scmp.eq.s32.totalorder %s18, 0
    %p171 = por %p169, %p170
    %s173 = sadd.s32 %s172, 1
    %p176 = scmp.eq.s32.totalorder %s12, 1
    %p177 = scmp.ne.s32.totalorder %s172, %s174
    %p178 = scmp.eq.s32.totalorder %s12, 0
    %p179 = por %p177, %p178
    %p180 = scmp.ne.s32.totalorder %s172, %s174
    %p181 = scmp.eq.s32.totalorder %s17, 1
    %p182 = por %p180, %p181
    %p183 = scmp.ne.s32.totalorder %s174, %s175
    %p184 = scmp.eq.s32.totalorder %s17, 0
    %p185 = por %p183, %p184
    %p186 = scmp.ne.s32.totalorder %s174, %s175
    %p187 = scmp.eq.s32.totalorder %s18, 1
    %p188 = por %p186, %p187
    %p190 = scmp.ne.s32.totalorder %s175, %s189
    %p191 = scmp.eq.s32.totalorder %s18, 0
    %p192 = por %p190, %p191
    %s193 = ssub.s32 %s19, %s38
    %s194 = ssub.s32 %s20, %s34
    %s195 = sor.u32 %s193, %s194
    %p196 = scmp.eq.s32.totalorder %s195, 0
    %s198 = sadd.s32 %s197, 1
    %s199 = scalar_select %p196, %s197, %s198
    %p202 = pneg %p196
    %p203 = scmp.eq.s32.totalorder %s12, 1
    %p204 = por %p202, %p203
    %p205 = scmp.ne.s32.totalorder %s197, %s200
    %p206 = scmp.eq.s32.totalorder %s12, 0
    %p207 = por %p205, %p206
    %p208 = scmp.ne.s32.totalorder %s197, %s200
    %p209 = scmp.eq.s32.totalorder %s17, 1
    %p210 = por %p208, %p209
    %p211 = scmp.ne.s32.totalorder %s200, %s201
    %p212 = scmp.eq.s32.totalorder %s17, 0
    %p213 = por %p211, %p212
    %p214 = scmp.ne.s32.totalorder %s200, %s201
    %p215 = scmp.eq.s32.totalorder %s18, 1
    %p216 = por %p214, %p215
    %p218 = scmp.ne.s32.totalorder %s201, %s217
    %p219 = scmp.eq.s32.totalorder %s18, 0
    %p220 = por %p218, %p219
    %p221 = scmp.le.s32.totalorder 1, %s12
    %p222 = scmp.lt.s32.totalorder %s12, 3
    %p223 = pnand %p221, %p222
    %p224 = pneg %p223
    // Predicated region
    $region9: #{nonlocal_block.1} parent=5 // pred_check
      _
    $region10: #{nonlocal_block.1} parent=5 // pred_check_branch
      %226 = sbr.rel (%p223) target = $region12
    $region11: #{nonlocal_block.1} parent=5 // pred_region
      %s227 = ssub.s32 %s12, 1
      // Predicated region
      $region13: #{nonlocal_block.1} parent=11 // pred_check
        %p228 = pneg %p164
      $region14: #{nonlocal_block.1} parent=11 // pred_check_branch
        %230 = sbr.rel (%p228) target = $region16
      $region15: #{nonlocal_block.1} parent=11 // pred_region
        _
      $region16: #{nonlocal_block.1} parent=11 // pred_fallthru
        _
      // Predicated region
      $region17: #{nonlocal_block.1} parent=11 // pred_check
        %p231 = pneg %p185
      $region18: #{nonlocal_block.1} parent=11 // pred_check_branch
        %233 = sbr.rel (%p231) target = $region20
      $region19: #{nonlocal_block.1} parent=11 // pred_region
        _
      $region20: #{nonlocal_block.1} parent=11 // pred_fallthru
        _
    $region12: #{nonlocal_block.1} parent=5 // pred_fallthru
      _
    %p234 = scmp.lt.s32.totalorder %s12, 2
    // Predicated region
    $region21: #{nonlocal_block.1} parent=5 // pred_check
      %p235 = pneg %p234
    $region22: #{nonlocal_block.1} parent=5 // pred_check_branch
      %237 = sbr.rel (%p235) target = $region24
    $region23: #{nonlocal_block.1} parent=5 // pred_region
      // Predicated region
      $region25: #{nonlocal_block.1} parent=23 // pred_check
        %p238 = pneg %p53
      $region26: #{nonlocal_block.1} parent=23 // pred_check_branch
        %240 = sbr.rel (%p238) target = $region28
      $region27: #{nonlocal_block.1} parent=23 // pred_region
        %s241 = smul.u32 2, %s20
        %p242 = scmp.lt.s32.totalorder %s19, 1
        %s243 = scalar_select %p242, %s19, 1
        %p244 = scmp.lt.s32.totalorder %s241, 1
        %s245 = scalar_select %p244, %s241, 1
        %s246 = smul.addr %s243, 2
        %s247 = sadd.s32 %s245, %s246
        %s248 = smul.addr %s247, 4
        %s249 = scalar_lea.vmem %s0, %s248
        %s250 = smul.u32 2, %s20
      $region28: #{nonlocal_block.1} parent=23 // pred_fallthru
        _
      // Predicated region
      $region29: #{nonlocal_block.1} parent=23 // pred_check
        %p251 = pneg %p81
      $region30: #{nonlocal_block.1} parent=23 // pred_check_branch
        %253 = sbr.rel (%p251) target = $region32
      $region31: #{nonlocal_block.1} parent=23 // pred_region
        %s254 = smul.u32 2, %s20
        %p255 = scmp.lt.s32.totalorder %s19, 1
        %s256 = scalar_select %p255, %s19, 1
        %p257 = scmp.lt.s32.totalorder %s254, 1
        %s258 = scalar_select %p257, %s254, 1
        %s259 = smul.addr %s256, 32
        %s260 = sadd.s32 %s258, %s259
        %s261 = smul.addr %s260, 4
        %s262 = scalar_lea.vmem %s1, %s261
        %s263 = smul.u32 2, %s20
      $region32: #{nonlocal_block.1} parent=23 // pred_fallthru
        _
      // Predicated region
      $region33: #{nonlocal_block.1} parent=23 // pred_check
        %p264 = pneg %p109
      $region34: #{nonlocal_block.1} parent=23 // pred_check_branch
        %266 = sbr.rel (%p264) target = $region36
      $region35: #{nonlocal_block.1} parent=23 // pred_region
        %s267 = smul.u32 32, %s21
        %p268 = scmp.lt.s32.totalorder %s19, 1
        %s269 = scalar_select %p268, %s19, 1
        %p270 = scmp.lt.s32.totalorder %s267, 31
        %s271 = scalar_select %p270, %s267, 31
        %s272 = smul.addr %s269, 32
        %s273 = sadd.s32 %s271, %s272
        %s274 = smul.addr %s273, 4
        %s275 = scalar_lea.vmem %s2, %s274
        %s276 = smul.u32 32, %s21
      $region36: #{nonlocal_block.1} parent=23 // pred_fallthru
        _
      // Predicated region
      $region37: #{nonlocal_block.1} parent=23 // pred_check
        %p277 = pneg %p137
      $region38: #{nonlocal_block.1} parent=23 // pred_check_branch
        %279 = sbr.rel (%p277) target = $region40
      $region39: #{nonlocal_block.1} parent=23 // pred_region
        %s280 = smul.u32 2, %s21
        %p281 = scmp.lt.s32.totalorder %s19, 1
        %s282 = scalar_select %p281, %s19, 1
        %p283 = scmp.lt.s32.totalorder %s280, 1
        %s284 = scalar_select %p283, %s280, 1
        %s285 = smul.addr %s282, 32
        %s286 = sadd.s32 %s284, %s285
        %s287 = smul.addr %s286, 4
        %s288 = scalar_lea.vmem %s3, %s287
        %s289 = smul.u32 2, %s21
      $region40: #{nonlocal_block.1} parent=23 // pred_fallthru
        _
    $region24: #{nonlocal_block.1} parent=5 // pred_fallthru
      _
    %p290 = scmp.le.s32.totalorder 1, %s12
    %p291 = scmp.lt.s32.totalorder %s12, 3
    %p292 = pnand %p290, %p291
    %p293 = pneg %p292
    // Predicated region
    $region41: #{nonlocal_block.1} parent=5 // pred_check
      _
    $region42: #{nonlocal_block.1} parent=5 // pred_check_branch
      %295 = sbr.rel (%p292) target = $region44
    $region43: #{nonlocal_block.1} parent=5 // pred_region
      %s296 = ssub.s32 %s12, 1
      %s297 = smul.u32 2, %s23
      %p298 = scmp.lt.s32.totalorder %s22, 1
      %s299 = scalar_select %p298, %s22, 1
      %p300 = scmp.lt.s32.totalorder %s297, 1
      %s301 = scalar_select %p300, %s297, 1
      %s302 = smul.addr %s299, 2
      %s303 = sadd.s32 %s301, %s302
      %s304 = smul.addr %s303, 4
      %s305 = scalar_lea.vmem %s0, %s304
      %p306 = pneg %p59
      %p307 = pneg %p56
      %s308 = smul.u32 2, %s23
      %p309 = scmp.lt.s32.totalorder %s22, 1
      %s310 = scalar_select %p309, %s22, 1
      %p311 = scmp.lt.s32.totalorder %s308, 1
      %s312 = scalar_select %p311, %s308, 1
      %s313 = smul.addr %s310, 32
      %s314 = sadd.s32 %s312, %s313
      %s315 = smul.addr %s314, 4
      %s316 = scalar_lea.vmem %s1, %s315
      %p317 = pneg %p87
      %p318 = pneg %p84
      %s319 = smul.u32 32, %s24
      %p320 = scmp.lt.s32.totalorder %s22, 1
      %s321 = scalar_select %p320, %s22, 1
      %p322 = scmp.lt.s32.totalorder %s319, 31
      %s323 = scalar_select %p322, %s319, 31
      %s324 = smul.addr %s321, 32
      %s325 = sadd.s32 %s323, %s324
      %s326 = smul.addr %s325, 4
      %s327 = scalar_lea.vmem %s2, %s326
      %p328 = pneg %p115
      %p329 = pneg %p112
      %s330 = smul.u32 2, %s24
      %p331 = scmp.lt.s32.totalorder %s22, 1
      %s332 = scalar_select %p331, %s22, 1
      %p333 = scmp.lt.s32.totalorder %s330, 1
      %s334 = scalar_select %p333, %s330, 1
      %s335 = smul.addr %s332, 32
      %s336 = sadd.s32 %s334, %s335
      %s337 = smul.addr %s336, 4
      %s338 = scalar_lea.vmem %s3, %s337
      %p339 = pneg %p143
      %p340 = pneg %p140
      %p341 = pneg %p164
      %p342 = pneg %p161
      %p343 = pneg %p185
      %p344 = pneg %p182
      %p345 = pneg %p213
      %p346 = pneg %p210
      %s347 = smul.u32 2, %s23
      %p348 = scmp.lt.s32.totalorder %s22, 1
      %s349 = scalar_select %p348, %s22, 1
      %p350 = scmp.lt.s32.totalorder %s347, 1
      %s351 = scalar_select %p350, %s347, 1
      %s352 = smul.addr %s349, 2
      %s353 = sadd.s32 %s351, %s352
      %s354 = smul.addr %s353, 4
      %s355 = scalar_lea.vmem %s6, %s354
      %s356 = smul.u32 2, %s23
      %p357 = scmp.lt.s32.totalorder %s22, 1
      %s358 = scalar_select %p357, %s22, 1
      %p359 = scmp.lt.s32.totalorder %s356, 1
      %s360 = scalar_select %p359, %s356, 1
      %s361 = smul.addr %s358, 2
      %s362 = sadd.s32 %s360, %s361
      %s363 = smul.addr %s362, 4
      %s364 = scalar_lea.vmem %s0, %s363
      %s365 = smul.u32 2, %s23
      %s366 = smul.u32 2, %s23
      %p367 = scmp.lt.s32.totalorder %s22, 1
      %s368 = scalar_select %p367, %s22, 1
      %p369 = scmp.lt.s32.totalorder %s366, 1
      %s370 = scalar_select %p369, %s366, 1
      %s371 = smul.addr %s368, 32
      %s372 = sadd.s32 %s370, %s371
      %s373 = smul.addr %s372, 4
      %s374 = scalar_lea.vmem %s1, %s373
      %s375 = smul.u32 2, %s23
      %s376 = smul.u32 32, %s24
      %p377 = scmp.lt.s32.totalorder %s22, 1
      %s378 = scalar_select %p377, %s22, 1
      %p379 = scmp.lt.s32.totalorder %s376, 31
      %s380 = scalar_select %p379, %s376, 31
      %s381 = smul.addr %s378, 32
      %s382 = sadd.s32 %s380, %s381
      %s383 = smul.addr %s382, 4
      %s384 = scalar_lea.vmem %s2, %s383
      %s385 = smul.u32 32, %s24
      %s386 = smul.u32 2, %s24
      %p387 = scmp.lt.s32.totalorder %s22, 1
      %s388 = scalar_select %p387, %s22, 1
      %p389 = scmp.lt.s32.totalorder %s386, 1
      %s390 = scalar_select %p389, %s386, 1
      %s391 = smul.addr %s388, 32
      %s392 = sadd.s32 %s390, %s391
      %s393 = smul.addr %s392, 4
      %s394 = scalar_lea.vmem %s3, %s393
      %s395 = smul.u32 2, %s24
      %s396 = smul.u32 2, %s23
      %p397 = scmp.lt.s32.totalorder %s22, 1
      %s398 = scalar_select %p397, %s22, 1
      %p399 = scmp.lt.s32.totalorder %s396, 1
      %s400 = scalar_select %p399, %s396, 1
      %s401 = smul.addr %s398, 2
      %s402 = sadd.s32 %s400, %s401
      %s403 = smul.addr %s402, 4
      %s404 = scalar_lea.vmem %s6, %s403
      %s405 = smul.u32 2, %s23
      %p407 = scmp.eq.s32.totalorder %s24, 0
      // Predicated region
      $region45: #{nonlocal_block.1} parent=43 // pred_check
        %p408 = pneg %p407
      $region46: #{nonlocal_block.1} parent=43 // pred_check_branch
        %410 = sbr.rel (%p408) target = $region48
      $region47: #{nonlocal_block.1} parent=43 // pred_region
        %v411 = vlaneseq
        %vm412 = vcmp.ge.s32.totalorder %v411, 0
        %vm413 = vcmp.lt.s32.totalorder %v411, 256
        %vm414 = vmand %vm412, %vm413
        %415 = vst.msk [vmem:[#allocation2] sm:$0x3] %vm414, -inf
        %416 = vst.msk [vmem:[#allocation3] sm:$0x3] %vm414, 0.0
        %417 = vst [vmem:[#allocation4] sm:$0xff] 0.0
        %418 = vst [vmem:[#allocation4 + $0x8] sm:$0xff] 0.0
        %419 = vst [vmem:[#allocation4 + $0x10] sm:$0xff] 0.0
        %420 = vst [vmem:[#allocation4 + $0x18] sm:$0xff] 0.0
        %421 = vst [vmem:[#allocation4 + $0x20] sm:$0xff] 0.0
        %422 = vst [vmem:[#allocation4 + $0x28] sm:$0xff] 0.0
        %423 = vst [vmem:[#allocation4 + $0x30] sm:$0xff] 0.0
        %424 = vst [vmem:[#allocation4 + $0x38] sm:$0xff] 0.0
        %425 = vst [vmem:[#allocation4 + $0x40] sm:$0xff] 0.0
        %426 = vst [vmem:[#allocation4 + $0x48] sm:$0xff] 0.0
        %427 = vst [vmem:[#allocation4 + $0x50] sm:$0xff] 0.0
        %428 = vst [vmem:[#allocation4 + $0x58] sm:$0xff] 0.0
        %429 = vst [vmem:[#allocation4 + $0x60] sm:$0xff] 0.0
        %430 = vst [vmem:[#allocation4 + $0x68] sm:$0xff] 0.0
        %431 = vst [vmem:[#allocation4 + $0x70] sm:$0xff] 0.0
        %432 = vst [vmem:[#allocation4 + $0x78] sm:$0xff] 0.0
        %433 = vst [vmem:[#allocation4 + $0x80] sm:$0xff] 0.0
        %434 = vst [vmem:[#allocation4 + $0x88] sm:$0xff] 0.0
        %435 = vst [vmem:[#allocation4 + $0x90] sm:$0xff] 0.0
        %436 = vst [vmem:[#allocation4 + $0x98] sm:$0xff] 0.0
        %437 = vst [vmem:[#allocation4 + $0xa0] sm:$0xff] 0.0
        %438 = vst [vmem:[#allocation4 + $0xa8] sm:$0xff] 0.0
        %439 = vst [vmem:[#allocation4 + $0xb0] sm:$0xff] 0.0
        %440 = vst [vmem:[#allocation4 + $0xb8] sm:$0xff] 0.0
        %441 = vst [vmem:[#allocation4 + $0xc0] sm:$0xff] 0.0
        %442 = vst [vmem:[#allocation4 + $0xc8] sm:$0xff] 0.0
        %443 = vst [vmem:[#allocation4 + $0xd0] sm:$0xff] 0.0
        %444 = vst [vmem:[#allocation4 + $0xd8] sm:$0xff] 0.0
        %445 = vst [vmem:[#allocation4 + $0xe0] sm:$0xff] 0.0
        %446 = vst [vmem:[#allocation4 + $0xe8] sm:$0xff] 0.0
        %447 = vst [vmem:[#allocation4 + $0xf0] sm:$0xff] 0.0
        %448 = vst [vmem:[#allocation4 + $0xf8] sm:$0xff] 0.0
      $region48: #{nonlocal_block.1} parent=43 // pred_fallthru
        _
      %v449 = vld [vmem:[%s374] sm:$0xff]
      %v450 = vld [vmem:[%s374 + $0x8] sm:$0xff]
      %v451 = vld [vmem:[%s374 + $0x10] sm:$0xff]
      %v452 = vld [vmem:[%s374 + $0x18] sm:$0xff]
      %v453 = vld [vmem:[%s374 + $0x20] sm:$0xff]
      %v454 = vld [vmem:[%s374 + $0x28] sm:$0xff]
      %v455 = vld [vmem:[%s374 + $0x30] sm:$0xff]
      %v456 = vld [vmem:[%s374 + $0x38] sm:$0xff]
      %v457 = vld [vmem:[%s374 + $0x40] sm:$0xff]
      %v458 = vld [vmem:[%s374 + $0x48] sm:$0xff]
      %v459 = vld [vmem:[%s374 + $0x50] sm:$0xff]
      %v460 = vld [vmem:[%s374 + $0x58] sm:$0xff]
      %v461 = vld [vmem:[%s374 + $0x60] sm:$0xff]
      %v462 = vld [vmem:[%s374 + $0x68] sm:$0xff]
      %v463 = vld [vmem:[%s374 + $0x70] sm:$0xff]
      %v464 = vld [vmem:[%s374 + $0x78] sm:$0xff]
      %v465 = vld [vmem:[%s384] sm:$0xf]
      %v466 = vld [vmem:[%s384 + $0x4] sm:$0xf]
      %v467 = vld [vmem:[%s384 + $0x8] sm:$0xf]
      %v468 = vld [vmem:[%s384 + $0xc] sm:$0xf]
      %v469 = vld [vmem:[%s384 + $0x10] sm:$0xf]
      %v470 = vld [vmem:[%s384 + $0x14] sm:$0xf]
      %v471 = vld [vmem:[%s384 + $0x18] sm:$0xf]
      %v472 = vld [vmem:[%s384 + $0x1c] sm:$0xf]
      %v473 = vld [vmem:[%s384 + $0x20] sm:$0xf]
      %v474 = vld [vmem:[%s384 + $0x24] sm:$0xf]
      %v475 = vld [vmem:[%s384 + $0x28] sm:$0xf]
      %v476 = vld [vmem:[%s384 + $0x2c] sm:$0xf]
      %v477 = vld [vmem:[%s384 + $0x30] sm:$0xf]
      %v478 = vld [vmem:[%s384 + $0x34] sm:$0xf]
      %v479 = vld [vmem:[%s384 + $0x38] sm:$0xf]
      %v480 = vld [vmem:[%s384 + $0x3c] sm:$0xf]
      %v481 = vld [vmem:[%s384 + $0x40] sm:$0xf]
      %v482 = vld [vmem:[%s384 + $0x44] sm:$0xf]
      %v483 = vld [vmem:[%s384 + $0x48] sm:$0xf]
      %v484 = vld [vmem:[%s384 + $0x4c] sm:$0xf]
      %v485 = vld [vmem:[%s384 + $0x50] sm:$0xf]
      %v486 = vld [vmem:[%s384 + $0x54] sm:$0xf]
      %v487 = vld [vmem:[%s384 + $0x58] sm:$0xf]
      %v488 = vld [vmem:[%s384 + $0x5c] sm:$0xf]
      %v489 = vld [vmem:[%s384 + $0x60] sm:$0xf]
      %v490 = vld [vmem:[%s384 + $0x64] sm:$0xf]
      %v491 = vld [vmem:[%s384 + $0x68] sm:$0xf]
      %v492 = vld [vmem:[%s384 + $0x6c] sm:$0xf]
      %v493 = vld [vmem:[%s384 + $0x70] sm:$0xf]
      %v494 = vld [vmem:[%s384 + $0x74] sm:$0xf]
      %v495 = vld [vmem:[%s384 + $0x78] sm:$0xf]
      %v496 = vld [vmem:[%s384 + $0x7c] sm:$0xf]
      %v497 = vld [vmem:[%s394] sm:$0xff]
      %v498 = vld [vmem:[%s394 + $0x8] sm:$0xff]
      %v499 = vld [vmem:[%s394 + $0x10] sm:$0xff]
      %v500 = vld [vmem:[%s394 + $0x18] sm:$0xff]
      %v501 = vld [vmem:[%s394 + $0x20] sm:$0xff]
      %v502 = vld [vmem:[%s394 + $0x28] sm:$0xff]
      %v503 = vld [vmem:[%s394 + $0x30] sm:$0xff]
      %v504 = vld [vmem:[%s394 + $0x38] sm:$0xff]
      %v505 = vld [vmem:[%s394 + $0x40] sm:$0xff]
      %v506 = vld [vmem:[%s394 + $0x48] sm:$0xff]
      %v507 = vld [vmem:[%s394 + $0x50] sm:$0xff]
      %v508 = vld [vmem:[%s394 + $0x58] sm:$0xff]
      %v509 = vld [vmem:[%s394 + $0x60] sm:$0xff]
      %v510 = vld [vmem:[%s394 + $0x68] sm:$0xff]
      %v511 = vld [vmem:[%s394 + $0x70] sm:$0xff]
      %v512 = vld [vmem:[%s394 + $0x78] sm:$0xff]
      %v545 = vunpack.c.l.b16 %v465
      %v546 = vunpack.c.l.b16 %v466
      %v547 = vunpack.c.l.b16 %v467
      %v548 = vunpack.c.l.b16 %v468
      %v549 = vunpack.c.l.b16 %v469
      %v550 = vunpack.c.l.b16 %v470
      %v551 = vunpack.c.l.b16 %v471
      %v552 = vunpack.c.l.b16 %v472
      %v553 = vunpack.c.l.b16 %v473
      %v554 = vunpack.c.l.b16 %v474
      %v555 = vunpack.c.l.b16 %v475
      %v556 = vunpack.c.l.b16 %v476
      %v557 = vunpack.c.l.b16 %v477
      %v558 = vunpack.c.l.b16 %v478
      %v559 = vunpack.c.l.b16 %v479
      %v560 = vunpack.c.l.b16 %v480
      %v561 = vunpack.c.l.b16 %v481
      %v562 = vunpack.c.l.b16 %v482
      %v563 = vunpack.c.l.b16 %v483
      %v564 = vunpack.c.l.b16 %v484
      %v565 = vunpack.c.l.b16 %v485
      %v566 = vunpack.c.l.b16 %v486
      %v567 = vunpack.c.l.b16 %v487
      %v568 = vunpack.c.l.b16 %v488
      %v569 = vunpack.c.l.b16 %v489
      %v570 = vunpack.c.l.b16 %v490
      %v571 = vunpack.c.l.b16 %v491
      %v572 = vunpack.c.l.b16 %v492
      %v573 = vunpack.c.l.b16 %v493
      %v574 = vunpack.c.l.b16 %v494
      %v575 = vunpack.c.l.b16 %v495
      %v576 = vunpack.c.l.b16 %v496
      %v577 = vpack.c.b16 %v546, %v545
      %v578 = vpack.c.b16 %v548, %v547
      %v579 = vpack.c.b16 %v550, %v549
      %v580 = vpack.c.b16 %v552, %v551
      %v581 = vpack.c.b16 %v554, %v553
      %v582 = vpack.c.b16 %v556, %v555
      %v583 = vpack.c.b16 %v558, %v557
      %v584 = vpack.c.b16 %v560, %v559
      %v585 = vpack.c.b16 %v562, %v561
      %v586 = vpack.c.b16 %v564, %v563
      %v587 = vpack.c.b16 %v566, %v565
      %v588 = vpack.c.b16 %v568, %v567
      %v589 = vpack.c.b16 %v570, %v569
      %v590 = vpack.c.b16 %v572, %v571
      %v591 = vpack.c.b16 %v574, %v573
      %v592 = vpack.c.b16 %v576, %v575
      %v625 = vunpack.c.l.b16 %v449
      %v626 = vunpack.c.h.b16 %v449
      %v627 = vunpack.c.l.b16 %v450
      %v628 = vunpack.c.h.b16 %v450
      %v629 = vunpack.c.l.b16 %v451
      %v630 = vunpack.c.h.b16 %v451
      %v631 = vunpack.c.l.b16 %v452
      %v632 = vunpack.c.h.b16 %v452
      %v633 = vunpack.c.l.b16 %v453
      %v634 = vunpack.c.h.b16 %v453
      %v635 = vunpack.c.l.b16 %v454
      %v636 = vunpack.c.h.b16 %v454
      %v637 = vunpack.c.l.b16 %v455
      %v638 = vunpack.c.h.b16 %v455
      %v639 = vunpack.c.l.b16 %v456
      %v640 = vunpack.c.h.b16 %v456
      %v641 = vunpack.c.l.b16 %v457
      %v642 = vunpack.c.h.b16 %v457
      %v643 = vunpack.c.l.b16 %v458
      %v644 = vunpack.c.h.b16 %v458
      %v645 = vunpack.c.l.b16 %v459
      %v646 = vunpack.c.h.b16 %v459
      %v647 = vunpack.c.l.b16 %v460
      %v648 = vunpack.c.h.b16 %v460
      %v649 = vunpack.c.l.b16 %v461
      %v650 = vunpack.c.h.b16 %v461
      %v651 = vunpack.c.l.b16 %v462
      %v652 = vunpack.c.h.b16 %v462
      %v653 = vunpack.c.l.b16 %v463
      %v654 = vunpack.c.h.b16 %v463
      %v655 = vunpack.c.l.b16 %v464
      %v656 = vunpack.c.h.b16 %v464
      %v657 = vpack.c.b16 %v627, %v625
      %v658 = vpack.c.b16 %v628, %v626
      %v659 = vpack.c.b16 %v631, %v629
      %v660 = vpack.c.b16 %v632, %v630
      %v661 = vpack.c.b16 %v635, %v633
      %v662 = vpack.c.b16 %v636, %v634
      %v663 = vpack.c.b16 %v639, %v637
      %v664 = vpack.c.b16 %v640, %v638
      %v665 = vpack.c.b16 %v643, %v641
      %v666 = vpack.c.b16 %v644, %v642
      %v667 = vpack.c.b16 %v647, %v645
      %v668 = vpack.c.b16 %v648, %v646
      %v669 = vpack.c.b16 %v651, %v649
      %v670 = vpack.c.b16 %v652, %v650
      %v671 = vpack.c.b16 %v655, %v653
      %v672 = vpack.c.b16 %v656, %v654
      %689 = vmatprep.subr.bf16.mxu0 %v658
      %690 = vmatpush1.bf16.msra.mxu0 %v657
      %691 = vmatprep.subr.bf16.mxu0 %v660
      %692 = vmatpush1.bf16.msra.mxu0 %v659
      %693 = vmatprep.subr.bf16.mxu0 %v662
      %694 = vmatpush1.bf16.msra.mxu0 %v661
      %695 = vmatprep.subr.bf16.mxu0 %v664
      %696 = vmatpush1.bf16.msra.mxu0 %v663
      %697 = vmatprep.subr.bf16.mxu0 %v666
      %698 = vmatpush1.bf16.msra.mxu0 %v665
      %699 = vmatprep.subr.bf16.mxu0 %v668
      %700 = vmatpush1.bf16.msra.mxu0 %v667
      %701 = vmatprep.subr.bf16.mxu0 %v670
      %702 = vmatpush1.bf16.msra.mxu0 %v669
      %703 = vmatprep.subr.bf16.mxu0 %v672
      %704 = vmatpush1.bf16.msra.mxu0 %v671
      %705 = vmatprep.subr.bf16.mxu0 0
      %706 = vmatpush1.bf16.msra.mxu0 0
      %707 = vmatprep.subr.bf16.mxu0 0
      %708 = vmatpush1.bf16.msra.mxu0 0
      %709 = vmatprep.subr.bf16.mxu0 0
      %710 = vmatpush1.bf16.msra.mxu0 0
      %711 = vmatprep.subr.bf16.mxu0 0
      %712 = vmatpush1.bf16.msra.mxu0 0
      %713 = vmatprep.subr.bf16.mxu0 0
      %714 = vmatpush1.bf16.msra.mxu0 0
      %715 = vmatprep.subr.bf16.mxu0 0
      %716 = vmatpush1.bf16.msra.mxu0 0
      %717 = vmatprep.subr.bf16.mxu0 0
      %718 = vmatpush1.bf16.msra.mxu0 0
      %719 = vmatprep.subr.bf16.mxu0 0
      %720 = vmatpush1.bf16.msra.mxu0 0
      %721 = vmatprep.mubr.bf16.mxu0 0
      %722 = vmatmul.mubr.bf16.gmra.mrb[0].mxu0 %v577
      %v723 = vpop.f32.mrb[0].mxu0
      %v724 = vadd.f32 0.0, %v723
      %v725 = vpop.f32.mrb[0].mxu0
      %v726 = vadd.f32 0.0, %v725
      %v727 = vpop.f32.mrb[0].mxu0
      %v728 = vadd.f32 0.0, %v727
      %v729 = vpop.f32.mrb[0].mxu0
      %v730 = vadd.f32 0.0, %v729
      %731 = vmatprep.mubr.bf16.mxu0 0
      %732 = vmatmul.mubr.bf16.gmra.mrb[0].mxu0 %v578
      %v733 = vpop.f32.mrb[0].mxu0
      %v734 = vadd.f32 0.0, %v733
      %v735 = vpop.f32.mrb[0].mxu0
      %v736 = vadd.f32 0.0, %v735
      %v737 = vpop.f32.mrb[0].mxu0
      %v738 = vadd.f32 0.0, %v737
      %v739 = vpop.f32.mrb[0].mxu0
      %v740 = vadd.f32 0.0, %v739
      %741 = vmatprep.mubr.bf16.mxu0 0
      %742 = vmatmul.mubr.bf16.gmra.mrb[0].mxu0 %v579
      %v743 = vpop.f32.mrb[0].mxu0
      %v744 = vadd.f32 0.0, %v743
      %v745 = vpop.f32.mrb[0].mxu0
      %v746 = vadd.f32 0.0, %v745
      %v747 = vpop.f32.mrb[0].mxu0
      %v748 = vadd.f32 0.0, %v747
      %v749 = vpop.f32.mrb[0].mxu0
      %v750 = vadd.f32 0.0, %v749
      %751 = vmatprep.mubr.bf16.mxu0 0
      %752 = vmatmul.mubr.bf16.gmra.mrb[0].mxu0 %v580
      %v753 = vpop.f32.mrb[0].mxu0
      %v754 = vadd.f32 0.0, %v753
      %v755 = vpop.f32.mrb[0].mxu0
      %v756 = vadd.f32 0.0, %v755
      %v757 = vpop.f32.mrb[0].mxu0
      %v758 = vadd.f32 0.0, %v757
      %v759 = vpop.f32.mrb[0].mxu0
      %v760 = vadd.f32 0.0, %v759
      %761 = vmatprep.mubr.bf16.mxu0 0
      %762 = vmatmul.mubr.bf16.gmra.mrb[0].mxu0 %v581
      %v763 = vpop.f32.mrb[0].mxu0
      %v764 = vadd.f32 0.0, %v763
      %v765 = vpop.f32.mrb[0].mxu0
      %v766 = vadd.f32 0.0, %v765
      %v767 = vpop.f32.mrb[0].mxu0
      %v768 = vadd.f32 0.0, %v767
      %v769 = vpop.f32.mrb[0].mxu0
      %v770 = vadd.f32 0.0, %v769
      %771 = vmatprep.mubr.bf16.mxu0 0
      %772 = vmatmul.mubr.bf16.gmra.mrb[0].mxu0 %v582
      %v773 = vpop.f32.mrb[0].mxu0
      %v774 = vadd.f32 0.0, %v773
      %v775 = vpop.f32.mrb[0].mxu0
      %v776 = vadd.f32 0.0, %v775
      %v777 = vpop.f32.mrb[0].mxu0
      %v778 = vadd.f32 0.0, %v777
      %v779 = vpop.f32.mrb[0].mxu0
      %v780 = vadd.f32 0.0, %v779
      %781 = vmatprep.mubr.bf16.mxu0 0
      %782 = vmatmul.mubr.bf16.gmra.mrb[0].mxu0 %v583
      %v783 = vpop.f32.mrb[0].mxu0
      %v784 = vadd.f32 0.0, %v783
      %v785 = vpop.f32.mrb[0].mxu0
      %v786 = vadd.f32 0.0, %v785
      %v787 = vpop.f32.mrb[0].mxu0
      %v788 = vadd.f32 0.0, %v787
      %v789 = vpop.f32.mrb[0].mxu0
      %v790 = vadd.f32 0.0, %v789
      %791 = vmatprep.mubr.bf16.mxu0 0
      %792 = vmatmul.mubr.bf16.gmra.mrb[0].mxu0 %v584
      %v793 = vpop.f32.mrb[0].mxu0
      %v794 = vadd.f32 0.0, %v793
      %v795 = vpop.f32.mrb[0].mxu0
      %v796 = vadd.f32 0.0, %v795
      %v797 = vpop.f32.mrb[0].mxu0
      %v798 = vadd.f32 0.0, %v797
      %v799 = vpop.f32.mrb[0].mxu0
      %v800 = vadd.f32 0.0, %v799
      %801 = vmatprep.mubr.bf16.mxu0 0
      %802 = vmatmul.mubr.bf16.gmra.mrb[0].mxu0 %v585
      %v803 = vpop.f32.mrb[0].mxu0
      %v804 = vadd.f32 0.0, %v803
      %v805 = vpop.f32.mrb[0].mxu0
      %v806 = vadd.f32 0.0, %v805
      %v807 = vpop.f32.mrb[0].mxu0
      %v808 = vadd.f32 0.0, %v807
      %v809 = vpop.f32.mrb[0].mxu0
      %v810 = vadd.f32 0.0, %v809
      %811 = vmatprep.mubr.bf16.mxu0 0
      %812 = vmatmul.mubr.bf16.gmra.mrb[0].mxu0 %v586
      %v813 = vpop.f32.mrb[0].mxu0
      %v814 = vadd.f32 0.0, %v813
      %v815 = vpop.f32.mrb[0].mxu0
      %v816 = vadd.f32 0.0, %v815
      %v817 = vpop.f32.mrb[0].mxu0
      %v818 = vadd.f32 0.0, %v817
      %v819 = vpop.f32.mrb[0].mxu0
      %v820 = vadd.f32 0.0, %v819
      %821 = vmatprep.mubr.bf16.mxu0 0
      %822 = vmatmul.mubr.bf16.gmra.mrb[0].mxu0 %v587
      %v823 = vpop.f32.mrb[0].mxu0
      %v824 = vadd.f32 0.0, %v823
      %v825 = vpop.f32.mrb[0].mxu0
      %v826 = vadd.f32 0.0, %v825
      %v827 = vpop.f32.mrb[0].mxu0
      %v828 = vadd.f32 0.0, %v827
      %v829 = vpop.f32.mrb[0].mxu0
      %v830 = vadd.f32 0.0, %v829
      %831 = vmatprep.mubr.bf16.mxu0 0
      %832 = vmatmul.mubr.bf16.gmra.mrb[0].mxu0 %v588
      %v833 = vpop.f32.mrb[0].mxu0
      %v834 = vadd.f32 0.0, %v833
      %v835 = vpop.f32.mrb[0].mxu0
      %v836 = vadd.f32 0.0, %v835
      %v837 = vpop.f32.mrb[0].mxu0
      %v838 = vadd.f32 0.0, %v837
      %v839 = vpop.f32.mrb[0].mxu0
      %v840 = vadd.f32 0.0, %v839
      %841 = vmatprep.mubr.bf16.mxu0 0
      %842 = vmatmul.mubr.bf16.gmra.mrb[0].mxu0 %v589
      %v843 = vpop.f32.mrb[0].mxu0
      %v844 = vadd.f32 0.0, %v843
      %v845 = vpop.f32.mrb[0].mxu0
      %v846 = vadd.f32 0.0, %v845
      %v847 = vpop.f32.mrb[0].mxu0
      %v848 = vadd.f32 0.0, %v847
      %v849 = vpop.f32.mrb[0].mxu0
      %v850 = vadd.f32 0.0, %v849
      %851 = vmatprep.mubr.bf16.mxu0 0
      %852 = vmatmul.mubr.bf16.gmra.mrb[0].mxu0 %v590
      %v853 = vpop.f32.mrb[0].mxu0
      %v854 = vadd.f32 0.0, %v853
      %v855 = vpop.f32.mrb[0].mxu0
      %v856 = vadd.f32 0.0, %v855
      %v857 = vpop.f32.mrb[0].mxu0
      %v858 = vadd.f32 0.0, %v857
      %v859 = vpop.f32.mrb[0].mxu0
      %v860 = vadd.f32 0.0, %v859
      %861 = vmatprep.mubr.bf16.mxu0 0
      %862 = vmatmul.mubr.bf16.gmra.mrb[0].mxu0 %v591
      %v863 = vpop.f32.mrb[0].mxu0
      %v864 = vadd.f32 0.0, %v863
      %v865 = vpop.f32.mrb[0].mxu0
      %v866 = vadd.f32 0.0, %v865
      %v867 = vpop.f32.mrb[0].mxu0
      %v868 = vadd.f32 0.0, %v867
      %v869 = vpop.f32.mrb[0].mxu0
      %v870 = vadd.f32 0.0, %v869
      %871 = vmatprep.mubr.bf16.mxu0 0
      %872 = vmatmul.mubr.bf16.gmra.mrb[0].mxu0 %v592
      %v873 = vpop.f32.mrb[0].mxu0
      %v874 = vadd.f32 0.0, %v873
      %v875 = vpop.f32.mrb[0].mxu0
      %v876 = vadd.f32 0.0, %v875
      %v877 = vpop.f32.mrb[0].mxu0
      %v878 = vadd.f32 0.0, %v877
      %v879 = vpop.f32.mrb[0].mxu0
      %v880 = vadd.f32 0.0, %v879
      %881 = vdwg.mxu0
      %v882 = vld [vmem:[#allocation2] sm:$0x3]
      %v883 = vmax.f32 %v724, %v734
      %v884 = vmax.f32 %v728, %v738
      %v885 = vmax.f32 %v883, %v744
      %v886 = vmax.f32 %v884, %v748
      %v887 = vmax.f32 %v885, %v754
      %v888 = vmax.f32 %v886, %v758
      %v889 = vmax.f32 %v887, %v764
      %v890 = vmax.f32 %v888, %v768
      %v891 = vmax.f32 %v889, %v774
      %v892 = vmax.f32 %v890, %v778
      %v893 = vmax.f32 %v891, %v784
      %v894 = vmax.f32 %v892, %v788
      %v895 = vmax.f32 %v893, %v794
      %v896 = vmax.f32 %v894, %v798
      %v897 = vmax.f32 %v895, %v804
      %v898 = vmax.f32 %v896, %v808
      %v899 = vmax.f32 %v897, %v814
      %v900 = vmax.f32 %v898, %v818
      %v901 = vmax.f32 %v899, %v824
      %v902 = vmax.f32 %v900, %v828
      %v903 = vmax.f32 %v901, %v834
      %v904 = vmax.f32 %v902, %v838
      %v905 = vmax.f32 %v903, %v844
      %v906 = vmax.f32 %v904, %v848
      %v907 = vmax.f32 %v905, %v854
      %v908 = vmax.f32 %v906, %v858
      %v909 = vmax.f32 %v907, %v864
      %v910 = vmax.f32 %v908, %v868
      %v911 = vmax.f32 %v909, %v874
      %v912 = vmax.f32 %v910, %v878
      %v913 = vmax.f32 %v911, %v912
      %v914 = vrot.slane %v913, 4
      %v915 = vmax.f32 %v913, %v914
      %v916 = vrot.slane %v915, 2
      %v917 = vmax.f32 %v915, %v916
      %v918 = vrot.slane %v917, 1
      %v919 = vmax.f32 %v917, %v918
      %v920 = vmax.f32 %v726, %v736
      %v921 = vmax.f32 %v730, %v740
      %v922 = vmax.f32 %v920, %v746
      %v923 = vmax.f32 %v921, %v750
      %v924 = vmax.f32 %v922, %v756
      %v925 = vmax.f32 %v923, %v760
      %v926 = vmax.f32 %v924, %v766
      %v927 = vmax.f32 %v925, %v770
      %v928 = vmax.f32 %v926, %v776
      %v929 = vmax.f32 %v927, %v780
      %v930 = vmax.f32 %v928, %v786
      %v931 = vmax.f32 %v929, %v790
      %v932 = vmax.f32 %v930, %v796
      %v933 = vmax.f32 %v931, %v800
      %v934 = vmax.f32 %v932, %v806
      %v935 = vmax.f32 %v933, %v810
      %v936 = vmax.f32 %v934, %v816
      %v937 = vmax.f32 %v935, %v820
      %v938 = vmax.f32 %v936, %v826
      %v939 = vmax.f32 %v937, %v830
      %v940 = vmax.f32 %v938, %v836
      %v941 = vmax.f32 %v939, %v840
      %v942 = vmax.f32 %v940, %v846
      %v943 = vmax.f32 %v941, %v850
      %v944 = vmax.f32 %v942, %v856
      %v945 = vmax.f32 %v943, %v860
      %v946 = vmax.f32 %v944, %v866
      %v947 = vmax.f32 %v945, %v870
      %v948 = vmax.f32 %v946, %v876
      %v949 = vmax.f32 %v947, %v880
      %v950 = vmax.f32 %v948, %v949
      %v951 = vrot.slane %v950, 4
      %v952 = vmax.f32 %v950, %v951
      %v953 = vrot.slane %v952, 2
      %v954 = vmax.f32 %v952, %v953
      %v955 = vrot.slane %v954, 1
      %v956 = vmax.f32 %v954, %v955
      %v959 = vcombine.low %v919, %v956
      %v961 = vunpack.c.l.s4 1966171168
      %v962 = vunpack.c.0.s8 %v961
      %v963 = vlaneseq
      %v964 = vshrl.u32 %v963, 7
      %v965 = vsub.s32 %v962, %v964
      %v966 = vrot.slane %v959, %v965
      %v968 = vunpack.c.l.s4 1966171168
      %v969 = vunpack.c.0.s8 %v968
      %v970 = vlaneseq
      %v971 = vshrl.u32 %v970, 7
      %v972 = vsub.s32 %v969, %v971
      %v973 = vrot.slane %v966, %v972
      %v975 = vmax.f32 %v882, %v973
      %v976 = vsub.f32 %v882, %v975
      %v977 = vmul.f32 %v976, 1.442695
      %v978 = vpow.pop %v977
      %v980 = vlaneseq
      %v981 = vshrl.u32 %v980, 7
      %v982 = vsub.s32 0, %v981
      %v983 = vrot.slane %v975, %v982
      %v984 = vlaneseq
      %v985 = vshrl.u32 %v984, 7
      %v986 = vsub.s32 1, %v985
      %v987 = vrot.slane %v975, %v986
      %v990 = vsub.f32 %v724, %v983
      %v991 = vsub.f32 %v726, %v987
      %v992 = vsub.f32 %v728, %v983
      %v993 = vsub.f32 %v730, %v987
      %v994 = vsub.f32 %v734, %v983
      %v995 = vsub.f32 %v736, %v987
      %v996 = vsub.f32 %v738, %v983
      %v997 = vsub.f32 %v740, %v987
      %v998 = vsub.f32 %v744, %v983
      %v999 = vsub.f32 %v746, %v987
      %v1000 = vsub.f32 %v748, %v983
      %v1001 = vsub.f32 %v750, %v987
      %v1002 = vsub.f32 %v754, %v983
      %v1003 = vsub.f32 %v756, %v987
      %v1004 = vsub.f32 %v758, %v983
      %v1005 = vsub.f32 %v760, %v987
      %v1006 = vsub.f32 %v764, %v983
      %v1007 = vsub.f32 %v766, %v987
      %v1008 = vsub.f32 %v768, %v983
      %v1009 = vsub.f32 %v770, %v987
      %v1010 = vsub.f32 %v774, %v983
      %v1011 = vsub.f32 %v776, %v987
      %v1012 = vsub.f32 %v778, %v983
      %v1013 = vsub.f32 %v780, %v987
      %v1014 = vsub.f32 %v784, %v983
      %v1015 = vsub.f32 %v786, %v987
      %v1016 = vsub.f32 %v788, %v983
      %v1017 = vsub.f32 %v790, %v987
      %v1018 = vsub.f32 %v794, %v983
      %v1019 = vsub.f32 %v796, %v987
      %v1020 = vsub.f32 %v798, %v983
      %v1021 = vsub.f32 %v800, %v987
      %v1022 = vsub.f32 %v804, %v983
      %v1023 = vsub.f32 %v806, %v987
      %v1024 = vsub.f32 %v808, %v983
      %v1025 = vsub.f32 %v810, %v987
      %v1026 = vsub.f32 %v814, %v983
      %v1027 = vsub.f32 %v816, %v987
      %v1028 = vsub.f32 %v818, %v983
      %v1029 = vsub.f32 %v820, %v987
      %v1030 = vsub.f32 %v824, %v983
      %v1031 = vsub.f32 %v826, %v987
      %v1032 = vsub.f32 %v828, %v983
      %v1033 = vsub.f32 %v830, %v987
      %v1034 = vsub.f32 %v834, %v983
      %v1035 = vsub.f32 %v836, %v987
      %v1036 = vsub.f32 %v838, %v983
      %v1037 = vsub.f32 %v840, %v987
      %v1038 = vsub.f32 %v844, %v983
      %v1039 = vsub.f32 %v846, %v987
      %v1040 = vsub.f32 %v848, %v983
      %v1041 = vsub.f32 %v850, %v987
      %v1042 = vsub.f32 %v854, %v983
      %v1043 = vsub.f32 %v856, %v987
      %v1044 = vsub.f32 %v858, %v983
      %v1045 = vsub.f32 %v860, %v987
      %v1046 = vsub.f32 %v864, %v983
      %v1047 = vsub.f32 %v866, %v987
      %v1048 = vsub.f32 %v868, %v983
      %v1049 = vsub.f32 %v870, %v987
      %v1050 = vsub.f32 %v874, %v983
      %v1051 = vsub.f32 %v876, %v987
      %v1052 = vsub.f32 %v878, %v983
      %v1053 = vsub.f32 %v880, %v987
      %v1054 = vmul.f32 %v990, 1.442695
      %v1055 = vpow.pop %v1054
      %v1056 = vmul.f32 %v991, 1.442695
      %v1057 = vpow.pop %v1056
      %v1058 = vmul.f32 %v992, 1.442695
      %v1059 = vpow.pop %v1058
      %v1060 = vmul.f32 %v993, 1.442695
      %v1061 = vpow.pop %v1060
      %v1062 = vmul.f32 %v994, 1.442695
      %v1063 = vpow.pop %v1062
      %v1064 = vmul.f32 %v995, 1.442695
      %v1065 = vpow.pop %v1064
      %v1066 = vmul.f32 %v996, 1.442695
      %v1067 = vpow.pop %v1066
      %v1068 = vmul.f32 %v997, 1.442695
      %v1069 = vpow.pop %v1068
      %v1070 = vmul.f32 %v998, 1.442695
      %v1071 = vpow.pop %v1070
      %v1072 = vmul.f32 %v999, 1.442695
      %v1073 = vpow.pop %v1072
      %v1074 = vmul.f32 %v1000, 1.442695
      %v1075 = vpow.pop %v1074
      %v1076 = vmul.f32 %v1001, 1.442695
      %v1077 = vpow.pop %v1076
      %v1078 = vmul.f32 %v1002, 1.442695
      %v1079 = vpow.pop %v1078
      %v1080 = vmul.f32 %v1003, 1.442695
      %v1081 = vpow.pop %v1080
      %v1082 = vmul.f32 %v1004, 1.442695
      %v1083 = vpow.pop %v1082
      %v1084 = vmul.f32 %v1005, 1.442695
      %v1085 = vpow.pop %v1084
      %v1086 = vmul.f32 %v1006, 1.442695
      %v1087 = vpow.pop %v1086
      %v1088 = vmul.f32 %v1007, 1.442695
      %v1089 = vpow.pop %v1088
      %v1090 = vmul.f32 %v1008, 1.442695
      %v1091 = vpow.pop %v1090
      %v1092 = vmul.f32 %v1009, 1.442695
      %v1093 = vpow.pop %v1092
      %v1094 = vmul.f32 %v1010, 1.442695
      %v1095 = vpow.pop %v1094
      %v1096 = vmul.f32 %v1011, 1.442695
      %v1097 = vpow.pop %v1096
      %v1098 = vmul.f32 %v1012, 1.442695
      %v1099 = vpow.pop %v1098
      %v1100 = vmul.f32 %v1013, 1.442695
      %v1101 = vpow.pop %v1100
      %v1102 = vmul.f32 %v1014, 1.442695
      %v1103 = vpow.pop %v1102
      %v1104 = vmul.f32 %v1015, 1.442695
      %v1105 = vpow.pop %v1104
      %v1106 = vmul.f32 %v1016, 1.442695
      %v1107 = vpow.pop %v1106
      %v1108 = vmul.f32 %v1017, 1.442695
      %v1109 = vpow.pop %v1108
      %v1110 = vmul.f32 %v1018, 1.442695
      %v1111 = vpow.pop %v1110
      %v1112 = vmul.f32 %v1019, 1.442695
      %v1113 = vpow.pop %v1112
      %v1114 = vmul.f32 %v1020, 1.442695
      %v1115 = vpow.pop %v1114
      %v1116 = vmul.f32 %v1021, 1.442695
      %v1117 = vpow.pop %v1116
      %v1118 = vmul.f32 %v1022, 1.442695
      %v1119 = vpow.pop %v1118
      %v1120 = vmul.f32 %v1023, 1.442695
      %v1121 = vpow.pop %v1120
      %v1122 = vmul.f32 %v1024, 1.442695
      %v1123 = vpow.pop %v1122
      %v1124 = vmul.f32 %v1025, 1.442695
      %v1125 = vpow.pop %v1124
      %v1126 = vmul.f32 %v1026, 1.442695
      %v1127 = vpow.pop %v1126
      %v1128 = vmul.f32 %v1027, 1.442695
      %v1129 = vpow.pop %v1128
      %v1130 = vmul.f32 %v1028, 1.442695
      %v1131 = vpow.pop %v1130
      %v1132 = vmul.f32 %v1029, 1.442695
      %v1133 = vpow.pop %v1132
      %v1134 = vmul.f32 %v1030, 1.442695
      %v1135 = vpow.pop %v1134
      %v1136 = vmul.f32 %v1031, 1.442695
      %v1137 = vpow.pop %v1136
      %v1138 = vmul.f32 %v1032, 1.442695
      %v1139 = vpow.pop %v1138
      %v1140 = vmul.f32 %v1033, 1.442695
      %v1141 = vpow.pop %v1140
      %v1142 = vmul.f32 %v1034, 1.442695
      %v1143 = vpow.pop %v1142
      %v1144 = vmul.f32 %v1035, 1.442695
      %v1145 = vpow.pop %v1144
      %v1146 = vmul.f32 %v1036, 1.442695
      %v1147 = vpow.pop %v1146
      %v1148 = vmul.f32 %v1037, 1.442695
      %v1149 = vpow.pop %v1148
      %v1150 = vmul.f32 %v1038, 1.442695
      %v1151 = vpow.pop %v1150
      %v1152 = vmul.f32 %v1039, 1.442695
      %v1153 = vpow.pop %v1152
      %v1154 = vmul.f32 %v1040, 1.442695
      %v1155 = vpow.pop %v1154
      %v1156 = vmul.f32 %v1041, 1.442695
      %v1157 = vpow.pop %v1156
      %v1158 = vmul.f32 %v1042, 1.442695
      %v1159 = vpow.pop %v1158
      %v1160 = vmul.f32 %v1043, 1.442695
      %v1161 = vpow.pop %v1160
      %v1162 = vmul.f32 %v1044, 1.442695
      %v1163 = vpow.pop %v1162
      %v1164 = vmul.f32 %v1045, 1.442695
      %v1165 = vpow.pop %v1164
      %v1166 = vmul.f32 %v1046, 1.442695
      %v1167 = vpow.pop %v1166
      %v1168 = vmul.f32 %v1047, 1.442695
      %v1169 = vpow.pop %v1168
      %v1170 = vmul.f32 %v1048, 1.442695
      %v1171 = vpow.pop %v1170
      %v1172 = vmul.f32 %v1049, 1.442695
      %v1173 = vpow.pop %v1172
      %v1174 = vmul.f32 %v1050, 1.442695
      %v1175 = vpow.pop %v1174
      %v1176 = vmul.f32 %v1051, 1.442695
      %v1177 = vpow.pop %v1176
      %v1178 = vmul.f32 %v1052, 1.442695
      %v1179 = vpow.pop %v1178
      %v1180 = vmul.f32 %v1053, 1.442695
      %v1181 = vpow.pop %v1180
      %v1182 = vld [vmem:[#allocation3] sm:$0x3]
      %v1183 = vmul.f32 %v978, %v1182
      %v1184 = vadd.f32 %v1055, %v1059
      %v1185 = vadd.f32 %v1184, %v1063
      %v1186 = vadd.f32 %v1185, %v1067
      %v1187 = vadd.f32 %v1186, %v1071
      %v1188 = vadd.f32 %v1187, %v1075
      %v1189 = vadd.f32 %v1188, %v1079
      %v1190 = vadd.f32 %v1189, %v1083
      %v1191 = vadd.f32 %v1190, %v1087
      %v1192 = vadd.f32 %v1191, %v1091
      %v1193 = vadd.f32 %v1192, %v1095
      %v1194 = vadd.f32 %v1193, %v1099
      %v1195 = vadd.f32 %v1194, %v1103
      %v1196 = vadd.f32 %v1195, %v1107
      %v1197 = vadd.f32 %v1196, %v1111
      %v1198 = vadd.f32 %v1197, %v1115
      %v1199 = vadd.f32 %v1198, %v1119
      %v1200 = vadd.f32 %v1199, %v1123
      %v1201 = vadd.f32 %v1200, %v1127
      %v1202 = vadd.f32 %v1201, %v1131
      %v1203 = vadd.f32 %v1202, %v1135
      %v1204 = vadd.f32 %v1203, %v1139
      %v1205 = vadd.f32 %v1204, %v1143
      %v1206 = vadd.f32 %v1205, %v1147
      %v1207 = vadd.f32 %v1206, %v1151
      %v1208 = vadd.f32 %v1207, %v1155
      %v1209 = vadd.f32 %v1208, %v1159
      %v1210 = vadd.f32 %v1209, %v1163
      %v1211 = vadd.f32 %v1210, %v1167
      %v1212 = vadd.f32 %v1211, %v1171
      %v1213 = vadd.f32 %v1212, %v1175
      %v1214 = vadd.f32 %v1213, %v1179
      %v1215 = vrot.slane %v1214, 4
      %v1216 = vadd.f32 %v1214, %v1215
      %v1217 = vrot.slane %v1216, 2
      %v1218 = vadd.f32 %v1216, %v1217
      %v1219 = vrot.slane %v1218, 1
      %v1220 = vadd.f32 %v1218, %v1219
      %v1221 = vadd.f32 %v1057, %v1061
      %v1222 = vadd.f32 %v1221, %v1065
      %v1223 = vadd.f32 %v1222, %v1069
      %v1224 = vadd.f32 %v1223, %v1073
      %v1225 = vadd.f32 %v1224, %v1077
      %v1226 = vadd.f32 %v1225, %v1081
      %v1227 = vadd.f32 %v1226, %v1085
      %v1228 = vadd.f32 %v1227, %v1089
      %v1229 = vadd.f32 %v1228, %v1093
      %v1230 = vadd.f32 %v1229, %v1097
      %v1231 = vadd.f32 %v1230, %v1101
      %v1232 = vadd.f32 %v1231, %v1105
      %v1233 = vadd.f32 %v1232, %v1109
      %v1234 = vadd.f32 %v1233, %v1113
      %v1235 = vadd.f32 %v1234, %v1117
      %v1236 = vadd.f32 %v1235, %v1121
      %v1237 = vadd.f32 %v1236, %v1125
      %v1238 = vadd.f32 %v1237, %v1129
      %v1239 = vadd.f32 %v1238, %v1133
      %v1240 = vadd.f32 %v1239, %v1137
      %v1241 = vadd.f32 %v1240, %v1141
      %v1242 = vadd.f32 %v1241, %v1145
      %v1243 = vadd.f32 %v1242, %v1149
      %v1244 = vadd.f32 %v1243, %v1153
      %v1245 = vadd.f32 %v1244, %v1157
      %v1246 = vadd.f32 %v1245, %v1161
      %v1247 = vadd.f32 %v1246, %v1165
      %v1248 = vadd.f32 %v1247, %v1169
      %v1249 = vadd.f32 %v1248, %v1173
      %v1250 = vadd.f32 %v1249, %v1177
      %v1251 = vadd.f32 %v1250, %v1181
      %v1252 = vrot.slane %v1251, 4
      %v1253 = vadd.f32 %v1251, %v1252
      %v1254 = vrot.slane %v1253, 2
      %v1255 = vadd.f32 %v1253, %v1254
      %v1256 = vrot.slane %v1255, 1
      %v1257 = vadd.f32 %v1255, %v1256
      %v1260 = vcombine.low %v1220, %v1257
      %v1262 = vunpack.c.l.s4 1966171168
      %v1263 = vunpack.c.0.s8 %v1262
      %v1264 = vlaneseq
      %v1265 = vshrl.u32 %v1264, 7
      %v1266 = vsub.s32 %v1263, %v1265
      %v1267 = vrot.slane %v1260, %v1266
      %v1269 = vunpack.c.l.s4 1966171168
      %v1270 = vunpack.c.0.s8 %v1269
      %v1271 = vlaneseq
      %v1272 = vshrl.u32 %v1271, 7
      %v1273 = vsub.s32 %v1270, %v1272
      %v1274 = vrot.slane %v1267, %v1273
      %v1276 = vadd.f32 %v1183, %v1274
      %v1277 = vlaneseq
      %vm1278 = vcmp.ge.s32.totalorder %v1277, 0
      %vm1279 = vcmp.lt.s32.totalorder %v1277, 256
      %vm1280 = vmand %vm1278, %vm1279
      %1281 = vst.msk [vmem:[#allocation3] sm:$0x3] %vm1280, %v1276
      %v1282 = vld [vmem:[#allocation4] sm:$0xff]
      %v1283 = vld [vmem:[#allocation4 + $0x8] sm:$0xff]
      %v1284 = vld [vmem:[#allocation4 + $0x10] sm:$0xff]
      %v1285 = vld [vmem:[#allocation4 + $0x18] sm:$0xff]
      %v1286 = vld [vmem:[#allocation4 + $0x20] sm:$0xff]
      %v1287 = vld [vmem:[#allocation4 + $0x28] sm:$0xff]
      %v1288 = vld [vmem:[#allocation4 + $0x30] sm:$0xff]
      %v1289 = vld [vmem:[#allocation4 + $0x38] sm:$0xff]
      %v1290 = vld [vmem:[#allocation4 + $0x40] sm:$0xff]
      %v1291 = vld [vmem:[#allocation4 + $0x48] sm:$0xff]
      %v1292 = vld [vmem:[#allocation4 + $0x50] sm:$0xff]
      %v1293 = vld [vmem:[#allocation4 + $0x58] sm:$0xff]
      %v1294 = vld [vmem:[#allocation4 + $0x60] sm:$0xff]
      %v1295 = vld [vmem:[#allocation4 + $0x68] sm:$0xff]
      %v1296 = vld [vmem:[#allocation4 + $0x70] sm:$0xff]
      %v1297 = vld [vmem:[#allocation4 + $0x78] sm:$0xff]
      %v1298 = vld [vmem:[#allocation4 + $0x80] sm:$0xff]
      %v1299 = vld [vmem:[#allocation4 + $0x88] sm:$0xff]
      %v1300 = vld [vmem:[#allocation4 + $0x90] sm:$0xff]
      %v1301 = vld [vmem:[#allocation4 + $0x98] sm:$0xff]
      %v1302 = vld [vmem:[#allocation4 + $0xa0] sm:$0xff]
      %v1303 = vld [vmem:[#allocation4 + $0xa8] sm:$0xff]
      %v1304 = vld [vmem:[#allocation4 + $0xb0] sm:$0xff]
      %v1305 = vld [vmem:[#allocation4 + $0xb8] sm:$0xff]
      %v1306 = vld [vmem:[#allocation4 + $0xc0] sm:$0xff]
      %v1307 = vld [vmem:[#allocation4 + $0xc8] sm:$0xff]
      %v1308 = vld [vmem:[#allocation4 + $0xd0] sm:$0xff]
      %v1309 = vld [vmem:[#allocation4 + $0xd8] sm:$0xff]
      %v1310 = vld [vmem:[#allocation4 + $0xe0] sm:$0xff]
      %v1311 = vld [vmem:[#allocation4 + $0xe8] sm:$0xff]
      %v1312 = vld [vmem:[#allocation4 + $0xf0] sm:$0xff]
      %v1313 = vld [vmem:[#allocation4 + $0xf8] sm:$0xff]
      %v1315 = vlaneseq
      %v1316 = vshrl.u32 %v1315, 7
      %v1317 = vsub.s32 0, %v1316
      %v1318 = vrot.slane %v978, %v1317
      %v1319 = vlaneseq
      %v1320 = vshrl.u32 %v1319, 7
      %v1321 = vsub.s32 1, %v1320
      %v1322 = vrot.slane %v978, %v1321
      %v1325 = vmul.f32 %v1318, %v1282
      %v1326 = vmul.f32 %v1322, %v1283
      %v1327 = vmul.f32 %v1318, %v1284
      %v1328 = vmul.f32 %v1322, %v1285
      %v1329 = vmul.f32 %v1318, %v1286
      %v1330 = vmul.f32 %v1322, %v1287
      %v1331 = vmul.f32 %v1318, %v1288
      %v1332 = vmul.f32 %v1322, %v1289
      %v1333 = vmul.f32 %v1318, %v1290
      %v1334 = vmul.f32 %v1322, %v1291
      %v1335 = vmul.f32 %v1318, %v1292
      %v1336 = vmul.f32 %v1322, %v1293
      %v1337 = vmul.f32 %v1318, %v1294
      %v1338 = vmul.f32 %v1322, %v1295
      %v1339 = vmul.f32 %v1318, %v1296
      %v1340 = vmul.f32 %v1322, %v1297
      %v1341 = vmul.f32 %v1318, %v1298
      %v1342 = vmul.f32 %v1322, %v1299
      %v1343 = vmul.f32 %v1318, %v1300
      %v1344 = vmul.f32 %v1322, %v1301
      %v1345 = vmul.f32 %v1318, %v1302
      %v1346 = vmul.f32 %v1322, %v1303
      %v1347 = vmul.f32 %v1318, %v1304
      %v1348 = vmul.f32 %v1322, %v1305
      %v1349 = vmul.f32 %v1318, %v1306
      %v1350 = vmul.f32 %v1322, %v1307
      %v1351 = vmul.f32 %v1318, %v1308
      %v1352 = vmul.f32 %v1322, %v1309
      %v1353 = vmul.f32 %v1318, %v1310
      %v1354 = vmul.f32 %v1322, %v1311
      %v1355 = vmul.f32 %v1318, %v1312
      %v1356 = vmul.f32 %v1322, %v1313
      %v1357 = vpack.c.bf16 %v1059, %v1055
      %v1358 = vpack.c.bf16 %v1061, %v1057
      %v1359 = vpack.c.bf16 %v1067, %v1063
      %v1360 = vpack.c.bf16 %v1069, %v1065
      %v1361 = vpack.c.bf16 %v1075, %v1071
      %v1362 = vpack.c.bf16 %v1077, %v1073
      %v1363 = vpack.c.bf16 %v1083, %v1079
      %v1364 = vpack.c.bf16 %v1085, %v1081
      %v1365 = vpack.c.bf16 %v1091, %v1087
      %v1366 = vpack.c.bf16 %v1093, %v1089
      %v1367 = vpack.c.bf16 %v1099, %v1095
      %v1368 = vpack.c.bf16 %v1101, %v1097
      %v1369 = vpack.c.bf16 %v1107, %v1103
      %v1370 = vpack.c.bf16 %v1109, %v1105
      %v1371 = vpack.c.bf16 %v1115, %v1111
      %v1372 = vpack.c.bf16 %v1117, %v1113
      %v1373 = vpack.c.bf16 %v1123, %v1119
      %v1374 = vpack.c.bf16 %v1125, %v1121
      %v1375 = vpack.c.bf16 %v1131, %v1127
      %v1376 = vpack.c.bf16 %v1133, %v1129
      %v1377 = vpack.c.bf16 %v1139, %v1135
      %v1378 = vpack.c.bf16 %v1141, %v1137
      %v1379 = vpack.c.bf16 %v1147, %v1143
      %v1380 = vpack.c.bf16 %v1149, %v1145
      %v1381 = vpack.c.bf16 %v1155, %v1151
      %v1382 = vpack.c.bf16 %v1157, %v1153
      %v1383 = vpack.c.bf16 %v1163, %v1159
      %v1384 = vpack.c.bf16 %v1165, %v1161
      %v1385 = vpack.c.bf16 %v1171, %v1167
      %v1386 = vpack.c.bf16 %v1173, %v1169
      %v1387 = vpack.c.bf16 %v1179, %v1175
      %v1388 = vpack.c.bf16 %v1181, %v1177
      %v1405 = vunpack.c.l.b16 %v497
      %v1406 = vunpack.c.h.b16 %v497
      %v1407 = vunpack.c.l.b16 %v498
      %v1408 = vunpack.c.h.b16 %v498
      %v1409 = vunpack.c.l.b16 %v499
      %v1410 = vunpack.c.h.b16 %v499
      %v1411 = vunpack.c.l.b16 %v500
      %v1412 = vunpack.c.h.b16 %v500
      %v1413 = vunpack.c.l.b16 %v501
      %v1414 = vunpack.c.h.b16 %v501
      %v1415 = vunpack.c.l.b16 %v502
      %v1416 = vunpack.c.h.b16 %v502
      %v1417 = vunpack.c.l.b16 %v503
      %v1418 = vunpack.c.h.b16 %v503
      %v1419 = vunpack.c.l.b16 %v504
      %v1420 = vunpack.c.h.b16 %v504
      %v1421 = vunpack.c.l.b16 %v505
      %v1422 = vunpack.c.h.b16 %v505
      %v1423 = vunpack.c.l.b16 %v506
      %v1424 = vunpack.c.h.b16 %v506
      %v1425 = vunpack.c.l.b16 %v507
      %v1426 = vunpack.c.h.b16 %v507
      %v1427 = vunpack.c.l.b16 %v508
      %v1428 = vunpack.c.h.b16 %v508
      %v1429 = vunpack.c.l.b16 %v509
      %v1430 = vunpack.c.h.b16 %v509
      %v1431 = vunpack.c.l.b16 %v510
      %v1432 = vunpack.c.h.b16 %v510
      %v1433 = vunpack.c.l.b16 %v511
      %v1434 = vunpack.c.h.b16 %v511
      %v1435 = vunpack.c.l.b16 %v512
      %v1436 = vunpack.c.h.b16 %v512
      %v1437 = vpack.c.b16 %v1407, %v1405
      %v1438 = vpack.c.b16 %v1408, %v1406
      %v1439 = vpack.c.b16 %v1411, %v1409
      %v1440 = vpack.c.b16 %v1412, %v1410
      %v1441 = vpack.c.b16 %v1415, %v1413
      %v1442 = vpack.c.b16 %v1416, %v1414
      %v1443 = vpack.c.b16 %v1419, %v1417
      %v1444 = vpack.c.b16 %v1420, %v1418
      %v1445 = vpack.c.b16 %v1423, %v1421
      %v1446 = vpack.c.b16 %v1424, %v1422
      %v1447 = vpack.c.b16 %v1427, %v1425
      %v1448 = vpack.c.b16 %v1428, %v1426
      %v1449 = vpack.c.b16 %v1431, %v1429
      %v1450 = vpack.c.b16 %v1432, %v1430
      %v1451 = vpack.c.b16 %v1435, %v1433
      %v1452 = vpack.c.b16 %v1436, %v1434
      %1469 = vmatprep.subr.bf16.mxu0 %v1358
      %1470 = vmatpush1.bf16.msra.mxu0 %v1357
      %1471 = vmatprep.subr.bf16.mxu0 %v1360
      %1472 = vmatpush1.bf16.msra.mxu0 %v1359
      %1473 = vmatprep.subr.bf16.mxu0 %v1362
      %1474 = vmatpush1.bf16.msra.mxu0 %v1361
      %1475 = vmatprep.subr.bf16.mxu0 %v1364
      %1476 = vmatpush1.bf16.msra.mxu0 %v1363
      %1477 = vmatprep.subr.bf16.mxu0 %v1366
      %1478 = vmatpush1.bf16.msra.mxu0 %v1365
      %1479 = vmatprep.subr.bf16.mxu0 %v1368
      %1480 = vmatpush1.bf16.msra.mxu0 %v1367
      %1481 = vmatprep.subr.bf16.mxu0 %v1370
      %1482 = vmatpush1.bf16.msra.mxu0 %v1369
      %1483 = vmatprep.subr.bf16.mxu0 %v1372
      %1484 = vmatpush1.bf16.msra.mxu0 %v1371
      %1485 = vmatprep.subr.bf16.mxu0 %v1374
      %1486 = vmatpush1.bf16.msra.mxu0 %v1373
      %1487 = vmatprep.subr.bf16.mxu0 %v1376
      %1488 = vmatpush1.bf16.msra.mxu0 %v1375
      %1489 = vmatprep.subr.bf16.mxu0 %v1378
      %1490 = vmatpush1.bf16.msra.mxu0 %v1377
      %1491 = vmatprep.subr.bf16.mxu0 %v1380
      %1492 = vmatpush1.bf16.msra.mxu0 %v1379
      %1493 = vmatprep.subr.bf16.mxu0 %v1382
      %1494 = vmatpush1.bf16.msra.mxu0 %v1381
      %1495 = vmatprep.subr.bf16.mxu0 %v1384
      %1496 = vmatpush1.bf16.msra.mxu0 %v1383
      %1497 = vmatprep.subr.bf16.mxu0 %v1386
      %1498 = vmatpush1.bf16.msra.mxu0 %v1385
      %1499 = vmatprep.subr.bf16.mxu0 %v1388
      %1500 = vmatpush1.bf16.msra.mxu0 %v1387
      %1501 = vmatprep.mubr.bf16.mxu0 %v1438
      %1502 = vmatmul.mubr.bf16.gmra.mrb[0].mxu0 %v1437
      %v1503 = vpop.f32.mrb[0].mxu0
      %v1504 = vadd.f32 0.0, %v1503
      %v1505 = vpop.f32.mrb[0].mxu0
      %v1506 = vadd.f32 0.0, %v1505
      %v1507 = vpop.f32.mrb[0].mxu0
      %v1508 = vadd.f32 0.0, %v1507
      %v1509 = vpop.f32.mrb[0].mxu0
      %v1510 = vadd.f32 0.0, %v1509
      %1511 = vmatprep.mubr.bf16.mxu0 %v1440
      %1512 = vmatmul.mubr.bf16.gmra.mrb[0].mxu0 %v1439
      %v1513 = vpop.f32.mrb[0].mxu0
      %v1514 = vadd.f32 0.0, %v1513
      %v1515 = vpop.f32.mrb[0].mxu0
      %v1516 = vadd.f32 0.0, %v1515
      %v1517 = vpop.f32.mrb[0].mxu0
      %v1518 = vadd.f32 0.0, %v1517
      %v1519 = vpop.f32.mrb[0].mxu0
      %v1520 = vadd.f32 0.0, %v1519
      %1521 = vmatprep.mubr.bf16.mxu0 %v1442
      %1522 = vmatmul.mubr.bf16.gmra.mrb[0].mxu0 %v1441
      %v1523 = vpop.f32.mrb[0].mxu0
      %v1524 = vadd.f32 0.0, %v1523
      %v1525 = vpop.f32.mrb[0].mxu0
      %v1526 = vadd.f32 0.0, %v1525
      %v1527 = vpop.f32.mrb[0].mxu0
      %v1528 = vadd.f32 0.0, %v1527
      %v1529 = vpop.f32.mrb[0].mxu0
      %v1530 = vadd.f32 0.0, %v1529
      %1531 = vmatprep.mubr.bf16.mxu0 %v1444
      %1532 = vmatmul.mubr.bf16.gmra.mrb[0].mxu0 %v1443
      %v1533 = vpop.f32.mrb[0].mxu0
      %v1534 = vadd.f32 0.0, %v1533
      %v1535 = vpop.f32.mrb[0].mxu0
      %v1536 = vadd.f32 0.0, %v1535
      %v1537 = vpop.f32.mrb[0].mxu0
      %v1538 = vadd.f32 0.0, %v1537
      %v1539 = vpop.f32.mrb[0].mxu0
      %v1540 = vadd.f32 0.0, %v1539
      %1541 = vmatprep.mubr.bf16.mxu0 %v1446
      %1542 = vmatmul.mubr.bf16.gmra.mrb[0].mxu0 %v1445
      %v1543 = vpop.f32.mrb[0].mxu0
      %v1544 = vadd.f32 0.0, %v1543
      %v1545 = vpop.f32.mrb[0].mxu0
      %v1546 = vadd.f32 0.0, %v1545
      %v1547 = vpop.f32.mrb[0].mxu0
      %v1548 = vadd.f32 0.0, %v1547
      %v1549 = vpop.f32.mrb[0].mxu0
      %v1550 = vadd.f32 0.0, %v1549
      %1551 = vmatprep.mubr.bf16.mxu0 %v1448
      %1552 = vmatmul.mubr.bf16.gmra.mrb[0].mxu0 %v1447
      %v1553 = vpop.f32.mrb[0].mxu0
      %v1554 = vadd.f32 0.0, %v1553
      %v1555 = vpop.f32.mrb[0].mxu0
      %v1556 = vadd.f32 0.0, %v1555
      %v1557 = vpop.f32.mrb[0].mxu0
      %v1558 = vadd.f32 0.0, %v1557
      %v1559 = vpop.f32.mrb[0].mxu0
      %v1560 = vadd.f32 0.0, %v1559
      %1561 = vmatprep.mubr.bf16.mxu0 %v1450
      %1562 = vmatmul.mubr.bf16.gmra.mrb[0].mxu0 %v1449
      %v1563 = vpop.f32.mrb[0].mxu0
      %v1564 = vadd.f32 0.0, %v1563
      %v1565 = vpop.f32.mrb[0].mxu0
      %v1566 = vadd.f32 0.0, %v1565
      %v1567 = vpop.f32.mrb[0].mxu0
      %v1568 = vadd.f32 0.0, %v1567
      %v1569 = vpop.f32.mrb[0].mxu0
      %v1570 = vadd.f32 0.0, %v1569
      %1571 = vmatprep.mubr.bf16.mxu0 %v1452
      %1572 = vmatmul.mubr.bf16.gmra.mrb[0].mxu0 %v1451
      %v1573 = vpop.f32.mrb[0].mxu0
      %v1574 = vadd.f32 0.0, %v1573
      %v1575 = vpop.f32.mrb[0].mxu0
      %v1576 = vadd.f32 0.0, %v1575
      %v1577 = vpop.f32.mrb[0].mxu0
      %v1578 = vadd.f32 0.0, %v1577
      %v1579 = vpop.f32.mrb[0].mxu0
      %v1580 = vadd.f32 0.0, %v1579
      %1581 = vdwg.mxu0
      %v1582 = vadd.f32 %v1325, %v1504
      %v1583 = vadd.f32 %v1326, %v1506
      %v1584 = vadd.f32 %v1327, %v1508
      %v1585 = vadd.f32 %v1328, %v1510
      %v1586 = vadd.f32 %v1329, %v1514
      %v1587 = vadd.f32 %v1330, %v1516
      %v1588 = vadd.f32 %v1331, %v1518
      %v1589 = vadd.f32 %v1332, %v1520
      %v1590 = vadd.f32 %v1333, %v1524
      %v1591 = vadd.f32 %v1334, %v1526
      %v1592 = vadd.f32 %v1335, %v1528
      %v1593 = vadd.f32 %v1336, %v1530
      %v1594 = vadd.f32 %v1337, %v1534
      %v1595 = vadd.f32 %v1338, %v1536
      %v1596 = vadd.f32 %v1339, %v1538
      %v1597 = vadd.f32 %v1340, %v1540
      %v1598 = vadd.f32 %v1341, %v1544
      %v1599 = vadd.f32 %v1342, %v1546
      %v1600 = vadd.f32 %v1343, %v1548
      %v1601 = vadd.f32 %v1344, %v1550
      %v1602 = vadd.f32 %v1345, %v1554
      %v1603 = vadd.f32 %v1346, %v1556
      %v1604 = vadd.f32 %v1347, %v1558
      %v1605 = vadd.f32 %v1348, %v1560
      %v1606 = vadd.f32 %v1349, %v1564
      %v1607 = vadd.f32 %v1350, %v1566
      %v1608 = vadd.f32 %v1351, %v1568
      %v1609 = vadd.f32 %v1352, %v1570
      %v1610 = vadd.f32 %v1353, %v1574
      %v1611 = vadd.f32 %v1354, %v1576
      %v1612 = vadd.f32 %v1355, %v1578
      %v1613 = vadd.f32 %v1356, %v1580
      %1614 = vst [vmem:[#allocation4] sm:$0xff] %v1582
      %1615 = vst [vmem:[#allocation4 + $0x8] sm:$0xff] %v1583
      %1616 = vst [vmem:[#allocation4 + $0x10] sm:$0xff] %v1584
      %1617 = vst [vmem:[#allocation4 + $0x18] sm:$0xff] %v1585
      %1618 = vst [vmem:[#allocation4 + $0x20] sm:$0xff] %v1586
      %1619 = vst [vmem:[#allocation4 + $0x28] sm:$0xff] %v1587
      %1620 = vst [vmem:[#allocation4 + $0x30] sm:$0xff] %v1588
      %1621 = vst [vmem:[#allocation4 + $0x38] sm:$0xff] %v1589
      %1622 = vst [vmem:[#allocation4 + $0x40] sm:$0xff] %v1590
      %1623 = vst [vmem:[#allocation4 + $0x48] sm:$0xff] %v1591
      %1624 = vst [vmem:[#allocation4 + $0x50] sm:$0xff] %v1592
      %1625 = vst [vmem:[#allocation4 + $0x58] sm:$0xff] %v1593
      %1626 = vst [vmem:[#allocation4 + $0x60] sm:$0xff] %v1594
      %1627 = vst [vmem:[#allocation4 + $0x68] sm:$0xff] %v1595
      %1628 = vst [vmem:[#allocation4 + $0x70] sm:$0xff] %v1596
      %1629 = vst [vmem:[#allocation4 + $0x78] sm:$0xff] %v1597
      %1630 = vst [vmem:[#allocation4 + $0x80] sm:$0xff] %v1598
      %1631 = vst [vmem:[#allocation4 + $0x88] sm:$0xff] %v1599
      %1632 = vst [vmem:[#allocation4 + $0x90] sm:$0xff] %v1600
      %1633 = vst [vmem:[#allocation4 + $0x98] sm:$0xff] %v1601
      %1634 = vst [vmem:[#allocation4 + $0xa0] sm:$0xff] %v1602
      %1635 = vst [vmem:[#allocation4 + $0xa8] sm:$0xff] %v1603
      %1636 = vst [vmem:[#allocation4 + $0xb0] sm:$0xff] %v1604
      %1637 = vst [vmem:[#allocation4 + $0xb8] sm:$0xff] %v1605
      %1638 = vst [vmem:[#allocation4 + $0xc0] sm:$0xff] %v1606
      %1639 = vst [vmem:[#allocation4 + $0xc8] sm:$0xff] %v1607
      %1640 = vst [vmem:[#allocation4 + $0xd0] sm:$0xff] %v1608
      %1641 = vst [vmem:[#allocation4 + $0xd8] sm:$0xff] %v1609
      %1642 = vst [vmem:[#allocation4 + $0xe0] sm:$0xff] %v1610
      %1643 = vst [vmem:[#allocation4 + $0xe8] sm:$0xff] %v1611
      %1644 = vst [vmem:[#allocation4 + $0xf0] sm:$0xff] %v1612
      %1645 = vst [vmem:[#allocation4 + $0xf8] sm:$0xff] %v1613
      %1646 = vst.msk [vmem:[#allocation2] sm:$0x3] %vm1280, %v975
      // Predicated region
      $region49: #{nonlocal_block.1} parent=43 // pred_check
        %p1647 = pneg %p407
      $region50: #{nonlocal_block.1} parent=43 // pred_check_branch
        %1649 = sbr.rel (%p1647) target = $region52
      $region51: #{nonlocal_block.1} parent=43 // pred_region
        %v1650 = vld [vmem:[#allocation4] sm:$0xff]
        %v1651 = vld [vmem:[#allocation4 + $0x8] sm:$0xff]
        %v1652 = vld [vmem:[#allocation4 + $0x10] sm:$0xff]
        %v1653 = vld [vmem:[#allocation4 + $0x18] sm:$0xff]
        %v1654 = vld [vmem:[#allocation4 + $0x20] sm:$0xff]
        %v1655 = vld [vmem:[#allocation4 + $0x28] sm:$0xff]
        %v1656 = vld [vmem:[#allocation4 + $0x30] sm:$0xff]
        %v1657 = vld [vmem:[#allocation4 + $0x38] sm:$0xff]
        %v1658 = vld [vmem:[#allocation4 + $0x40] sm:$0xff]
        %v1659 = vld [vmem:[#allocation4 + $0x48] sm:$0xff]
        %v1660 = vld [vmem:[#allocation4 + $0x50] sm:$0xff]
        %v1661 = vld [vmem:[#allocation4 + $0x58] sm:$0xff]
        %v1662 = vld [vmem:[#allocation4 + $0x60] sm:$0xff]
        %v1663 = vld [vmem:[#allocation4 + $0x68] sm:$0xff]
        %v1664 = vld [vmem:[#allocation4 + $0x70] sm:$0xff]
        %v1665 = vld [vmem:[#allocation4 + $0x78] sm:$0xff]
        %v1666 = vld [vmem:[#allocation4 + $0x80] sm:$0xff]
        %v1667 = vld [vmem:[#allocation4 + $0x88] sm:$0xff]
        %v1668 = vld [vmem:[#allocation4 + $0x90] sm:$0xff]
        %v1669 = vld [vmem:[#allocation4 + $0x98] sm:$0xff]
        %v1670 = vld [vmem:[#allocation4 + $0xa0] sm:$0xff]
        %v1671 = vld [vmem:[#allocation4 + $0xa8] sm:$0xff]
        %v1672 = vld [vmem:[#allocation4 + $0xb0] sm:$0xff]
        %v1673 = vld [vmem:[#allocation4 + $0xb8] sm:$0xff]
        %v1674 = vld [vmem:[#allocation4 + $0xc0] sm:$0xff]
        %v1675 = vld [vmem:[#allocation4 + $0xc8] sm:$0xff]
        %v1676 = vld [vmem:[#allocation4 + $0xd0] sm:$0xff]
        %v1677 = vld [vmem:[#allocation4 + $0xd8] sm:$0xff]
        %v1678 = vld [vmem:[#allocation4 + $0xe0] sm:$0xff]
        %v1679 = vld [vmem:[#allocation4 + $0xe8] sm:$0xff]
        %v1680 = vld [vmem:[#allocation4 + $0xf0] sm:$0xff]
        %v1681 = vld [vmem:[#allocation4 + $0xf8] sm:$0xff]
        %v1682 = vld [vmem:[#allocation3] sm:$0x3]
        %v1683 = vrcp.pop %v1682
        %v1685 = vlaneseq
        %v1686 = vshrl.u32 %v1685, 7
        %v1687 = vsub.s32 0, %v1686
        %v1688 = vrot.slane %v1683, %v1687
        %v1689 = vlaneseq
        %v1690 = vshrl.u32 %v1689, 7
        %v1691 = vsub.s32 1, %v1690
        %v1692 = vrot.slane %v1683, %v1691
        %v1695 = vmul.f32 %v1650, %v1688
        %v1696 = vmul.f32 %v1651, %v1692
        %v1697 = vmul.f32 %v1652, %v1688
        %v1698 = vmul.f32 %v1653, %v1692
        %v1699 = vmul.f32 %v1654, %v1688
        %v1700 = vmul.f32 %v1655, %v1692
        %v1701 = vmul.f32 %v1656, %v1688
        %v1702 = vmul.f32 %v1657, %v1692
        %v1703 = vmul.f32 %v1658, %v1688
        %v1704 = vmul.f32 %v1659, %v1692
        %v1705 = vmul.f32 %v1660, %v1688
        %v1706 = vmul.f32 %v1661, %v1692
        %v1707 = vmul.f32 %v1662, %v1688
        %v1708 = vmul.f32 %v1663, %v1692
        %v1709 = vmul.f32 %v1664, %v1688
        %v1710 = vmul.f32 %v1665, %v1692
        %v1711 = vmul.f32 %v1666, %v1688
        %v1712 = vmul.f32 %v1667, %v1692
        %v1713 = vmul.f32 %v1668, %v1688
        %v1714 = vmul.f32 %v1669, %v1692
        %v1715 = vmul.f32 %v1670, %v1688
        %v1716 = vmul.f32 %v1671, %v1692
        %v1717 = vmul.f32 %v1672, %v1688
        %v1718 = vmul.f32 %v1673, %v1692
        %v1719 = vmul.f32 %v1674, %v1688
        %v1720 = vmul.f32 %v1675, %v1692
        %v1721 = vmul.f32 %v1676, %v1688
        %v1722 = vmul.f32 %v1677, %v1692
        %v1723 = vmul.f32 %v1678, %v1688
        %v1724 = vmul.f32 %v1679, %v1692
        %v1725 = vmul.f32 %v1680, %v1688
        %v1726 = vmul.f32 %v1681, %v1692
        %v1727 = vld [vmem:[%s4] sm:$0x3]
        %v1728 = vpack.c.bf16 %v1697, %v1695
        %v1729 = vpack.c.bf16 %v1698, %v1696
        %v1730 = vpack.c.bf16 %v1701, %v1699
        %v1731 = vpack.c.bf16 %v1702, %v1700
        %v1732 = vpack.c.bf16 %v1705, %v1703
        %v1733 = vpack.c.bf16 %v1706, %v1704
        %v1734 = vpack.c.bf16 %v1709, %v1707
        %v1735 = vpack.c.bf16 %v1710, %v1708
        %v1736 = vpack.c.bf16 %v1713, %v1711
        %v1737 = vpack.c.bf16 %v1714, %v1712
        %v1738 = vpack.c.bf16 %v1717, %v1715
        %v1739 = vpack.c.bf16 %v1718, %v1716
        %v1740 = vpack.c.bf16 %v1721, %v1719
        %v1741 = vpack.c.bf16 %v1722, %v1720
        %v1742 = vpack.c.bf16 %v1725, %v1723
        %v1743 = vpack.c.bf16 %v1726, %v1724
        %v1744 = vld [vmem:[%s5] sm:$0xf]
        %1746 = vset.pattern.permute.xlu0 0
        %1747 = vperm.xlu0 %1746, %v1744
        %v1748 = vpop.permute.xlu0 %1747
        %1750 = vmatprep.subr.bf16.mxu0 %v1729
        %1751 = vmatpush1.bf16.msra.mxu0 %v1728
        %1752 = vmatprep.subr.bf16.mxu0 %v1731
        %1753 = vmatpush1.bf16.msra.mxu0 %v1730
        %1754 = vmatprep.subr.bf16.mxu0 %v1733
        %1755 = vmatpush1.bf16.msra.mxu0 %v1732
        %1756 = vmatprep.subr.bf16.mxu0 %v1735
        %1757 = vmatpush1.bf16.msra.mxu0 %v1734
        %1758 = vmatprep.subr.bf16.mxu0 %v1737
        %1759 = vmatpush1.bf16.msra.mxu0 %v1736
        %1760 = vmatprep.subr.bf16.mxu0 %v1739
        %1761 = vmatpush1.bf16.msra.mxu0 %v1738
        %1762 = vmatprep.subr.bf16.mxu0 %v1741
        %1763 = vmatpush1.bf16.msra.mxu0 %v1740
        %1764 = vmatprep.subr.bf16.mxu0 %v1743
        %1765 = vmatpush1.bf16.msra.mxu0 %v1742
        %1766 = vmatprep.subr.bf16.mxu0 0
        %1767 = vmatpush1.bf16.msra.mxu0 0
        %1768 = vmatprep.subr.bf16.mxu0 0
        %1769 = vmatpush1.bf16.msra.mxu0 0
        %1770 = vmatprep.subr.bf16.mxu0 0
        %1771 = vmatpush1.bf16.msra.mxu0 0
        %1772 = vmatprep.subr.bf16.mxu0 0
        %1773 = vmatpush1.bf16.msra.mxu0 0
        %1774 = vmatprep.subr.bf16.mxu0 0
        %1775 = vmatpush1.bf16.msra.mxu0 0
        %1776 = vmatprep.subr.bf16.mxu0 0
        %1777 = vmatpush1.bf16.msra.mxu0 0
        %1778 = vmatprep.subr.bf16.mxu0 0
        %1779 = vmatpush1.bf16.msra.mxu0 0
        %1780 = vmatprep.subr.bf16.mxu0 0
        %1781 = vmatpush1.bf16.msra.mxu0 0
        %1782 = vmatprep.mubr.bf16.mxu0 0
        %1783 = vmatmul.mubr.bf16.gmra.mrb[0].mxu0 %v1727
        %v1784 = vpop.f32.mrb[0].mxu0
        %v1785 = vadd.f32 %v1748, %v1784
        %v1786 = vpop.f32.mrb[0].mxu0
        %v1787 = vadd.f32 %v1748, %v1786
        %v1788 = vpop.f32.mrb[0].mxu0
        %v1789 = vpop.f32.mrb[0].mxu0
        %1790 = vdwg.mxu0
        %v1791 = vld [vmem:[%s364] sm:$0xff]
        %v1793 = vcombine.high %v1791, %v1791
        %v1795 = vadd.f32 %v1785, %v1791
        %v1796 = vadd.f32 %v1787, %v1793
        %v1799 = vcombine.low %v1795, %v1796
        %1801 = vst [vmem:[%s404] sm:$0xff] %v1799
      $region52: #{nonlocal_block.1} parent=43 // pred_fallthru
        _
      %s1802 = smul.u32 2, %s23
      %p1803 = scmp.lt.s32.totalorder %s22, 1
      %s1804 = scalar_select %p1803, %s22, 1
      %p1805 = scmp.lt.s32.totalorder %s1802, 1
      %s1806 = scalar_select %p1805, %s1802, 1
      %s1807 = smul.addr %s1804, 2
      %s1808 = sadd.s32 %s1806, %s1807
      %s1809 = smul.addr %s1808, 4
      %s1810 = scalar_lea.vmem %s6, %s1809
      // Predicated region
      $region53: #{nonlocal_block.1} parent=43 // pred_check
        %p1811 = pneg %p210
      $region54: #{nonlocal_block.1} parent=43 // pred_check_branch
        %1813 = sbr.rel (%p1811) target = $region56
      $region55: #{nonlocal_block.1} parent=43 // pred_region
        %s1814 = smul.u32 2, %s23
      $region56: #{nonlocal_block.1} parent=43 // pred_fallthru
        _
    $region44: #{nonlocal_block.1} parent=5 // pred_fallthru
      _
    %p1815 = scmp.le.s32.totalorder 2, %s12
    // Predicated region
    $region57: #{nonlocal_block.1} parent=5 // pred_check
      %p1816 = pneg %p1815
    $region58: #{nonlocal_block.1} parent=5 // pred_check_branch
      %1818 = sbr.rel (%p1816) target = $region60
    $region59: #{nonlocal_block.1} parent=5 // pred_region
      %s1819 = ssub.s32 %s12, 2
      // Predicated region
      $region61: #{nonlocal_block.1} parent=59 // pred_check
        %p1820 = pneg %p216
      $region62: #{nonlocal_block.1} parent=59 // pred_check_branch
        %1822 = sbr.rel (%p1820) target = $region64
      $region63: #{nonlocal_block.1} parent=59 // pred_region
        %s1823 = smul.u32 2, %s26
        %p1824 = scmp.lt.s32.totalorder %s25, 1
        %s1825 = scalar_select %p1824, %s25, 1
        %p1826 = scmp.lt.s32.totalorder %s1823, 1
        %s1827 = scalar_select %p1826, %s1823, 1
        %s1828 = smul.addr %s1825, 2
        %s1829 = sadd.s32 %s1827, %s1828
        %s1830 = smul.addr %s1829, 4
        %s1831 = scalar_lea.vmem %s6, %s1830
      $region64: #{nonlocal_block.1} parent=59 // pred_fallthru
        _
    $region60: #{nonlocal_block.1} parent=5 // pred_fallthru
      _
  $region6: #{nonlocal_block.1} parent=0 // loop_footer
    %s16 = sadd.s32 1, %s12
  $region7: #{nonlocal_block.1} parent=0 // loop_footer_branch
    %11 = sbr.rel target = $region3
  $region8: #{nonlocal_block.1} parent=0 // loop_exit
    _

</llo_original>
